<compile_context>
chip_gen: v6e
topology: v6e:2x2x1
jax: 0.10.0
libtpu: 0.0.40
codegen_flags: <defaults>
</compile_context>

<pallas_src>
import functools

import jax
import jax.numpy as jnp
from jax.experimental import pallas as pl
from jax.experimental.pallas import tpu as pltpu

NEG_INF = float(jnp.finfo(jnp.float32).min)


# ----------------------------- tiling helpers -------------------------------


def _tile(dim, target, align):
    """Largest tile t <= target with dim % t == 0 and t % align == 0.

    Falls back to the full dimension (always a legal block) only when no aligned
    divisor exists -- never silently blows the tile up past `target` otherwise.
    """
    if dim <= target:
        return dim
    t = (target // align) * align
    while t >= align:
        if dim % t == 0:
            return t
        t -= align
    return dim


def _split_parallel(dim, tile, align):
    """Prefer >=2 blocks along a 'parallel' grid axis (v7x: 2 TensorCores) when
    the halved tile stays (8,128)-aligned; otherwise keep the given tile."""
    if dim // tile >= 2:
        return tile
    half = _tile(dim, max(align, tile // 2), align)
    if half % align == 0 and dim // half >= 2:
        return half
    return tile


@functools.lru_cache(maxsize=None)
def _vmem_limit_bytes():
    """Generation-aware scoped-VMEM budget: ~48 MiB on v7x (64 MiB physical),
    up to 96 MiB on v5e/v6e (128 MiB physical)."""
    phys = 128 * 1024 * 1024
    try:
        info = pltpu.get_tpu_info()
        phys = int(getattr(info, "vmem_capacity_bytes", phys) or phys)
    except Exception:
        pass
    return min(96 * 1024 * 1024, (phys * 3) // 4)


@functools.lru_cache(maxsize=None)
def _single_buffer_ok():
    """Probe whether this runtime accepts pipeline_mode=pl.Buffered(1) for
    grid-invariant operands; fall back to default double-buffering if not."""
    try:
        def _probe(x_ref, o_ref):
            o_ref[...] = x_ref[...]

        spec = pl.BlockSpec((8, 128), lambda i: (0, 0), pipeline_mode=pl.Buffered(1))
        out = pl.pallas_call(
            _probe,
            grid=(1,),
            in_specs=[spec],
            out_specs=pl.BlockSpec((8, 128), lambda i: (0, 0)),
            out_shape=jax.ShapeDtypeStruct((8, 128), jnp.float32),
        )(jnp.zeros((8, 128), jnp.float32))
        jax.block_until_ready(out)
        return True
    except Exception:
        return False


def _invariant_spec(shape, index_map):
    """BlockSpec for operands whose block barely changes across the grid:
    single-buffer them (frees VMEM for compute tiles) when supported."""
    if _single_buffer_ok():
        return pl.BlockSpec(shape, index_map, pipeline_mode=pl.Buffered(1))
    return pl.BlockSpec(shape, index_map)


# ----------------------------- Pallas kernels -------------------------------


def _matmul_bias_kernel(x_ref, w_ref, b_ref, o_ref, acc_ref, *, activation):
    """Tiled X @ W + b (bf16 operands, f32 accumulator) with optional activation."""
    @pl.when(pl.program_id(2) == 0)
    def _():
        acc_ref[...] = jnp.zeros_like(acc_ref)

    acc_ref[...] += jnp.dot(x_ref[...], w_ref[...],
                            preferred_element_type=jnp.float32)

    @pl.when(pl.program_id(2) == pl.num_programs(2) - 1)
    def _():
        y = acc_ref[...] + b_ref[...]
        if activation == "gelu":
            # BERT default hidden_act="gelu" -> exact erf-based GELU (f32)
            y = 0.5 * y * (1.0 + jax.lax.erf(y * 0.7071067811865476))
        elif activation == "tanh":
            y = jnp.tanh(y)
        o_ref[...] = y.astype(o_ref.dtype)


def dense(x, w, b, activation="none", *, tm=512, tn=512, tk=512):
    """x: (M,K) bf16, w: (K,N) bf16, b: (N,) f32 -> (M,N) bf16."""
    m, kdim = x.shape
    n = w.shape[1]
    tm = _tile(m, tm, 8)
    tn = _split_parallel(n, _tile(n, tn, 128), 128)
    tk = _tile(kdim, tk, 128)
    grid = (m // tm, n // tn, kdim // tk)
    # TODO(synk): sweep weight pipeline_mode=pl.Buffered(3) on v6e if weight DMA
    #             is still exposed in the weight-streaming (small B*S) regime.
    return pl.pallas_call(
        functools.partial(_matmul_bias_kernel, activation=activation),
        grid_spec=pltpu.PrefetchScalarGridSpec(
            num_scalar_prefetch=0,
            grid=grid,
            in_specs=[
                pl.BlockSpec((tm, tk), lambda i, j, k: (i, k)),
                pl.BlockSpec((tk, tn), lambda i, j, k: (k, j)),
                _invariant_spec((1, tn), lambda i, j, k: (0, j)),
            ],
            out_specs=pl.BlockSpec((tm, tn), lambda i, j, k: (i, j)),
            scratch_shapes=[pltpu.VMEM((tm, tn), jnp.float32)],
        ),
        out_shape=jax.ShapeDtypeStruct((m, n), jnp.bfloat16),
        compiler_params=pltpu.CompilerParams(
            dimension_semantics=("parallel", "parallel", "arbitrary"),
            vmem_limit_bytes=_vmem_limit_bytes()),
    )(x, w, b.reshape(1, n))


def _matmul_res_ln_kernel(x_ref, w_ref, b_ref, res_ref, g_ref, beta_ref,
                          o_ref, acc_ref, *, eps):
    """Tiled X @ W + b, fused (+ residual) -> LayerNorm epilogue (full-N tile)."""
    @pl.when(pl.program_id(1) == 0)
    def _():
        acc_ref[...] = jnp.zeros_like(acc_ref)

    acc_ref[...] += jnp.dot(x_ref[...], w_ref[...],
                            preferred_element_type=jnp.float32)

    @pl.when(pl.program_id(1) == pl.num_programs(1) - 1)
    def _():
        y = acc_ref[...] + b_ref[...] + res_ref[...].astype(jnp.float32)
        mu = jnp.mean(y, axis=-1, keepdims=True)
        var = jnp.mean(jnp.square(y - mu), axis=-1, keepdims=True)
        out = (y - mu) * jax.lax.rsqrt(var + eps) * g_ref[...] + beta_ref[...]
        o_ref[...] = out.astype(o_ref.dtype)


def dense_res_ln(x, w, b, residual, gamma, beta, *, eps=1e-12, tm=512, tk=512):
    """LayerNorm(x @ w + b + residual) with f32 statistics; bf16 in / bf16 out."""
    m, kdim = x.shape
    n = w.shape[1]
    tm = _split_parallel(m, _tile(m, tm, 8), 8)
    tk = _tile(kdim, tk, 128)
    grid = (m // tm, kdim // tk)
    return pl.pallas_call(
        functools.partial(_matmul_res_ln_kernel, eps=eps),
        grid_spec=pltpu.PrefetchScalarGridSpec(
            num_scalar_prefetch=0,
            grid=grid,
            in_specs=[
                pl.BlockSpec((tm, tk), lambda i, k: (i, k)),
                pl.BlockSpec((tk, n), lambda i, k: (k, 0)),
                _invariant_spec((1, n), lambda i, k: (0, 0)),
                _invariant_spec((tm, n), lambda i, k: (i, 0)),  # constant along k
                _invariant_spec((1, n), lambda i, k: (0, 0)),
                _invariant_spec((1, n), lambda i, k: (0, 0)),
            ],
            out_specs=pl.BlockSpec((tm, n), lambda i, k: (i, 0)),
            scratch_shapes=[pltpu.VMEM((tm, n), jnp.float32)],
        ),
        out_shape=jax.ShapeDtypeStruct((m, n), jnp.bfloat16),
        compiler_params=pltpu.CompilerParams(
            dimension_semantics=("parallel", "arbitrary"),
            vmem_limit_bytes=_vmem_limit_bytes()),
    )(x, w, b.reshape(1, n), residual, gamma.reshape(1, n), beta.reshape(1, n))


def _emb_ln_kernel(we_ref, pt_ref, g_ref, b_ref, o_ref, *, eps):
    """Fused (word_emb + pos/type_emb) -> LayerNorm on a row tile (f32 stats)."""
    x = we_ref[...].astype(jnp.float32) + pt_ref[...].astype(jnp.float32)
    mu = jnp.mean(x, axis=-1, keepdims=True)
    var = jnp.mean(jnp.square(x - mu), axis=-1, keepdims=True)
    out = (x - mu) * jax.lax.rsqrt(var + eps) * g_ref[...] + b_ref[...]
    o_ref[...] = out.astype(o_ref.dtype)


def embed_layernorm(we, pos_type, gamma, beta, *, eps=1e-12, tm=256):
    """Row-flattened embedding LayerNorm: (B*S, H) bf16 in -> (B*S, H) bf16 out."""
    rows, h = we.shape
    tm = _tile(rows, tm, 8)
    return pl.pallas_call(
        functools.partial(_emb_ln_kernel, eps=eps),
        grid=(rows // tm,),
        in_specs=[
            pl.BlockSpec((tm, h), lambda i: (i, 0)),
            pl.BlockSpec((tm, h), lambda i: (i, 0)),
            _invariant_spec((1, h), lambda i: (0, 0)),
            _invariant_spec((1, h), lambda i: (0, 0)),
        ],
        out_specs=pl.BlockSpec((tm, h), lambda i: (i, 0)),
        out_shape=jax.ShapeDtypeStruct((rows, h), jnp.bfloat16),
        compiler_params=pltpu.CompilerParams(
            dimension_semantics=("parallel",),
            vmem_limit_bytes=_vmem_limit_bytes()),
    )(we, pos_type, gamma.reshape(1, h), beta.reshape(1, h))


def _attention_kernel(qkv_ref, bias_ref, o_ref, *, num_heads, head_dim, hidden,
                      scale):
    """Per-batch attention over the fused (S, 3H) qkv slab; heads looped inside,
    output written once as a lane-dense (S, H) slab."""
    qkv = qkv_ref[...]                                   # (S, 3H) bf16
    bias = bias_ref[0]                                   # (1, S)  f32 mask bias
    outs = []
    for h in range(num_heads):
        lo = h * head_dim
        q = qkv[:, lo:lo + head_dim]
        k = qkv[:, hidden + lo:hidden + lo + head_dim]
        v = qkv[:, 2 * hidden + lo:2 * hidden + lo + head_dim]
        # scores = q @ k^T (contract last dims), f32 accumulation + f32 stats
        s = jax.lax.dot_general(q, k, (((1,), (1,)), ((), ())),
                                preferred_element_type=jnp.float32) * scale
        s = s + bias
        s = s - jnp.max(s, axis=-1, keepdims=True)       # stable softmax
        p = jnp.exp(s)
        p = p * pl.reciprocal(jnp.sum(p, axis=-1, keepdims=True), approx=True)
        outs.append(jnp.dot(p.astype(jnp.bfloat16), v,
                            preferred_element_type=jnp.float32))
    o_ref[...] = jnp.concatenate(outs, axis=-1).astype(o_ref.dtype)


def attention(qkv, bias, *, num_heads, head_dim, hidden, seq):
    """qkv: (B*S, 3H) bf16, bias: (B, 1, S) f32 -> context (B*S, H) bf16."""
    rows = qkv.shape[0]
    bsz = rows // seq
    # TODO(synk): flash-style KV tiling (online softmax) for long sequences, and
    #             pad head_dim/hidden to multiples of 128 lanes for real configs.
    return pl.pallas_call(
        functools.partial(_attention_kernel, num_heads=num_heads,
                          head_dim=head_dim, hidden=hidden,
                          scale=1.0 / (head_dim ** 0.5)),
        grid=(bsz,),
        in_specs=[
            pl.BlockSpec((seq, 3 * hidden), lambda b: (b, 0)),
            pl.BlockSpec((1, 1, seq), lambda b: (b, 0, 0)),
        ],
        out_specs=pl.BlockSpec((seq, hidden), lambda b: (b, 0)),
        out_shape=jax.ShapeDtypeStruct((rows, hidden), jnp.bfloat16),
        compiler_params=pltpu.CompilerParams(
            dimension_semantics=("parallel",),
            vmem_limit_bytes=_vmem_limit_bytes()),
    )(qkv, bias)


def _pooler_cls_kernel(x_ref, wp_ref, bp_ref, wc_ref, bc_ref, o_ref):
    pooled = jnp.tanh(jnp.dot(x_ref[...], wp_ref[...],
                              preferred_element_type=jnp.float32) + bp_ref[...])
    o_ref[...] = jnp.dot(pooled.astype(jnp.bfloat16), wc_ref[...],
                         preferred_element_type=jnp.float32) + bc_ref[...]


def pooler_classifier(x0, wp, bp, wc, bc):
    """tanh(x0 @ wp + bp) @ wc + bc, fused in one small kernel; f32 logits out."""
    bsz, h = x0.shape
    nr = wc.shape[1]
    return pl.pallas_call(
        _pooler_cls_kernel,
        out_shape=jax.ShapeDtypeStruct((bsz, nr), jnp.float32),
    )(x0, wp, bp.reshape(1, h), wc, bc.reshape(1, nr))


# --------------------------- model (JAX glue) --------------------------------


def bert_embeddings(input_ids, p):
    bsz, s = input_ids.shape
    h = p["word_emb"].shape[1]
    # Embedding gather is layout plumbing; done in plain JAX (bf16 tables).
    we = jnp.take(p["word_emb"], input_ids.reshape(-1), axis=0)       # (B*S, H)
    pos_type = (p["pos_emb"][:s].astype(jnp.float32)
                + p["type_emb"][0][None, :].astype(jnp.float32)).astype(jnp.bfloat16)
    pt = jnp.broadcast_to(pos_type[None], (bsz, s, h)).reshape(bsz * s, h)
    return embed_layernorm(we, pt, p["emb_ln_g"], p["emb_ln_b"])


def bert_layer(x, bias, lp, *, num_heads, seq):
    rows, h = x.shape                                   # x: (B*S, H) bf16
    dh = h // num_heads

    # Fused Q/K/V projection: one [H, 3H] matmul (bf16 weights).
    qkv = dense(x, lp["qkv_w"], lp["qkv_b"])            # (B*S, 3H) bf16
    # Attention consumes qkv directly per batch -- no head split/merge transposes.
    ctx = attention(qkv, bias, num_heads=num_heads, head_dim=dh,
                    hidden=h, seq=seq)                  # (B*S, H) bf16

    # attention output projection + residual + LayerNorm fused in one kernel
    x1 = dense_res_ln(ctx, lp["o_w"], lp["o_b"], x, lp["ln1_g"], lp["ln1_b"])
    # FFN up-projection with fused GELU
    inter = dense(x1, lp["i_w"], lp["i_b"], activation="gelu")
    # FFN down-projection + residual + LayerNorm fused in one kernel
    return dense_res_ln(inter, lp["f_w"], lp["f_b"], x1, lp["ln2_g"], lp["ln2_b"])


def rate_predictor_forward(input_tokens, params, *, num_heads, pad_idx):
    bsz, seq = input_tokens.shape
    # attention_mask = input_tokens.ne(pad_idx); additive bias like HF, kept (B,1,S)
    mask = (input_tokens != pad_idx).astype(jnp.float32)
    bias = ((1.0 - mask) * NEG_INF)[:, None, :]

    x = bert_embeddings(input_tokens, params)           # (B*S, H) bf16
    for lp in params["layers"]:
        x = bert_layer(x, bias, lp, num_heads=num_heads, seq=seq)

    h = x.shape[1]
    cls = x.reshape(bsz, seq, h)[:, 0, :]               # (B, H) bf16, CLS token
    # pooler: tanh(Linear(hidden_states[:, 0])) + rate_classifier, fused
    return pooler_classifier(cls, params["pooler_w"], params["pooler_b"],
                             params["cls_w"], params["cls_b"])


# ------------------------------ parameters -----------------------------------


def init_params(key, *, vocab, hidden, num_layers, inter, max_pos,
                type_vocab, num_rate):
    keys = iter(jax.random.split(key, 8 + 8 * num_layers))

    def norm(shape):
        # weights & embedding tables live in bf16 in HBM (MXU-native, half DMA)
        return (0.02 * jax.random.normal(next(keys), shape)).astype(jnp.bfloat16)

    def zeros(shape):
        return jnp.zeros(shape, jnp.float32)

    def ones(shape):
        return jnp.ones(shape, jnp.float32)

    params = dict(
        word_emb=norm((vocab, hidden)),
        pos_emb=norm((max_pos, hidden)),
        type_emb=norm((type_vocab, hidden)),
        emb_ln_g=ones((hidden,)), emb_ln_b=zeros((hidden,)),
        layers=[],
        pooler_w=norm((hidden, hidden)), pooler_b=zeros((hidden,)),
        cls_w=norm((hidden, num_rate)), cls_b=zeros((num_rate,)),
    )
    for _ in range(num_layers):
        q_w, k_w, v_w = (norm((hidden, hidden)) for _ in range(3))
        params["layers"].append(dict(
            # HF q/k/v weights fused along the output dim -> one matmul.
            qkv_w=jnp.concatenate([q_w, k_w, v_w], axis=1),
            qkv_b=zeros((3 * hidden,)),
            o_w=norm((hidden, hidden)), o_b=zeros((hidden,)),
            ln1_g=ones((hidden,)), ln1_b=zeros((hidden,)),
            i_w=norm((hidden, inter)), i_b=zeros((inter,)),
            f_w=norm((inter, hidden)), f_b=zeros((hidden,)),
            ln2_g=ones((hidden,)), ln2_b=zeros((hidden,)),
        ))
    return params


# --------------------------------- main ---------------------------------------


if __name__ == "__main__":
    # small BertConfig-like dims
    B, S = 2, 8
    VOCAB, HIDDEN, LAYERS, HEADS, INTER = 32, 32, 2, 4, 64
    MAX_POS, TYPE_VOCAB, NUM_RATE = 16, 2, 3
    BOS_IDX, PAD_IDX = 0, 1

    key = jax.random.PRNGKey(0)
    tok_key, param_key = jax.random.split(key)

    params = init_params(param_key, vocab=VOCAB, hidden=HIDDEN,
                         num_layers=LAYERS, inter=INTER, max_pos=MAX_POS,
                         type_vocab=TYPE_VOCAB, num_rate=NUM_RATE)

    input_tokens = jax.random.randint(tok_key, (B, S), 2, VOCAB, dtype=jnp.int32)
    input_tokens = input_tokens.at[:, 0].set(BOS_IDX)
    input_tokens = input_tokens.at[1, 5:].set(PAD_IDX)   # padding exercises the mask

    _single_buffer_ok()   # run the Buffered(1) capability probe eagerly (outside jit)

    fwd = jax.jit(functools.partial(rate_predictor_forward,
                                    num_heads=HEADS, pad_idx=PAD_IDX))
    logits = jax.block_until_ready(fwd(input_tokens, params))
    assert logits.shape == (B, NUM_RATE) and logits.dtype == jnp.float32
    print("KERNEL_OK")
</pallas_src>

<mosaic_0001>
module attributes {stable_mosaic.version = 11 : i64} {
  func.func @_probe(%arg0: i32, %arg1: memref<8x128xf32, #tpu.memory_space<vmem>>, %arg2: memref<8x128xf32, #tpu.memory_space<vmem>>) attributes {dimension_semantics = [#tpu.dimension_semantics<arbitrary>], iteration_bounds = array<i64: 1>, scalar_prefetch = 0 : i64, scratch_operands = 0 : i64, tpu.core_type = #tpu.core_type<tc>, window_params = [{pipeline_mode = #tpu.pipeline_mode<synchronous>, transform_indices = @transform_0, window_bounds = array<i64: 8, 128>}, {pipeline_mode = #tpu.pipeline_mode<synchronous>, transform_indices = @transform_1, window_bounds = array<i64: 8, 128>}]} {
    %c0 = arith.constant 0 : index
    %c0_0 = arith.constant 0 : index
    %0 = vector.load %arg1[%c0, %c0_0] : memref<8x128xf32, #tpu.memory_space<vmem>>, vector<8x128xf32>
    %c0_1 = arith.constant 0 : index
    %c0_2 = arith.constant 0 : index
    %1 = vector.load %arg2[%c0_1, %c0_2] : memref<8x128xf32, #tpu.memory_space<vmem>>, vector<8x128xf32>
    tpu.vector_store %arg2[%c0_1, %c0_2], %0 {strides = array<i32>} : memref<8x128xf32, #tpu.memory_space<vmem>>, vector<8x128xf32>,
    return
  }
  func.func @transform_0(%arg0: i32) -> (i32, i32) {
    %c0_i32 = arith.constant 0 : i32
    %c0_i32_0 = arith.constant 0 : i32
    %c0_i32_1 = arith.constant 0 : i32
    return %c0_i32, %c0_i32_0 : i32, i32
  }
  func.func @transform_1(%arg0: i32) -> (i32, i32) {
    %c0_i32 = arith.constant 0 : i32
    %c0_i32_0 = arith.constant 0 : i32
    %c0_i32_1 = arith.constant 0 : i32
    return %c0_i32, %c0_i32_0 : i32, i32
  }
}

module attributes {stable_mosaic.version = 11 : i64} {
  func.func @_attention_kernel(%arg0: i32, %arg1: memref<8x96xbf16, #tpu.memory_space<vmem>>, %arg2: memref<1x1x8xf32, #tpu.memory_space<vmem>>, %arg3: memref<8x32xbf16, #tpu.memory_space<vmem>>) attributes {dimension_semantics = [#tpu.dimension_semantics<parallel>], iteration_bounds = array<i64: 2>, scalar_prefetch = 0 : i64, scratch_operands = 0 : i64, tpu.core_type = #tpu.core_type<tc>, window_params = [{transform_indices = @transform_0, window_bounds = array<i64: 8, 96>}, {transform_indices = @transform_1, window_bounds = array<i64: 1, 1, 8>}, {transform_indices = @transform_2, window_bounds = array<i64: 8, 32>}]} {
    %c0 = arith.constant 0 : index
    %c0_0 = arith.constant 0 : index
    %0 = vector.load %arg1[%c0, %c0_0] : memref<8x96xbf16, #tpu.memory_space<vmem>>, vector<8x96xbf16>
    %c0_1 = arith.constant 0 : index
    %c0_2 = arith.constant 0 : index
    %c0_3 = arith.constant 0 : index
    %1 = vector.load %arg2[%c0_1, %c0_2, %c0_3] : memref<1x1x8xf32, #tpu.memory_space<vmem>>, vector<1x1x8xf32>
    %2 = vector.shape_cast %1 : vector<1x1x8xf32> to vector<1x8xf32>
    %3 = vector.extract_strided_slice %0 {offsets = [0, 0], sizes = [8, 8], strides = [1, 1]} : vector<8x96xbf16> to vector<8x8xbf16>
    %4 = vector.extract_strided_slice %0 {offsets = [0, 32], sizes = [8, 8], strides = [1, 1]} : vector<8x96xbf16> to vector<8x8xbf16>
    %5 = vector.extract_strided_slice %0 {offsets = [0, 64], sizes = [8, 8], strides = [1, 1]} : vector<8x96xbf16> to vector<8x8xbf16>
    %cst = arith.constant dense<0.000000e+00> : vector<8x8xf32>
    %6 = tpu.matmul %3, %4, %cst {dimension_numbers = #tpu.dot_dimension_numbers<[1], [1], [0], [0], [0, 0, 1, 0], [], []>} : vector<8x8xbf16>, vector<8x8xbf16>, vector<8x8xf32> -> vector<8x8xf32>
    %cst_4 = arith.constant 0.353553385 : f32
    %7 = vector.broadcast %cst_4 : f32 to vector<8x8xf32>
    %8 = arith.mulf %6, %7 : vector<8x8xf32>
    %9 = vector.broadcast %2 : vector<1x8xf32> to vector<8x8xf32>
    %10 = arith.addf %8, %9 : vector<8x8xf32>
    %cst_5 = arith.constant dense<0xFF800000> : vector<8xf32>
    %11 = vector.multi_reduction <maximumf>, %10, %cst_5 [1] : vector<8x8xf32> to vector<8xf32>
    %12 = vector.shape_cast %11 : vector<8xf32> to vector<8x1xf32>
    %13 = vector.broadcast %12 : vector<8x1xf32> to vector<8x8xf32>
    %14 = arith.subf %10, %13 : vector<8x8xf32>
    %15 = math.exp %14 : vector<8x8xf32>
    %cst_6 = arith.constant dense<0.000000e+00> : vector<8xf32>
    %16 = vector.multi_reduction <add>, %15, %cst_6 [1] : vector<8x8xf32> to vector<8xf32>
    %17 = vector.shape_cast %16 : vector<8xf32> to vector<8x1xf32>
    %18 = tpu.reciprocal %17 {approx = true} : vector<8x1xf32> -> vector<8x1xf32>
    %19 = vector.broadcast %18 : vector<8x1xf32> to vector<8x8xf32>
    %20 = arith.mulf %15, %19 : vector<8x8xf32>
    %21 = arith.truncf %20 : vector<8x8xf32> to vector<8x8xbf16>
    %cst_7 = arith.constant dense<0.000000e+00> : vector<8x8xf32>
    %22 = tpu.matmul %21, %5, %cst_7 {dimension_numbers = #tpu.dot_dimension_numbers<[1], [0], [0], [1], [0, 0, 1, 1], [], []>} : vector<8x8xbf16>, vector<8x8xbf16>, vector<8x8xf32> -> vector<8x8xf32>
    %23 = vector.extract_strided_slice %0 {offsets = [0, 8], sizes = [8, 8], strides = [1, 1]} : vector<8x96xbf16> to vector<8x8xbf16>
    %24 = vector.extract_strided_slice %0 {offsets = [0, 40], sizes = [8, 8], strides = [1, 1]} : vector<8x96xbf16> to vector<8x8xbf16>
    %25 = vector.extract_strided_slice %0 {offsets = [0, 72], sizes = [8, 8], strides = [1, 1]} : vector<8x96xbf16> to vector<8x8xbf16>
    %cst_8 = arith.constant dense<0.000000e+00> : vector<8x8xf32>
    %26 = tpu.matmul %23, %24, %cst_8 {dimension_numbers = #tpu.dot_dimension_numbers<[1], [1], [0], [0], [0, 0, 1, 0], [], []>} : vector<8x8xbf16>, vector<8x8xbf16>, vector<8x8xf32> -> vector<8x8xf32>
    %cst_9 = arith.constant 0.353553385 : f32
    %27 = vector.broadcast %cst_9 : f32 to vector<8x8xf32>
    %28 = arith.mulf %26, %27 : vector<8x8xf32>
    %29 = vector.broadcast %2 : vector<1x8xf32> to vector<8x8xf32>
    %30 = arith.addf %28, %29 : vector<8x8xf32>
    %cst_10 = arith.constant dense<0xFF800000> : vector<8xf32>
    %31 = vector.multi_reduction <maximumf>, %30, %cst_10 [1] : vector<8x8xf32> to vector<8xf32>
    %32 = vector.shape_cast %31 : vector<8xf32> to vector<8x1xf32>
    %33 = vector.broadcast %32 : vector<8x1xf32> to vector<8x8xf32>
    %34 = arith.subf %30, %33 : vector<8x8xf32>
    %35 = math.exp %34 : vector<8x8xf32>
    %cst_11 = arith.constant dense<0.000000e+00> : vector<8xf32>
    %36 = vector.multi_reduction <add>, %35, %cst_11 [1] : vector<8x8xf32> to vector<8xf32>
    %37 = vector.shape_cast %36 : vector<8xf32> to vector<8x1xf32>
    %38 = tpu.reciprocal %37 {approx = true} : vector<8x1xf32> -> vector<8x1xf32>
    %39 = vector.broadcast %38 : vector<8x1xf32> to vector<8x8xf32>
    %40 = arith.mulf %35, %39 : vector<8x8xf32>
    %41 = arith.truncf %40 : vector<8x8xf32> to vector<8x8xbf16>
    %cst_12 = arith.constant dense<0.000000e+00> : vector<8x8xf32>
    %42 = tpu.matmul %41, %25, %cst_12 {dimension_numbers = #tpu.dot_dimension_numbers<[1], [0], [0], [1], [0, 0, 1, 1], [], []>} : vector<8x8xbf16>, vector<8x8xbf16>, vector<8x8xf32> -> vector<8x8xf32>
    %43 = vector.extract_strided_slice %0 {offsets = [0, 16], sizes = [8, 8], strides = [1, 1]} : vector<8x96xbf16> to vector<8x8xbf16>
    %44 = vector.extract_strided_slice %0 {offsets = [0, 48], sizes = [8, 8], strides = [1, 1]} : vector<8x96xbf16> to vector<8x8xbf16>
    %45 = vector.extract_strided_slice %0 {offsets = [0, 80], sizes = [8, 8], strides = [1, 1]} : vector<8x96xbf16> to vector<8x8xbf16>
    %cst_13 = arith.constant dense<0.000000e+00> : vector<8x8xf32>
    %46 = tpu.matmul %43, %44, %cst_13 {dimension_numbers = #tpu.dot_dimension_numbers<[1], [1], [0], [0], [0, 0, 1, 0], [], []>} : vector<8x8xbf16>, vector<8x8xbf16>, vector<8x8xf32> -> vector<8x8xf32>
    %cst_14 = arith.constant 0.353553385 : f32
    %47 = vector.broadcast %cst_14 : f32 to vector<8x8xf32>
    %48 = arith.mulf %46, %47 : vector<8x8xf32>
    %49 = vector.broadcast %2 : vector<1x8xf32> to vector<8x8xf32>
    %50 = arith.addf %48, %49 : vector<8x8xf32>
    %cst_15 = arith.constant dense<0xFF800000> : vector<8xf32>
    %51 = vector.multi_reduction <maximumf>, %50, %cst_15 [1] : vector<8x8xf32> to vector<8xf32>
    %52 = vector.shape_cast %51 : vector<8xf32> to vector<8x1xf32>
    %53 = vector.broadcast %52 : vector<8x1xf32> to vector<8x8xf32>
    %54 = arith.subf %50, %53 : vector<8x8xf32>
    %55 = math.exp %54 : vector<8x8xf32>
    %cst_16 = arith.constant dense<0.000000e+00> : vector<8xf32>
    %56 = vector.multi_reduction <add>, %55, %cst_16 [1] : vector<8x8xf32> to vector<8xf32>
    %57 = vector.shape_cast %56 : vector<8xf32> to vector<8x1xf32>
    %58 = tpu.reciprocal %57 {approx = true} : vector<8x1xf32> -> vector<8x1xf32>
    %59 = vector.broadcast %58 : vector<8x1xf32> to vector<8x8xf32>
    %60 = arith.mulf %55, %59 : vector<8x8xf32>
    %61 = arith.truncf %60 : vector<8x8xf32> to vector<8x8xbf16>
    %cst_17 = arith.constant dense<0.000000e+00> : vector<8x8xf32>
    %62 = tpu.matmul %61, %45, %cst_17 {dimension_numbers = #tpu.dot_dimension_numbers<[1], [0], [0], [1], [0, 0, 1, 1], [], []>} : vector<8x8xbf16>, vector<8x8xbf16>, vector<8x8xf32> -> vector<8x8xf32>
    %63 = vector.extract_strided_slice %0 {offsets = [0, 24], sizes = [8, 8], strides = [1, 1]} : vector<8x96xbf16> to vector<8x8xbf16>
    %64 = vector.extract_strided_slice %0 {offsets = [0, 56], sizes = [8, 8], strides = [1, 1]} : vector<8x96xbf16> to vector<8x8xbf16>
    %65 = vector.extract_strided_slice %0 {offsets = [0, 88], sizes = [8, 8], strides = [1, 1]} : vector<8x96xbf16> to vector<8x8xbf16>
    %cst_18 = arith.constant dense<0.000000e+00> : vector<8x8xf32>
    %66 = tpu.matmul %63, %64, %cst_18 {dimension_numbers = #tpu.dot_dimension_numbers<[1], [1], [0], [0], [0, 0, 1, 0], [], []>} : vector<8x8xbf16>, vector<8x8xbf16>, vector<8x8xf32> -> vector<8x8xf32>
    %cst_19 = arith.constant 0.353553385 : f32
    %67 = vector.broadcast %cst_19 : f32 to vector<8x8xf32>
    %68 = arith.mulf %66, %67 : vector<8x8xf32>
    %69 = vector.broadcast %2 : vector<1x8xf32> to vector<8x8xf32>
    %70 = arith.addf %68, %69 : vector<8x8xf32>
    %cst_20 = arith.constant dense<0xFF800000> : vector<8xf32>
    %71 = vector.multi_reduction <maximumf>, %70, %cst_20 [1] : vector<8x8xf32> to vector<8xf32>
    %72 = vector.shape_cast %71 : vector<8xf32> to vector<8x1xf32>
    %73 = vector.broadcast %72 : vector<8x1xf32> to vector<8x8xf32>
    %74 = arith.subf %70, %73 : vector<8x8xf32>
    %75 = math.exp %74 : vector<8x8xf32>
    %cst_21 = arith.constant dense<0.000000e+00> : vector<8xf32>
    %76 = vector.multi_reduction <add>, %75, %cst_21 [1] : vector<8x8xf32> to vector<8xf32>
    %77 = vector.shape_cast %76 : vector<8xf32> to vector<8x1xf32>
    %78 = tpu.reciprocal %77 {approx = true} : vector<8x1xf32> -> vector<8x1xf32>
    %79 = vector.broadcast %78 : vector<8x1xf32> to vector<8x8xf32>
    %80 = arith.mulf %75, %79 : vector<8x8xf32>
    %81 = arith.truncf %80 : vector<8x8xf32> to vector<8x8xbf16>
    %cst_22 = arith.constant dense<0.000000e+00> : vector<8x8xf32>
    %82 = tpu.matmul %81, %65, %cst_22 {dimension_numbers = #tpu.dot_dimension_numbers<[1], [0], [0], [1], [0, 0, 1, 1], [], []>} : vector<8x8xbf16>, vector<8x8xbf16>, vector<8x8xf32> -> vector<8x8xf32>
    %83 = tpu.concatenate %22, %42, %62, %82 in 1 : vector<8x8xf32>, vector<8x8xf32>, vector<8x8xf32>, vector<8x8xf32> -> vector<8x32xf32>
    %84 = arith.truncf %83 : vector<8x32xf32> to vector<8x32xbf16>
    %c0_23 = arith.constant 0 : index
    %c0_24 = arith.constant 0 : index
    %85 = vector.load %arg3[%c0_23, %c0_24] : memref<8x32xbf16, #tpu.memory_space<vmem>>, vector<8x32xbf16>
    tpu.vector_store %arg3[%c0_23, %c0_24], %84 {strides = array<i32>} : memref<8x32xbf16, #tpu.memory_space<vmem>>, vector<8x32xbf16>,
    return
  }
  func.func @transform_0(%arg0: i32) -> (i32, i32) {
    %c0_i32 = arith.constant 0 : i32
    %c0_i32_0 = arith.constant 0 : i32
    return %arg0, %c0_i32 : i32, i32
  }
  func.func @transform_1(%arg0: i32) -> (i32, i32, i32) {
    %c0_i32 = arith.constant 0 : i32
    %c0_i32_0 = arith.constant 0 : i32
    %c0_i32_1 = arith.constant 0 : i32
    return %arg0, %c0_i32, %c0_i32_0 : i32, i32, i32
  }
  func.func @transform_2(%arg0: i32) -> (i32, i32) {
    %c0_i32 = arith.constant 0 : i32
    %c0_i32_0 = arith.constant 0 : i32
    return %arg0, %c0_i32 : i32, i32
  }
}

module attributes {stable_mosaic.version = 11 : i64} {
  func.func @_emb_ln_kernel(%arg0: i32, %arg1: memref<16x32xbf16, #tpu.memory_space<vmem>>, %arg2: memref<16x32xbf16, #tpu.memory_space<vmem>>, %arg3: memref<1x32xf32, #tpu.memory_space<vmem>>, %arg4: memref<1x32xf32, #tpu.memory_space<vmem>>, %arg5: memref<16x32xbf16, #tpu.memory_space<vmem>>) attributes {dimension_semantics = [#tpu.dimension_semantics<parallel>], iteration_bounds = array<i64: 1>, scalar_prefetch = 0 : i64, scratch_operands = 0 : i64, tpu.core_type = #tpu.core_type<tc>, window_params = [{transform_indices = @transform_0, window_bounds = array<i64: 16, 32>}, {transform_indices = @transform_1, window_bounds = array<i64: 16, 32>}, {pipeline_mode = #tpu.pipeline_mode<synchronous>, transform_indices = @transform_2, window_bounds = array<i64: 1, 32>}, {pipeline_mode = #tpu.pipeline_mode<synchronous>, transform_indices = @transform_3, window_bounds = array<i64: 1, 32>}, {transform_indices = @transform_4, window_bounds = array<i64: 16, 32>}]} {
    %c0 = arith.constant 0 : index
    %c0_0 = arith.constant 0 : index
    %0 = vector.load %arg1[%c0, %c0_0] : memref<16x32xbf16, #tpu.memory_space<vmem>>, vector<16x32xbf16>
    %1 = arith.extf %0 : vector<16x32xbf16> to vector<16x32xf32>
    %c0_1 = arith.constant 0 : index
    %c0_2 = arith.constant 0 : index
    %2 = vector.load %arg2[%c0_1, %c0_2] : memref<16x32xbf16, #tpu.memory_space<vmem>>, vector<16x32xbf16>
    %3 = arith.extf %2 : vector<16x32xbf16> to vector<16x32xf32>
    %4 = arith.addf %1, %3 : vector<16x32xf32>
    %cst = arith.constant dense<0.000000e+00> : vector<16xf32>
    %5 = vector.multi_reduction <add>, %4, %cst [1] : vector<16x32xf32> to vector<16xf32>
    %6 = vector.shape_cast %5 : vector<16xf32> to vector<16x1xf32>
    %cst_3 = arith.constant 3.200000e+01 : f32
    %7 = vector.broadcast %cst_3 : f32 to vector<16x1xf32>
    %8 = arith.divf %6, %7 : vector<16x1xf32>
    %9 = vector.broadcast %8 : vector<16x1xf32> to vector<16x32xf32>
    %10 = arith.subf %4, %9 : vector<16x32xf32>
    %11 = arith.mulf %10, %10 : vector<16x32xf32>
    %cst_4 = arith.constant dense<0.000000e+00> : vector<16xf32>
    %12 = vector.multi_reduction <add>, %11, %cst_4 [1] : vector<16x32xf32> to vector<16xf32>
    %13 = vector.shape_cast %12 : vector<16xf32> to vector<16x1xf32>
    %cst_5 = arith.constant 3.200000e+01 : f32
    %14 = vector.broadcast %cst_5 : f32 to vector<16x1xf32>
    %15 = arith.divf %13, %14 : vector<16x1xf32>
    %16 = vector.broadcast %8 : vector<16x1xf32> to vector<16x32xf32>
    %17 = arith.subf %4, %16 : vector<16x32xf32>
    %cst_6 = arith.constant 9.99999996E-13 : f32
    %18 = vector.broadcast %cst_6 : f32 to vector<16x1xf32>
    %19 = arith.addf %15, %18 : vector<16x1xf32>
    %20 = math.rsqrt %19 : vector<16x1xf32>
    %21 = vector.broadcast %20 : vector<16x1xf32> to vector<16x32xf32>
    %22 = arith.mulf %17, %21 : vector<16x32xf32>
    %c0_7 = arith.constant 0 : index
    %c0_8 = arith.constant 0 : index
    %23 = vector.load %arg3[%c0_7, %c0_8] : memref<1x32xf32, #tpu.memory_space<vmem>>, vector<1x32xf32>
    %24 = vector.broadcast %23 : vector<1x32xf32> to vector<16x32xf32>
    %25 = arith.mulf %22, %24 : vector<16x32xf32>
    %c0_9 = arith.constant 0 : index
    %c0_10 = arith.constant 0 : index
    %26 = vector.load %arg4[%c0_9, %c0_10] : memref<1x32xf32, #tpu.memory_space<vmem>>, vector<1x32xf32>
    %27 = vector.broadcast %26 : vector<1x32xf32> to vector<16x32xf32>
    %28 = arith.addf %25, %27 : vector<16x32xf32>
    %29 = arith.truncf %28 : vector<16x32xf32> to vector<16x32xbf16>
    %c0_11 = arith.constant 0 : index
    %c0_12 = arith.constant 0 : index
    %30 = vector.load %arg5[%c0_11, %c0_12] : memref<16x32xbf16, #tpu.memory_space<vmem>>, vector<16x32xbf16>
    tpu.vector_store %arg5[%c0_11, %c0_12], %29 {strides = array<i32>} : memref<16x32xbf16, #tpu.memory_space<vmem>>, vector<16x32xbf16>,
    return
  }
  func.func @transform_0(%arg0: i32) -> (i32, i32) {
    %c0_i32 = arith.constant 0 : i32
    %c0_i32_0 = arith.constant 0 : i32
    return %arg0, %c0_i32 : i32, i32
  }
  func.func @transform_1(%arg0: i32) -> (i32, i32) {
    %c0_i32 = arith.constant 0 : i32
    %c0_i32_0 = arith.constant 0 : i32
    return %arg0, %c0_i32 : i32, i32
  }
  func.func @transform_2(%arg0: i32) -> (i32, i32) {
    %c0_i32 = arith.constant 0 : i32
    %c0_i32_0 = arith.constant 0 : i32
    %c0_i32_1 = arith.constant 0 : i32
    return %c0_i32, %c0_i32_0 : i32, i32
  }
  func.func @transform_3(%arg0: i32) -> (i32, i32) {
    %c0_i32 = arith.constant 0 : i32
    %c0_i32_0 = arith.constant 0 : i32
    %c0_i32_1 = arith.constant 0 : i32
    return %c0_i32, %c0_i32_0 : i32, i32
  }
  func.func @transform_4(%arg0: i32) -> (i32, i32) {
    %c0_i32 = arith.constant 0 : i32
    %c0_i32_0 = arith.constant 0 : i32
    return %arg0, %c0_i32 : i32, i32
  }
}

module attributes {stable_mosaic.version = 11 : i64} {
  func.func @_matmul_bias_kernel(%arg0: i32, %arg1: i32, %arg2: i32, %arg3: memref<16x32xbf16, #tpu.memory_space<vmem>>, %arg4: memref<32x96xbf16, #tpu.memory_space<vmem>>, %arg5: memref<1x96xf32, #tpu.memory_space<vmem>>, %arg6: memref<16x96xbf16, #tpu.memory_space<vmem>>, %arg7: memref<16x96xf32, #tpu.memory_space<vmem>>) attributes {dimension_semantics = [#tpu.dimension_semantics<parallel>, #tpu.dimension_semantics<parallel>, #tpu.dimension_semantics<arbitrary>], iteration_bounds = array<i64: 1, 1, 1>, scalar_prefetch = 0 : i64, scratch_operands = 1 : i64, tpu.core_type = #tpu.core_type<tc>, window_params = [{transform_indices = @transform_0, window_bounds = array<i64: 16, 32>}, {transform_indices = @transform_1, window_bounds = array<i64: 32, 96>}, {transform_indices = @transform_2, window_bounds = array<i64: 1, 96>}, {transform_indices = @transform_3, window_bounds = array<i64: 16, 96>}]} {
    %c0_i32 = arith.constant 0 : i32
    %0 = arith.cmpi eq, %arg2, %c0_i32 : i32
    %1 = arith.extui %0 : i1 to i32
    %c0_i32_0 = arith.constant 0 : i32
    %2 = arith.cmpi ne, %1, %c0_i32_0 : i32
    scf.if %2 {
      %cst_10 = arith.constant 0.000000e+00 : f32
      %12 = vector.broadcast %cst_10 : f32 to vector<16x96xf32>
      %c0_11 = arith.constant 0 : index
      %c0_12 = arith.constant 0 : index
      %13 = vector.load %arg7[%c0_11, %c0_12] : memref<16x96xf32, #tpu.memory_space<vmem>>, vector<16x96xf32>
      tpu.vector_store %arg7[%c0_11, %c0_12], %12 {strides = array<i32>} : memref<16x96xf32, #tpu.memory_space<vmem>>, vector<16x96xf32>,
    } else {
    }
    %c0 = arith.constant 0 : index
    %c0_1 = arith.constant 0 : index
    %3 = vector.load %arg7[%c0, %c0_1] : memref<16x96xf32, #tpu.memory_space<vmem>>, vector<16x96xf32>
    %c0_2 = arith.constant 0 : index
    %c0_3 = arith.constant 0 : index
    %4 = vector.load %arg3[%c0_2, %c0_3] : memref<16x32xbf16, #tpu.memory_space<vmem>>, vector<16x32xbf16>
    %c0_4 = arith.constant 0 : index
    %c0_5 = arith.constant 0 : index
    %5 = vector.load %arg4[%c0_4, %c0_5] : memref<32x96xbf16, #tpu.memory_space<vmem>>, vector<32x96xbf16>
    %cst = arith.constant dense<0.000000e+00> : vector<16x96xf32>
    %6 = tpu.matmul %4, %5, %cst {dimension_numbers = #tpu.dot_dimension_numbers<[1], [0], [0], [1], [0, 0, 1, 1], [], []>} : vector<16x32xbf16>, vector<32x96xbf16>, vector<16x96xf32> -> vector<16x96xf32>
    %7 = arith.addf %3, %6 : vector<16x96xf32>
    %c0_6 = arith.constant 0 : index
    %c0_7 = arith.constant 0 : index
    %8 = vector.load %arg7[%c0_6, %c0_7] : memref<16x96xf32, #tpu.memory_space<vmem>>, vector<16x96xf32>
    tpu.vector_store %arg7[%c0_6, %c0_7], %7 {strides = array<i32>} : memref<16x96xf32, #tpu.memory_space<vmem>>, vector<16x96xf32>,
    %c0_i32_8 = arith.constant 0 : i32
    %9 = arith.cmpi eq, %arg2, %c0_i32_8 : i32
    %10 = arith.extui %9 : i1 to i32
    %c0_i32_9 = arith.constant 0 : i32
    %11 = arith.cmpi ne, %10, %c0_i32_9 : i32
    scf.if %11 {
      %c0_10 = arith.constant 0 : index
      %c0_11 = arith.constant 0 : index
      %12 = vector.load %arg7[%c0_10, %c0_11] : memref<16x96xf32, #tpu.memory_space<vmem>>, vector<16x96xf32>
      %c0_12 = arith.constant 0 : index
      %c0_13 = arith.constant 0 : index
      %13 = vector.load %arg5[%c0_12, %c0_13] : memref<1x96xf32, #tpu.memory_space<vmem>>, vector<1x96xf32>
      %14 = vector.broadcast %13 : vector<1x96xf32> to vector<16x96xf32>
      %15 = arith.addf %12, %14 : vector<16x96xf32>
      %16 = arith.truncf %15 : vector<16x96xf32> to vector<16x96xbf16>
      %c0_14 = arith.constant 0 : index
      %c0_15 = arith.constant 0 : index
      %17 = vector.load %arg6[%c0_14, %c0_15] : memref<16x96xbf16, #tpu.memory_space<vmem>>, vector<16x96xbf16>
      tpu.vector_store %arg6[%c0_14, %c0_15], %16 {strides = array<i32>} : memref<16x96xbf16, #tpu.memory_space<vmem>>, vector<16x96xbf16>,
    } else {
    }
    return
  }
  func.func @transform_0(%arg0: i32, %arg1: i32, %arg2: i32) -> (i32, i32) {
    %c0_i32 = arith.constant 0 : i32
    return %arg0, %arg2 : i32, i32
  }
  func.func @transform_1(%arg0: i32, %arg1: i32, %arg2: i32) -> (i32, i32) {
    %c0_i32 = arith.constant 0 : i32
    return %arg2, %arg1 : i32, i32
  }
  func.func @transform_2(%arg0: i32, %arg1: i32, %arg2: i32) -> (i32, i32) {
    %c0_i32 = arith.constant 0 : i32
    %c0_i32_0 = arith.constant 0 : i32
    return %c0_i32, %arg1 : i32, i32
  }
  func.func @transform_3(%arg0: i32, %arg1: i32, %arg2: i32) -> (i32, i32) {
    %c0_i32 = arith.constant 0 : i32
    return %arg0, %arg1 : i32, i32
  }
}

module attributes {stable_mosaic.version = 11 : i64} {
  func.func @_matmul_res_ln_kernel(%arg0: i32, %arg1: i32, %arg2: memref<8x32xbf16, #tpu.memory_space<vmem>>, %arg3: memref<32x32xbf16, #tpu.memory_space<vmem>>, %arg4: memref<1x32xf32, #tpu.memory_space<vmem>>, %arg5: memref<8x32xbf16, #tpu.memory_space<vmem>>, %arg6: memref<1x32xf32, #tpu.memory_space<vmem>>, %arg7: memref<1x32xf32, #tpu.memory_space<vmem>>, %arg8: memref<8x32xbf16, #tpu.memory_space<vmem>>, %arg9: memref<8x32xf32, #tpu.memory_space<vmem>>) attributes {dimension_semantics = [#tpu.dimension_semantics<parallel>, #tpu.dimension_semantics<arbitrary>], iteration_bounds = array<i64: 2, 1>, scalar_prefetch = 0 : i64, scratch_operands = 1 : i64, tpu.core_type = #tpu.core_type<tc>, window_params = [{transform_indices = @transform_0, window_bounds = array<i64: 8, 32>}, {transform_indices = @transform_1, window_bounds = array<i64: 32, 32>}, {pipeline_mode = #tpu.pipeline_mode<synchronous>, transform_indices = @transform_2, window_bounds = array<i64: 1, 32>}, {transform_indices = @transform_3, window_bounds = array<i64: 8, 32>}, {pipeline_mode = #tpu.pipeline_mode<synchronous>, transform_indices = @transform_4, window_bounds = array<i64: 1, 32>}, {pipeline_mode = #tpu.pipeline_mode<synchronous>, transform_indices = @transform_5, window_bounds = array<i64: 1, 32>}, {transform_indices = @transform_6, window_bounds = array<i64: 8, 32>}]} {
    %c0_i32 = arith.constant 0 : i32
    %0 = arith.cmpi eq, %arg1, %c0_i32 : i32
    %1 = arith.extui %0 : i1 to i32
    %c0_i32_0 = arith.constant 0 : i32
    %2 = arith.cmpi ne, %1, %c0_i32_0 : i32
    scf.if %2 {
      %cst_10 = arith.constant 0.000000e+00 : f32
      %12 = vector.broadcast %cst_10 : f32 to vector<8x32xf32>
      %c0_11 = arith.constant 0 : index
      %c0_12 = arith.constant 0 : index
      %13 = vector.load %arg9[%c0_11, %c0_12] : memref<8x32xf32, #tpu.memory_space<vmem>>, vector<8x32xf32>
      tpu.vector_store %arg9[%c0_11, %c0_12], %12 {strides = array<i32>} : memref<8x32xf32, #tpu.memory_space<vmem>>, vector<8x32xf32>,
    } else {
    }
    %c0 = arith.constant 0 : index
    %c0_1 = arith.constant 0 : index
    %3 = vector.load %arg9[%c0, %c0_1] : memref<8x32xf32, #tpu.memory_space<vmem>>, vector<8x32xf32>
    %c0_2 = arith.constant 0 : index
    %c0_3 = arith.constant 0 : index
    %4 = vector.load %arg2[%c0_2, %c0_3] : memref<8x32xbf16, #tpu.memory_space<vmem>>, vector<8x32xbf16>
    %c0_4 = arith.constant 0 : index
    %c0_5 = arith.constant 0 : index
    %5 = vector.load %arg3[%c0_4, %c0_5] : memref<32x32xbf16, #tpu.memory_space<vmem>>, vector<32x32xbf16>
    %cst = arith.constant dense<0.000000e+00> : vector<8x32xf32>
    %6 = tpu.matmul %4, %5, %cst {dimension_numbers = #tpu.dot_dimension_numbers<[1], [0], [0], [1], [0, 0, 1, 1], [], []>} : vector<8x32xbf16>, vector<32x32xbf16>, vector<8x32xf32> -> vector<8x32xf32>
    %7 = arith.addf %3, %6 : vector<8x32xf32>
    %c0_6 = arith.constant 0 : index
    %c0_7 = arith.constant 0 : index
    %8 = vector.load %arg9[%c0_6, %c0_7] : memref<8x32xf32, #tpu.memory_space<vmem>>, vector<8x32xf32>
    tpu.vector_store %arg9[%c0_6, %c0_7], %7 {strides = array<i32>} : memref<8x32xf32, #tpu.memory_space<vmem>>, vector<8x32xf32>,
    %c0_i32_8 = arith.constant 0 : i32
    %9 = arith.cmpi eq, %arg1, %c0_i32_8 : i32
    %10 = arith.extui %9 : i1 to i32
    %c0_i32_9 = arith.constant 0 : i32
    %11 = arith.cmpi ne, %10, %c0_i32_9 : i32
    scf.if %11 {
      %c0_10 = arith.constant 0 : index
      %c0_11 = arith.constant 0 : index
      %12 = vector.load %arg9[%c0_10, %c0_11] : memref<8x32xf32, #tpu.memory_space<vmem>>, vector<8x32xf32>
      %c0_12 = arith.constant 0 : index
      %c0_13 = arith.constant 0 : index
      %13 = vector.load %arg4[%c0_12, %c0_13] : memref<1x32xf32, #tpu.memory_space<vmem>>, vector<1x32xf32>
      %14 = vector.broadcast %13 : vector<1x32xf32> to vector<8x32xf32>
      %15 = arith.addf %12, %14 : vector<8x32xf32>
      %c0_14 = arith.constant 0 : index
      %c0_15 = arith.constant 0 : index
      %16 = vector.load %arg5[%c0_14, %c0_15] : memref<8x32xbf16, #tpu.memory_space<vmem>>, vector<8x32xbf16>
      %17 = arith.extf %16 : vector<8x32xbf16> to vector<8x32xf32>
      %18 = arith.addf %15, %17 : vector<8x32xf32>
      %cst_16 = arith.constant dense<0.000000e+00> : vector<8xf32>
      %19 = vector.multi_reduction <add>, %18, %cst_16 [1] : vector<8x32xf32> to vector<8xf32>
      %20 = vector.shape_cast %19 : vector<8xf32> to vector<8x1xf32>
      %cst_17 = arith.constant 3.200000e+01 : f32
      %21 = vector.broadcast %cst_17 : f32 to vector<8x1xf32>
      %22 = arith.divf %20, %21 : vector<8x1xf32>
      %23 = vector.broadcast %22 : vector<8x1xf32> to vector<8x32xf32>
      %24 = arith.subf %18, %23 : vector<8x32xf32>
      %25 = arith.mulf %24, %24 : vector<8x32xf32>
      %cst_18 = arith.constant dense<0.000000e+00> : vector<8xf32>
      %26 = vector.multi_reduction <add>, %25, %cst_18 [1] : vector<8x32xf32> to vector<8xf32>
      %27 = vector.shape_cast %26 : vector<8xf32> to vector<8x1xf32>
      %cst_19 = arith.constant 3.200000e+01 : f32
      %28 = vector.broadcast %cst_19 : f32 to vector<8x1xf32>
      %29 = arith.divf %27, %28 : vector<8x1xf32>
      %30 = vector.broadcast %22 : vector<8x1xf32> to vector<8x32xf32>
      %31 = arith.subf %18, %30 : vector<8x32xf32>
      %cst_20 = arith.constant 9.99999996E-13 : f32
      %32 = vector.broadcast %cst_20 : f32 to vector<8x1xf32>
      %33 = arith.addf %29, %32 : vector<8x1xf32>
      %34 = math.rsqrt %33 : vector<8x1xf32>
      %35 = vector.broadcast %34 : vector<8x1xf32> to vector<8x32xf32>
      %36 = arith.mulf %31, %35 : vector<8x32xf32>
      %c0_21 = arith.constant 0 : index
      %c0_22 = arith.constant 0 : index
      %37 = vector.load %arg6[%c0_21, %c0_22] : memref<1x32xf32, #tpu.memory_space<vmem>>, vector<1x32xf32>
      %38 = vector.broadcast %37 : vector<1x32xf32> to vector<8x32xf32>
      %39 = arith.mulf %36, %38 : vector<8x32xf32>
      %c0_23 = arith.constant 0 : index
      %c0_24 = arith.constant 0 : index
      %40 = vector.load %arg7[%c0_23, %c0_24] : memref<1x32xf32, #tpu.memory_space<vmem>>, vector<1x32xf32>
      %41 = vector.broadcast %40 : vector<1x32xf32> to vector<8x32xf32>
      %42 = arith.addf %39, %41 : vector<8x32xf32>
      %43 = arith.truncf %42 : vector<8x32xf32> to vector<8x32xbf16>
      %c0_25 = arith.constant 0 : index
      %c0_26 = arith.constant 0 : index
      %44 = vector.load %arg8[%c0_25, %c0_26] : memref<8x32xbf16, #tpu.memory_space<vmem>>, vector<8x32xbf16>
      tpu.vector_store %arg8[%c0_25, %c0_26], %43 {strides = array<i32>} : memref<8x32xbf16, #tpu.memory_space<vmem>>, vector<8x32xbf16>,
    } else {
    }
    return
  }
  func.func @transform_0(%arg0: i32, %arg1: i32) -> (i32, i32) {
    %c0_i32 = arith.constant 0 : i32
    return %arg0, %arg1 : i32, i32
  }
  func.func @transform_1(%arg0: i32, %arg1: i32) -> (i32, i32) {
    %c0_i32 = arith.constant 0 : i32
    %c0_i32_0 = arith.constant 0 : i32
    return %arg1, %c0_i32 : i32, i32
  }
  func.func @transform_2(%arg0: i32, %arg1: i32) -> (i32, i32) {
    %c0_i32 = arith.constant 0 : i32
    %c0_i32_0 = arith.constant 0 : i32
    %c0_i32_1 = arith.constant 0 : i32
    return %c0_i32, %c0_i32_0 : i32, i32
  }
  func.func @transform_3(%arg0: i32, %arg1: i32) -> (i32, i32) {
    %c0_i32 = arith.constant 0 : i32
    %c0_i32_0 = arith.constant 0 : i32
    return %arg0, %c0_i32 : i32, i32
  }
  func.func @transform_4(%arg0: i32, %arg1: i32) -> (i32, i32) {
    %c0_i32 = arith.constant 0 : i32
    %c0_i32_0 = arith.constant 0 : i32
    %c0_i32_1 = arith.constant 0 : i32
    return %c0_i32, %c0_i32_0 : i32, i32
  }
  func.func @transform_5(%arg0: i32, %arg1: i32) -> (i32, i32) {
    %c0_i32 = arith.constant 0 : i32
    %c0_i32_0 = arith.constant 0 : i32
    %c0_i32_1 = arith.constant 0 : i32
    return %c0_i32, %c0_i32_0 : i32, i32
  }
  func.func @transform_6(%arg0: i32, %arg1: i32) -> (i32, i32) {
    %c0_i32 = arith.constant 0 : i32
    %c0_i32_0 = arith.constant 0 : i32
    return %arg0, %c0_i32 : i32, i32
  }
}

module attributes {stable_mosaic.version = 11 : i64} {
  func.func @_matmul_bias_kernel(%arg0: i32, %arg1: i32, %arg2: i32, %arg3: memref<16x32xbf16, #tpu.memory_space<vmem>>, %arg4: memref<32x64xbf16, #tpu.memory_space<vmem>>, %arg5: memref<1x64xf32, #tpu.memory_space<vmem>>, %arg6: memref<16x64xbf16, #tpu.memory_space<vmem>>, %arg7: memref<16x64xf32, #tpu.memory_space<vmem>>) attributes {dimension_semantics = [#tpu.dimension_semantics<parallel>, #tpu.dimension_semantics<parallel>, #tpu.dimension_semantics<arbitrary>], iteration_bounds = array<i64: 1, 1, 1>, scalar_prefetch = 0 : i64, scratch_operands = 1 : i64, tpu.core_type = #tpu.core_type<tc>, window_params = [{transform_indices = @transform_0, window_bounds = array<i64: 16, 32>}, {transform_indices = @transform_1, window_bounds = array<i64: 32, 64>}, {transform_indices = @transform_2, window_bounds = array<i64: 1, 64>}, {transform_indices = @transform_3, window_bounds = array<i64: 16, 64>}]} {
    %c0_i32 = arith.constant 0 : i32
    %0 = arith.cmpi eq, %arg2, %c0_i32 : i32
    %1 = arith.extui %0 : i1 to i32
    %c0_i32_0 = arith.constant 0 : i32
    %2 = arith.cmpi ne, %1, %c0_i32_0 : i32
    scf.if %2 {
      %cst_10 = arith.constant 0.000000e+00 : f32
      %12 = vector.broadcast %cst_10 : f32 to vector<16x64xf32>
      %c0_11 = arith.constant 0 : index
      %c0_12 = arith.constant 0 : index
      %13 = vector.load %arg7[%c0_11, %c0_12] : memref<16x64xf32, #tpu.memory_space<vmem>>, vector<16x64xf32>
      tpu.vector_store %arg7[%c0_11, %c0_12], %12 {strides = array<i32>} : memref<16x64xf32, #tpu.memory_space<vmem>>, vector<16x64xf32>,
    } else {
    }
    %c0 = arith.constant 0 : index
    %c0_1 = arith.constant 0 : index
    %3 = vector.load %arg7[%c0, %c0_1] : memref<16x64xf32, #tpu.memory_space<vmem>>, vector<16x64xf32>
    %c0_2 = arith.constant 0 : index
    %c0_3 = arith.constant 0 : index
    %4 = vector.load %arg3[%c0_2, %c0_3] : memref<16x32xbf16, #tpu.memory_space<vmem>>, vector<16x32xbf16>
    %c0_4 = arith.constant 0 : index
    %c0_5 = arith.constant 0 : index
    %5 = vector.load %arg4[%c0_4, %c0_5] : memref<32x64xbf16, #tpu.memory_space<vmem>>, vector<32x64xbf16>
    %cst = arith.constant dense<0.000000e+00> : vector<16x64xf32>
    %6 = tpu.matmul %4, %5, %cst {dimension_numbers = #tpu.dot_dimension_numbers<[1], [0], [0], [1], [0, 0, 1, 1], [], []>} : vector<16x32xbf16>, vector<32x64xbf16>, vector<16x64xf32> -> vector<16x64xf32>
    %7 = arith.addf %3, %6 : vector<16x64xf32>
    %c0_6 = arith.constant 0 : index
    %c0_7 = arith.constant 0 : index
    %8 = vector.load %arg7[%c0_6, %c0_7] : memref<16x64xf32, #tpu.memory_space<vmem>>, vector<16x64xf32>
    tpu.vector_store %arg7[%c0_6, %c0_7], %7 {strides = array<i32>} : memref<16x64xf32, #tpu.memory_space<vmem>>, vector<16x64xf32>,
    %c0_i32_8 = arith.constant 0 : i32
    %9 = arith.cmpi eq, %arg2, %c0_i32_8 : i32
    %10 = arith.extui %9 : i1 to i32
    %c0_i32_9 = arith.constant 0 : i32
    %11 = arith.cmpi ne, %10, %c0_i32_9 : i32
    scf.if %11 {
      %c0_10 = arith.constant 0 : index
      %c0_11 = arith.constant 0 : index
      %12 = vector.load %arg7[%c0_10, %c0_11] : memref<16x64xf32, #tpu.memory_space<vmem>>, vector<16x64xf32>
      %c0_12 = arith.constant 0 : index
      %c0_13 = arith.constant 0 : index
      %13 = vector.load %arg5[%c0_12, %c0_13] : memref<1x64xf32, #tpu.memory_space<vmem>>, vector<1x64xf32>
      %14 = vector.broadcast %13 : vector<1x64xf32> to vector<16x64xf32>
      %15 = arith.addf %12, %14 : vector<16x64xf32>
      %cst_14 = arith.constant 5.000000e-01 : f32
      %16 = vector.broadcast %cst_14 : f32 to vector<16x64xf32>
      %17 = arith.mulf %16, %15 : vector<16x64xf32>
      %cst_15 = arith.constant 0.707106769 : f32
      %18 = vector.broadcast %cst_15 : f32 to vector<16x64xf32>
      %19 = arith.mulf %15, %18 : vector<16x64xf32>
      %20 = math.erf %19 : vector<16x64xf32>
      %cst_16 = arith.constant 1.000000e+00 : f32
      %21 = vector.broadcast %cst_16 : f32 to vector<16x64xf32>
      %22 = arith.addf %21, %20 : vector<16x64xf32>
      %23 = arith.mulf %17, %22 : vector<16x64xf32>
      %24 = arith.truncf %23 : vector<16x64xf32> to vector<16x64xbf16>
      %c0_17 = arith.constant 0 : index
      %c0_18 = arith.constant 0 : index
      %25 = vector.load %arg6[%c0_17, %c0_18] : memref<16x64xbf16, #tpu.memory_space<vmem>>, vector<16x64xbf16>
      tpu.vector_store %arg6[%c0_17, %c0_18], %24 {strides = array<i32>} : memref<16x64xbf16, #tpu.memory_space<vmem>>, vector<16x64xbf16>,
    } else {
    }
    return
  }
  func.func @transform_0(%arg0: i32, %arg1: i32, %arg2: i32) -> (i32, i32) {
    %c0_i32 = arith.constant 0 : i32
    return %arg0, %arg2 : i32, i32
  }
  func.func @transform_1(%arg0: i32, %arg1: i32, %arg2: i32) -> (i32, i32) {
    %c0_i32 = arith.constant 0 : i32
    return %arg2, %arg1 : i32, i32
  }
  func.func @transform_2(%arg0: i32, %arg1: i32, %arg2: i32) -> (i32, i32) {
    %c0_i32 = arith.constant 0 : i32
    %c0_i32_0 = arith.constant 0 : i32
    return %c0_i32, %arg1 : i32, i32
  }
  func.func @transform_3(%arg0: i32, %arg1: i32, %arg2: i32) -> (i32, i32) {
    %c0_i32 = arith.constant 0 : i32
    return %arg0, %arg1 : i32, i32
  }
}

module attributes {stable_mosaic.version = 11 : i64} {
  func.func @_matmul_res_ln_kernel(%arg0: i32, %arg1: i32, %arg2: memref<8x64xbf16, #tpu.memory_space<vmem>>, %arg3: memref<64x32xbf16, #tpu.memory_space<vmem>>, %arg4: memref<1x32xf32, #tpu.memory_space<vmem>>, %arg5: memref<8x32xbf16, #tpu.memory_space<vmem>>, %arg6: memref<1x32xf32, #tpu.memory_space<vmem>>, %arg7: memref<1x32xf32, #tpu.memory_space<vmem>>, %arg8: memref<8x32xbf16, #tpu.memory_space<vmem>>, %arg9: memref<8x32xf32, #tpu.memory_space<vmem>>) attributes {dimension_semantics = [#tpu.dimension_semantics<parallel>, #tpu.dimension_semantics<arbitrary>], iteration_bounds = array<i64: 2, 1>, scalar_prefetch = 0 : i64, scratch_operands = 1 : i64, tpu.core_type = #tpu.core_type<tc>, window_params = [{transform_indices = @transform_0, window_bounds = array<i64: 8, 64>}, {transform_indices = @transform_1, window_bounds = array<i64: 64, 32>}, {pipeline_mode = #tpu.pipeline_mode<synchronous>, transform_indices = @transform_2, window_bounds = array<i64: 1, 32>}, {transform_indices = @transform_3, window_bounds = array<i64: 8, 32>}, {pipeline_mode = #tpu.pipeline_mode<synchronous>, transform_indices = @transform_4, window_bounds = array<i64: 1, 32>}, {pipeline_mode = #tpu.pipeline_mode<synchronous>, transform_indices = @transform_5, window_bounds = array<i64: 1, 32>}, {transform_indices = @transform_6, window_bounds = array<i64: 8, 32>}]} {
    %c0_i32 = arith.constant 0 : i32
    %0 = arith.cmpi eq, %arg1, %c0_i32 : i32
    %1 = arith.extui %0 : i1 to i32
    %c0_i32_0 = arith.constant 0 : i32
    %2 = arith.cmpi ne, %1, %c0_i32_0 : i32
    scf.if %2 {
      %cst_10 = arith.constant 0.000000e+00 : f32
      %12 = vector.broadcast %cst_10 : f32 to vector<8x32xf32>
      %c0_11 = arith.constant 0 : index
      %c0_12 = arith.constant 0 : index
      %13 = vector.load %arg9[%c0_11, %c0_12] : memref<8x32xf32, #tpu.memory_space<vmem>>, vector<8x32xf32>
      tpu.vector_store %arg9[%c0_11, %c0_12], %12 {strides = array<i32>} : memref<8x32xf32, #tpu.memory_space<vmem>>, vector<8x32xf32>,
    } else {
    }
    %c0 = arith.constant 0 : index
    %c0_1 = arith.constant 0 : index
    %3 = vector.load %arg9[%c0, %c0_1] : memref<8x32xf32, #tpu.memory_space<vmem>>, vector<8x32xf32>
    %c0_2 = arith.constant 0 : index
    %c0_3 = arith.constant 0 : index
    %4 = vector.load %arg2[%c0_2, %c0_3] : memref<8x64xbf16, #tpu.memory_space<vmem>>, vector<8x64xbf16>
    %c0_4 = arith.constant 0 : index
    %c0_5 = arith.constant 0 : index
    %5 = vector.load %arg3[%c0_4, %c0_5] : memref<64x32xbf16, #tpu.memory_space<vmem>>, vector<64x32xbf16>
    %cst = arith.constant dense<0.000000e+00> : vector<8x32xf32>
    %6 = tpu.matmul %4, %5, %cst {dimension_numbers = #tpu.dot_dimension_numbers<[1], [0], [0], [1], [0, 0, 1, 1], [], []>} : vector<8x64xbf16>, vector<64x32xbf16>, vector<8x32xf32> -> vector<8x32xf32>
    %7 = arith.addf %3, %6 : vector<8x32xf32>
    %c0_6 = arith.constant 0 : index
    %c0_7 = arith.constant 0 : index
    %8 = vector.load %arg9[%c0_6, %c0_7] : memref<8x32xf32, #tpu.memory_space<vmem>>, vector<8x32xf32>
    tpu.vector_store %arg9[%c0_6, %c0_7], %7 {strides = array<i32>} : memref<8x32xf32, #tpu.memory_space<vmem>>, vector<8x32xf32>,
    %c0_i32_8 = arith.constant 0 : i32
    %9 = arith.cmpi eq, %arg1, %c0_i32_8 : i32
    %10 = arith.extui %9 : i1 to i32
    %c0_i32_9 = arith.constant 0 : i32
    %11 = arith.cmpi ne, %10, %c0_i32_9 : i32
    scf.if %11 {
      %c0_10 = arith.constant 0 : index
      %c0_11 = arith.constant 0 : index
      %12 = vector.load %arg9[%c0_10, %c0_11] : memref<8x32xf32, #tpu.memory_space<vmem>>, vector<8x32xf32>
      %c0_12 = arith.constant 0 : index
      %c0_13 = arith.constant 0 : index
      %13 = vector.load %arg4[%c0_12, %c0_13] : memref<1x32xf32, #tpu.memory_space<vmem>>, vector<1x32xf32>
      %14 = vector.broadcast %13 : vector<1x32xf32> to vector<8x32xf32>
      %15 = arith.addf %12, %14 : vector<8x32xf32>
      %c0_14 = arith.constant 0 : index
      %c0_15 = arith.constant 0 : index
      %16 = vector.load %arg5[%c0_14, %c0_15] : memref<8x32xbf16, #tpu.memory_space<vmem>>, vector<8x32xbf16>
      %17 = arith.extf %16 : vector<8x32xbf16> to vector<8x32xf32>
      %18 = arith.addf %15, %17 : vector<8x32xf32>
      %cst_16 = arith.constant dense<0.000000e+00> : vector<8xf32>
      %19 = vector.multi_reduction <add>, %18, %cst_16 [1] : vector<8x32xf32> to vector<8xf32>
      %20 = vector.shape_cast %19 : vector<8xf32> to vector<8x1xf32>
      %cst_17 = arith.constant 3.200000e+01 : f32
      %21 = vector.broadcast %cst_17 : f32 to vector<8x1xf32>
      %22 = arith.divf %20, %21 : vector<8x1xf32>
      %23 = vector.broadcast %22 : vector<8x1xf32> to vector<8x32xf32>
      %24 = arith.subf %18, %23 : vector<8x32xf32>
      %25 = arith.mulf %24, %24 : vector<8x32xf32>
      %cst_18 = arith.constant dense<0.000000e+00> : vector<8xf32>
      %26 = vector.multi_reduction <add>, %25, %cst_18 [1] : vector<8x32xf32> to vector<8xf32>
      %27 = vector.shape_cast %26 : vector<8xf32> to vector<8x1xf32>
      %cst_19 = arith.constant 3.200000e+01 : f32
      %28 = vector.broadcast %cst_19 : f32 to vector<8x1xf32>
      %29 = arith.divf %27, %28 : vector<8x1xf32>
      %30 = vector.broadcast %22 : vector<8x1xf32> to vector<8x32xf32>
      %31 = arith.subf %18, %30 : vector<8x32xf32>
      %cst_20 = arith.constant 9.99999996E-13 : f32
      %32 = vector.broadcast %cst_20 : f32 to vector<8x1xf32>
      %33 = arith.addf %29, %32 : vector<8x1xf32>
      %34 = math.rsqrt %33 : vector<8x1xf32>
      %35 = vector.broadcast %34 : vector<8x1xf32> to vector<8x32xf32>
      %36 = arith.mulf %31, %35 : vector<8x32xf32>
      %c0_21 = arith.constant 0 : index
      %c0_22 = arith.constant 0 : index
      %37 = vector.load %arg6[%c0_21, %c0_22] : memref<1x32xf32, #tpu.memory_space<vmem>>, vector<1x32xf32>
      %38 = vector.broadcast %37 : vector<1x32xf32> to vector<8x32xf32>
      %39 = arith.mulf %36, %38 : vector<8x32xf32>
      %c0_23 = arith.constant 0 : index
      %c0_24 = arith.constant 0 : index
      %40 = vector.load %arg7[%c0_23, %c0_24] : memref<1x32xf32, #tpu.memory_space<vmem>>, vector<1x32xf32>
      %41 = vector.broadcast %40 : vector<1x32xf32> to vector<8x32xf32>
      %42 = arith.addf %39, %41 : vector<8x32xf32>
      %43 = arith.truncf %42 : vector<8x32xf32> to vector<8x32xbf16>
      %c0_25 = arith.constant 0 : index
      %c0_26 = arith.constant 0 : index
      %44 = vector.load %arg8[%c0_25, %c0_26] : memref<8x32xbf16, #tpu.memory_space<vmem>>, vector<8x32xbf16>
      tpu.vector_store %arg8[%c0_25, %c0_26], %43 {strides = array<i32>} : memref<8x32xbf16, #tpu.memory_space<vmem>>, vector<8x32xbf16>,
    } else {
    }
    return
  }
  func.func @transform_0(%arg0: i32, %arg1: i32) -> (i32, i32) {
    %c0_i32 = arith.constant 0 : i32
    return %arg0, %arg1 : i32, i32
  }
  func.func @transform_1(%arg0: i32, %arg1: i32) -> (i32, i32) {
    %c0_i32 = arith.constant 0 : i32
    %c0_i32_0 = arith.constant 0 : i32
    return %arg1, %c0_i32 : i32, i32
  }
  func.func @transform_2(%arg0: i32, %arg1: i32) -> (i32, i32) {
    %c0_i32 = arith.constant 0 : i32
    %c0_i32_0 = arith.constant 0 : i32
    %c0_i32_1 = arith.constant 0 : i32
    return %c0_i32, %c0_i32_0 : i32, i32
  }
  func.func @transform_3(%arg0: i32, %arg1: i32) -> (i32, i32) {
    %c0_i32 = arith.constant 0 : i32
    %c0_i32_0 = arith.constant 0 : i32
    return %arg0, %c0_i32 : i32, i32
  }
  func.func @transform_4(%arg0: i32, %arg1: i32) -> (i32, i32) {
    %c0_i32 = arith.constant 0 : i32
    %c0_i32_0 = arith.constant 0 : i32
    %c0_i32_1 = arith.constant 0 : i32
    return %c0_i32, %c0_i32_0 : i32, i32
  }
  func.func @transform_5(%arg0: i32, %arg1: i32) -> (i32, i32) {
    %c0_i32 = arith.constant 0 : i32
    %c0_i32_0 = arith.constant 0 : i32
    %c0_i32_1 = arith.constant 0 : i32
    return %c0_i32, %c0_i32_0 : i32, i32
  }
  func.func @transform_6(%arg0: i32, %arg1: i32) -> (i32, i32) {
    %c0_i32 = arith.constant 0 : i32
    %c0_i32_0 = arith.constant 0 : i32
    return %arg0, %c0_i32 : i32, i32
  }
}

module attributes {stable_mosaic.version = 11 : i64} {
  func.func @_pooler_cls_kernel(%arg0: memref<2x32xbf16, #tpu.memory_space<vmem>>, %arg1: memref<32x32xbf16, #tpu.memory_space<vmem>>, %arg2: memref<1x32xf32, #tpu.memory_space<vmem>>, %arg3: memref<32x3xbf16, #tpu.memory_space<vmem>>, %arg4: memref<1x3xf32, #tpu.memory_space<vmem>>, %arg5: memref<2x3xf32, #tpu.memory_space<vmem>>) attributes {dimension_semantics = [], scalar_prefetch = 0 : i64, scratch_operands = 0 : i64, tpu.core_type = #tpu.core_type<tc>} {
    %c0 = arith.constant 0 : index
    %c0_0 = arith.constant 0 : index
    %0 = vector.load %arg0[%c0, %c0_0] : memref<2x32xbf16, #tpu.memory_space<vmem>>, vector<2x32xbf16>
    %c0_1 = arith.constant 0 : index
    %c0_2 = arith.constant 0 : index
    %1 = vector.load %arg1[%c0_1, %c0_2] : memref<32x32xbf16, #tpu.memory_space<vmem>>, vector<32x32xbf16>
    %cst = arith.constant dense<0.000000e+00> : vector<2x32xf32>
    %2 = tpu.matmul %0, %1, %cst {dimension_numbers = #tpu.dot_dimension_numbers<[1], [0], [0], [1], [0, 0, 1, 1], [], []>} : vector<2x32xbf16>, vector<32x32xbf16>, vector<2x32xf32> -> vector<2x32xf32>
    %c0_3 = arith.constant 0 : index
    %c0_4 = arith.constant 0 : index
    %3 = vector.load %arg2[%c0_3, %c0_4] : memref<1x32xf32, #tpu.memory_space<vmem>>, vector<1x32xf32>
    %4 = vector.broadcast %3 : vector<1x32xf32> to vector<2x32xf32>
    %5 = arith.addf %2, %4 : vector<2x32xf32>
    %6 = math.tanh %5 : vector<2x32xf32>
    %7 = arith.truncf %6 : vector<2x32xf32> to vector<2x32xbf16>
    %c0_5 = arith.constant 0 : index
    %c0_6 = arith.constant 0 : index
    %8 = vector.load %arg3[%c0_5, %c0_6] : memref<32x3xbf16, #tpu.memory_space<vmem>>, vector<32x3xbf16>
    %cst_7 = arith.constant dense<0.000000e+00> : vector<2x3xf32>
    %9 = tpu.matmul %7, %8, %cst_7 {dimension_numbers = #tpu.dot_dimension_numbers<[1], [0], [0], [1], [0, 0, 1, 1], [], []>} : vector<2x32xbf16>, vector<32x3xbf16>, vector<2x3xf32> -> vector<2x3xf32>
    %c0_8 = arith.constant 0 : index
    %c0_9 = arith.constant 0 : index
    %10 = vector.load %arg4[%c0_8, %c0_9] : memref<1x3xf32, #tpu.memory_space<vmem>>, vector<1x3xf32>
    %11 = vector.broadcast %10 : vector<1x3xf32> to vector<2x3xf32>
    %12 = arith.addf %9, %11 : vector<2x3xf32>
    %c0_10 = arith.constant 0 : index
    %c0_11 = arith.constant 0 : index
    %13 = vector.load %arg5[%c0_10, %c0_11] : memref<2x3xf32, #tpu.memory_space<vmem>>, vector<2x3xf32>
    tpu.vector_store %arg5[%c0_10, %c0_11], %12 {strides = array<i32>} : memref<2x3xf32, #tpu.memory_space<vmem>>, vector<2x3xf32>,
    return
  }
}

</mosaic_0001>

<llo_original>
// kernel: tpu_custom_call.1
$region0: #{tpu_custom_call.1}
  #allocation0 [shape = 'u32[]', space=smem, size = 0x4, offset = 0x4, fixed_abs, tag = 'smem constant byte address 0x4 - core index']
  #allocation1 [shape = 'u32[144,128]{1,0:T(1,128)}', space=vmem, size = 0x12000, scoped, tag = 'internal scratch']
  %s0 = inlined_call_operand.hbm [shape: f32[8,128], index: 0, kind: input, shape index: {}]
  %s1 = inlined_call_operand.hbm [shape: f32[8,128], index: 1, kind: output, shape index: {}]
  %s2 = sld [smem:[#allocation0]]
  $region18: #{tpu_custom_call.1} parent=0
    _
  %s4 = ssub.s32 1, %s2
  %s5 = scalar_select 0, %s4, %s2
  $region1: #{tpu_custom_call.1} parent=0
    #allocation2 [shape = 'u8[4096]{0}', space=vmem, size = 0x1000, scoped, tag = 'input window, operand 0, single buffered']
    #allocation3 [shape = 's32[1]{0}', space=sflag, size = 0x4, scoped, tag = 'scoped memory for tpu_custom_call.1']
    #allocation4 [shape = 's32[1]{0}', space=sflag, size = 0x4, scoped, tag = 'scoped memory for tpu_custom_call.1']
    #allocation5 [shape = 'u8[4096]{0}', space=vmem, size = 0x1000, scoped, tag = 'output window, operand 0, single buffered']
    %6 = vsyncpa [#allocation3], 0
    %7 = vsyncpa [#allocation4], 0
    // Predicated region
    $region2: #{tpu_custom_call.1} parent=1 // pred_check
      _
    $region3: #{tpu_custom_call.1} parent=1 // pred_check_branch
      %9 = sbr.rel (0) target = $region5
    $region4: #{tpu_custom_call.1} parent=1 // pred_region
      %s11 = ssub.s32 128, 128
      %12 = vsyncadd [#allocation3], %s11
      %s14 = sshll.u32 [#allocation2], 4
      %s15 = int_to_ptr.vmem [resolvable:$true] %s14
      %17 = dma.hbm_to_vmem [thread:$0]  %s0, 128, %s15, [#allocation3]
    $region5: #{tpu_custom_call.1} parent=1 // pred_fallthru
      _
    // Predicated region
    $region6: #{tpu_custom_call.1} parent=1 // pred_check
      _
    $region7: #{tpu_custom_call.1} parent=1 // pred_check_branch
      %19 = sbr.rel (0) target = $region9
    $region8: #{tpu_custom_call.1} parent=1 // pred_region
      %20 = dma.done [#allocation3], 128
    $region9: #{tpu_custom_call.1} parent=1 // pred_fallthru
      _
    %v21 = vld [vmem:[#allocation2] sm:$0xff]
    %22 = vst [vmem:[#allocation5] sm:$0xff] %v21
    // Predicated region
    $region10: #{tpu_custom_call.1} parent=1 // pred_check
      _
    $region11: #{tpu_custom_call.1} parent=1 // pred_check_branch
      %24 = sbr.rel (0) target = $region13
    $region12: #{tpu_custom_call.1} parent=1 // pred_region
      %s26 = ssub.s32 128, 128
      %27 = vsyncadd [#allocation4], %s26
      %s29 = sshll.u32 [#allocation5], 4
      %s30 = int_to_ptr.vmem [resolvable:$true] %s29
      %32 = dma.vmem_to_hbm [thread:$0]  %s30, 128, %s1, [#allocation4]
    $region13: #{tpu_custom_call.1} parent=1 // pred_fallthru
      _
    // Predicated region
    $region14: #{tpu_custom_call.1} parent=1 // pred_check
      _
    $region15: #{tpu_custom_call.1} parent=1 // pred_check_branch
      %34 = sbr.rel (0) target = $region17
    $region16: #{tpu_custom_call.1} parent=1 // pred_region
      %35 = dma.done [#allocation4], 128
    $region17: #{tpu_custom_call.1} parent=1 // pred_fallthru
      _
    %36 = vsyncpa [#allocation3], 1
    %37 = vsyncpa [#allocation4], 1

// kernel: rate_predictor_forward.12
$region0: #{rate_predictor_forward.12}
  #allocation0 [shape = 'u32[]', space=smem, size = 0x4, offset = 0x4, fixed_abs, tag = 'smem constant byte address 0x4 - core index']
  #allocation1 [shape = 'u32[144,128]{1,0:T(1,128)}', space=vmem, size = 0x12000, scoped, tag = 'internal scratch']
  %s0 = inlined_call_operand.vmem [shape: bf16[16,32], index: 0, kind: input, shape index: {}]
  %s1 = inlined_call_operand.vmem [shape: bf16[16,32], index: 1, kind: input, shape index: {}]
  %s2 = inlined_call_operand.vmem [shape: f32[1,32], index: 2, kind: input, shape index: {}]
  %s3 = inlined_call_operand.vmem [shape: f32[1,32], index: 3, kind: input, shape index: {}]
  %s4 = inlined_call_operand.vmem [shape: bf16[16,32], index: 4, kind: output, shape index: {}]
  %s5 = sld [smem:[#allocation0]]
  $region26: #{rate_predictor_forward.12} parent=0
    _
  %s7 = ssub.s32 1, %s5
  %s8 = scalar_select 0, %s7, %s5
  // Predicated region
  $region2: #{rate_predictor_forward.12} parent=0 // pred_check
    _
  $region3: #{rate_predictor_forward.12} parent=0 // pred_check_branch
    %10 = sbr.rel (0) target = $region5
  $region4: #{rate_predictor_forward.12} parent=0 // pred_region
    _
  $region5: #{rate_predictor_forward.12} parent=0 // pred_fallthru
    _
  // Predicated region
  $region6: #{rate_predictor_forward.12} parent=0 // pred_check
    _
  $region7: #{rate_predictor_forward.12} parent=0 // pred_check_branch
    %12 = sbr.rel (0) target = $region9
  $region8: #{rate_predictor_forward.12} parent=0 // pred_region
    _
  $region9: #{rate_predictor_forward.12} parent=0 // pred_fallthru
    _
  // Predicated region
  $region10: #{rate_predictor_forward.12} parent=0 // pred_check
    _
  $region11: #{rate_predictor_forward.12} parent=0 // pred_check_branch
    %14 = sbr.rel (0) target = $region13
  $region12: #{rate_predictor_forward.12} parent=0 // pred_region
    _
  $region13: #{rate_predictor_forward.12} parent=0 // pred_fallthru
    _
  // Predicated region
  $region14: #{rate_predictor_forward.12} parent=0 // pred_check
    _
  $region15: #{rate_predictor_forward.12} parent=0 // pred_check_branch
    %16 = sbr.rel (0) target = $region17
  $region16: #{rate_predictor_forward.12} parent=0 // pred_region
    _
  $region17: #{rate_predictor_forward.12} parent=0 // pred_fallthru
    _
  %v17 = vld [vmem:[%s0] sm:$0xf]
  %v18 = vld [vmem:[%s0 + $0x4] sm:$0xf]
  %v19 = vunpack.c.l.bf16 %v17
  %v20 = vunpack.c.l.bf16 %v18
  %v21 = vld [vmem:[%s1] sm:$0xf]
  %v22 = vld [vmem:[%s1 + $0x4] sm:$0xf]
  %v23 = vunpack.c.l.bf16 %v21
  %v24 = vunpack.c.l.bf16 %v22
  %v25 = vadd.f32 %v19, %v23
  %v26 = vadd.f32 %v20, %v24
  %vm27 = vcmask 261120
  %v28 = vsel %vm27, %v25, 0.0
  %29 = vadd.xlane.f32.xlu0 %v28
  %v30 = vpop.xlane.xlu0 %29
  %v31 = vsel %vm27, %v26, 0.0
  %32 = vadd.xlane.f32.xlu0 %v31
  %v33 = vpop.xlane.xlu0 %32
  %v34 = vrcp.pop 32.0
  %v35 = vmul.f32 %v30, %v34
  %v36 = vmul.f32 %v33, %v34
  %v37 = vsub.f32 %v25, %v35
  %v38 = vsub.f32 %v26, %v36
  %v39 = vmul.f32 %v37, %v37
  %v40 = vmul.f32 %v38, %v38
  %v41 = vsel %vm27, %v39, 0.0
  %42 = vadd.xlane.f32.xlu0 %v41
  %v43 = vpop.xlane.xlu0 %42
  %v44 = vsel %vm27, %v40, 0.0
  %45 = vadd.xlane.f32.xlu0 %v44
  %v46 = vpop.xlane.xlu0 %45
  %v47 = vmul.f32 %v43, %v34
  %v48 = vmul.f32 %v46, %v34
  %v49 = vadd.f32 %v47, 1e-12
  %v50 = vadd.f32 %v48, 1e-12
  %v51 = vrsqrt.pop %v49
  %v52 = vrsqrt.pop %v50
  %v53 = vmul.f32 %v37, %v51
  %v54 = vmul.f32 %v38, %v52
  %v55 = vld [vmem:[%s2] sm:$0x1]
  %v57 = vlaneseq
  %v58 = vshrl.u32 %v57, 7
  %v59 = vsub.s32 0, %v58
  %v60 = vrot.slane %v55, %v59
  %v62 = vmul.f32 %v53, %v60
  %v63 = vmul.f32 %v54, %v60
  %v64 = vld [vmem:[%s3] sm:$0x1]
  %v66 = vlaneseq
  %v67 = vshrl.u32 %v66, 7
  %v68 = vsub.s32 0, %v67
  %v69 = vrot.slane %v64, %v68
  %v71 = vadd.f32 %v62, %v69
  %v72 = vadd.f32 %v63, %v69
  %v73 = vpack.c.bf16 %v72, %v71
  %v75 = vunpack.c.l.b16 %v73
  %v76 = vunpack.c.h.b16 %v73
  %v77 = vpack.c.b16 %v75, %v75
  %v78 = vpack.c.b16 %v76, %v76
  %vm81 = vcmask 257024
  %82 = vst.msk [vmem:[%s4] sm:$0xf] %vm81, %v77
  %83 = vst.msk [vmem:[%s4 + $0x4] sm:$0xf] %vm81, %v78
  // Predicated region
  $region18: #{rate_predictor_forward.12} parent=0 // pred_check
    _
  $region19: #{rate_predictor_forward.12} parent=0 // pred_check_branch
    %85 = sbr.rel (0) target = $region21
  $region20: #{rate_predictor_forward.12} parent=0 // pred_region
    _
  $region21: #{rate_predictor_forward.12} parent=0 // pred_fallthru
    _
  // Predicated region
  $region22: #{rate_predictor_forward.12} parent=0 // pred_check
    _
  $region23: #{rate_predictor_forward.12} parent=0 // pred_check_branch
    %87 = sbr.rel (0) target = $region25
  $region24: #{rate_predictor_forward.12} parent=0 // pred_region
    _
  $region25: #{rate_predictor_forward.12} parent=0 // pred_fallthru
    _

// kernel: rate_predictor_forward.13
$region0: #{rate_predictor_forward.13}
  #allocation0 [shape = 'u32[]', space=smem, size = 0x4, offset = 0x4, fixed_abs, tag = 'smem constant byte address 0x4 - core index']
  #allocation1 [shape = 'u32[144,128]{1,0:T(1,128)}', space=vmem, size = 0x12000, scoped, tag = 'internal scratch']
  #allocation2 [shape = 'f32[16,96]{1,0:T(8,128)}', space=vmem, size = 0x2000, scoped, tag = 'scratch operand']
  %s0 = inlined_call_operand.vmem [shape: bf16[16,32], index: 0, kind: input, shape index: {}]
  %s1 = inlined_call_operand.vmem [shape: bf16[32,96], index: 1, kind: input, shape index: {}]
  %s2 = inlined_call_operand.vmem [shape: f32[1,96], index: 2, kind: input, shape index: {}]
  %s3 = inlined_call_operand.vmem [shape: bf16[16,96], index: 3, kind: output, shape index: {}]
  %s4 = sld [smem:[#allocation0]]
  $region30: #{rate_predictor_forward.13} parent=0
    _
  %s6 = ssub.s32 1, %s4
  %s7 = scalar_select 0, %s6, %s4
  // Predicated region
  $region2: #{rate_predictor_forward.13} parent=0 // pred_check
    _
  $region3: #{rate_predictor_forward.13} parent=0 // pred_check_branch
    %9 = sbr.rel (0) target = $region5
  $region4: #{rate_predictor_forward.13} parent=0 // pred_region
    _
  $region5: #{rate_predictor_forward.13} parent=0 // pred_fallthru
    _
  // Predicated region
  $region6: #{rate_predictor_forward.13} parent=0 // pred_check
    _
  $region7: #{rate_predictor_forward.13} parent=0 // pred_check_branch
    %11 = sbr.rel (0) target = $region9
  $region8: #{rate_predictor_forward.13} parent=0 // pred_region
    _
  $region9: #{rate_predictor_forward.13} parent=0 // pred_fallthru
    _
  // Predicated region
  $region10: #{rate_predictor_forward.13} parent=0 // pred_check
    _
  $region11: #{rate_predictor_forward.13} parent=0 // pred_check_branch
    %13 = sbr.rel (0) target = $region13
  $region12: #{rate_predictor_forward.13} parent=0 // pred_region
    _
  $region13: #{rate_predictor_forward.13} parent=0 // pred_fallthru
    _
  %p15 = scmp.eq.s32.totalorder 0, 0
  // Predicated region
  $region14: #{rate_predictor_forward.13} parent=0 // pred_check
    %p16 = pneg %p15
  $region15: #{rate_predictor_forward.13} parent=0 // pred_check_branch
    %18 = sbr.rel (%p16) target = $region17
  $region16: #{rate_predictor_forward.13} parent=0 // pred_region
    %vm19 = vcmask 785408
    %20 = vst.msk [vmem:[#allocation2] sm:$0xff] %vm19, 0.0
    %21 = vst.msk [vmem:[#allocation2 + $0x8] sm:$0xff] %vm19, 0.0
  $region17: #{rate_predictor_forward.13} parent=0 // pred_fallthru
    _
  %v22 = vld [vmem:[#allocation2] sm:$0xff]
  %v23 = vld [vmem:[#allocation2 + $0x8] sm:$0xff]
  %v24 = vld [vmem:[%s0] sm:$0xf]
  %v25 = vld [vmem:[%s0 + $0x4] sm:$0xf]
  %v26 = vld [vmem:[%s1] sm:$0xf]
  %v27 = vld [vmem:[%s1 + $0x4] sm:$0xf]
  %v28 = vld [vmem:[%s1 + $0x8] sm:$0xf]
  %v29 = vld [vmem:[%s1 + $0xc] sm:$0xf]
  %v32 = vunpack.c.l.b16 %v24
  %v33 = vunpack.c.l.b16 %v25
  %v34 = vpack.c.b16 %v33, %v32
  %v39 = vunpack.c.l.b16 %v26
  %v40 = vunpack.c.l.b16 %v27
  %v41 = vunpack.c.l.b16 %v28
  %v42 = vunpack.c.l.b16 %v29
  %v43 = vpack.c.b16 %v40, %v39
  %v44 = vpack.c.b16 %v42, %v41
  %vm47 = vcmask 261120
  %v49 = vsel %vm47, %v34, 0
  %51 = vmatprep.subr.bf16.mxu0 0
  %52 = vmatpush1.bf16.msra.mxu0 0
  %53 = vmatprep.subr.bf16.mxu0 0
  %54 = vmatpush1.bf16.msra.mxu0 0
  %55 = vmatprep.subr.bf16.mxu0 0
  %56 = vmatpush1.bf16.msra.mxu0 0
  %57 = vmatprep.subr.bf16.mxu0 0
  %58 = vmatpush1.bf16.msra.mxu0 0
  %59 = vmatprep.subr.bf16.mxu0 0
  %60 = vmatpush1.bf16.msra.mxu0 0
  %61 = vmatprep.subr.bf16.mxu0 0
  %62 = vmatpush1.bf16.msra.mxu0 0
  %63 = vmatprep.subr.bf16.mxu0 0
  %64 = vmatpush1.bf16.msra.mxu0 %v44
  %65 = vmatprep.subr.bf16.mxu0 0
  %66 = vmatpush1.bf16.msra.mxu0 %v43
  %67 = vmatprep.subr.bf16.mxu0 0
  %68 = vmatpush2.bf16.msra.mxu0 0
  %69 = vmatprep.subr.bf16.mxu0 0
  %70 = vmatpush2.bf16.msra.mxu0 0
  %71 = vmatprep.subr.bf16.mxu0 0
  %72 = vmatpush2.bf16.msra.mxu0 0
  %73 = vmatprep.subr.bf16.mxu0 0
  %74 = vmatpush2.bf16.msra.mxu0 0
  %75 = vmatprep.subr.bf16.mxu0 0
  %76 = vmatpush2.bf16.msra.mxu0 0
  %77 = vmatprep.subr.bf16.mxu0 0
  %78 = vmatpush2.bf16.msra.mxu0 0
  %79 = vmatprep.subr.bf16.mxu0 0
  %80 = vmatpush2.bf16.msra.mxu0 0
  %81 = vmatprep.subr.bf16.mxu0 0
  %82 = vmatpush2.bf16.msra.mxu0 0
  %83 = vmatprep.mubr.bf16.mxu0 0
  %84 = vmatmul.mubr.bf16.gmra.mxu0 %v49
  %v85 = vpop.f32.mrf.mxu0
  %v86 = vadd.f32 0.0, %v85
  %v87 = vpop.f32.mrf.mxu0
  %v88 = vpop.f32.mrf.mxu0
  %v89 = vadd.f32 0.0, %v88
  %v90 = vpop.f32.mrf.mxu0
  %91 = vdwg.mxu0
  %v92 = vadd.f32 %v22, %v86
  %v93 = vadd.f32 %v23, %v89
  %vm94 = vcmask 785408
  %95 = vst.msk [vmem:[#allocation2] sm:$0xff] %vm94, %v92
  %96 = vst.msk [vmem:[#allocation2 + $0x8] sm:$0xff] %vm94, %v93
  // Predicated region
  $region18: #{rate_predictor_forward.13} parent=0 // pred_check
    %p97 = pneg %p15
  $region19: #{rate_predictor_forward.13} parent=0 // pred_check_branch
    %99 = sbr.rel (%p97) target = $region21
  $region20: #{rate_predictor_forward.13} parent=0 // pred_region
    %v100 = vld [vmem:[#allocation2] sm:$0xff]
    %v101 = vld [vmem:[#allocation2 + $0x8] sm:$0xff]
    %v102 = vld [vmem:[%s2] sm:$0x1]
    %v104 = vlaneseq
    %v105 = vshrl.u32 %v104, 7
    %v106 = vsub.s32 0, %v105
    %v107 = vrot.slane %v102, %v106
    %v109 = vadd.f32 %v100, %v107
    %v110 = vadd.f32 %v101, %v107
    %v111 = vpack.c.bf16 %v110, %v109
    %v113 = vunpack.c.l.b16 %v111
    %v114 = vunpack.c.h.b16 %v111
    %v115 = vpack.c.b16 %v113, %v113
    %v116 = vpack.c.b16 %v114, %v114
    %vm119 = vcmask 781312
    %120 = vst.msk [vmem:[%s3] sm:$0xf] %vm119, %v115
    %121 = vst.msk [vmem:[%s3 + $0x4] sm:$0xf] %vm119, %v116
  $region21: #{rate_predictor_forward.13} parent=0 // pred_fallthru
    _
  // Predicated region
  $region22: #{rate_predictor_forward.13} parent=0 // pred_check
    _
  $region23: #{rate_predictor_forward.13} parent=0 // pred_check_branch
    %123 = sbr.rel (0) target = $region25
  $region24: #{rate_predictor_forward.13} parent=0 // pred_region
    _
  $region25: #{rate_predictor_forward.13} parent=0 // pred_fallthru
    _
  // Predicated region
  $region26: #{rate_predictor_forward.13} parent=0 // pred_check
    _
  $region27: #{rate_predictor_forward.13} parent=0 // pred_check_branch
    %125 = sbr.rel (0) target = $region29
  $region28: #{rate_predictor_forward.13} parent=0 // pred_region
    _
  $region29: #{rate_predictor_forward.13} parent=0 // pred_fallthru
    _

// kernel: rate_predictor_forward.14
$region0: #{rate_predictor_forward.14}
  #allocation0 [shape = 'u32[]', space=smem, size = 0x4, offset = 0x4, fixed_abs, tag = 'smem constant byte address 0x4 - core index']
  #allocation1 [shape = 'u32[144,128]{1,0:T(1,128)}', space=vmem, size = 0x12000, scoped, tag = 'internal scratch']
  %s0 = inlined_call_operand.vmem [shape: bf16[16,96], index: 0, kind: input, shape index: {}]
  %s1 = inlined_call_operand.vmem [shape: f32[2,1,8], index: 1, kind: input, shape index: {}]
  %s2 = inlined_call_operand.vmem [shape: bf16[16,32], index: 2, kind: output, shape index: {}]
  %s3 = sld [smem:[#allocation0]]
  $region41: #{rate_predictor_forward.14} parent=0
    _
  %s5 = ssub.s32 1, %s3
  %s6 = scalar_select 0, %s5, %s3
  loop: start=0, step=1, limit=4
  $region2: #{rate_predictor_forward.14} parent=0 // loop_pre_header
    _
  $region3: #{rate_predictor_forward.14} parent=0 // loop_header
    %s8 = sphi 0, %s12
    %p9 = scmp.ge.s32.totalorder %s8, 4
    %s18 = sphi 0, %s20
    %s21 = sphi 0, %s18
    %s22 = sphi 0, %s21
    %s38 = sphi 0, %s22
    %s44 = sphi 0, %s46
    %s47 = sphi 0, %s44
    %s48 = sphi 0, %s47
    %s64 = sphi 0, %s48
    %s70 = sphi 0, %s72
    %s73 = sphi 0, %s70
    %s74 = sphi 0, %s73
    %s90 = sphi 0, %s74
  $region4: #{rate_predictor_forward.14} parent=0 // loop_header_branch
    %11 = sbr.rel (%p9) target = $region8
  $region5: #{rate_predictor_forward.14} parent=0 // loop_body
    %s13 = ssub.s32 %s8, 1
    %s14 = ssub.s32 %s8, 2
    %s15 = sadd.s32 %s8, 1
    %s16 = ssub.s32 %s8, %s15
    %p17 = scmp.eq.s32.totalorder %s16, 0
    %s19 = sadd.s32 %s18, 1
    %s20 = scalar_select %p17, %s18, %s19
    %p23 = pneg %p17
    %p24 = scmp.eq.s32.totalorder %s8, 1
    %p25 = por %p23, %p24
    %p26 = scmp.ne.s32.totalorder %s18, %s21
    %p27 = scmp.eq.s32.totalorder %s8, 0
    %p28 = por %p26, %p27
    %p29 = scmp.ne.s32.totalorder %s18, %s21
    %p30 = scmp.eq.s32.totalorder %s13, 1
    %p31 = por %p29, %p30
    %p32 = scmp.ne.s32.totalorder %s21, %s22
    %p33 = scmp.eq.s32.totalorder %s13, 0
    %p34 = por %p32, %p33
    %p35 = scmp.ne.s32.totalorder %s21, %s22
    %p36 = scmp.eq.s32.totalorder %s14, 1
    %p37 = por %p35, %p36
    %p39 = scmp.ne.s32.totalorder %s22, %s38
    %p40 = scmp.eq.s32.totalorder %s14, 0
    %p41 = por %p39, %p40
    %s42 = ssub.s32 %s8, %s15
    %p43 = scmp.eq.s32.totalorder %s42, 0
    %s45 = sadd.s32 %s44, 1
    %s46 = scalar_select %p43, %s44, %s45
    %p49 = pneg %p43
    %p50 = scmp.eq.s32.totalorder %s8, 1
    %p51 = por %p49, %p50
    %p52 = scmp.ne.s32.totalorder %s44, %s47
    %p53 = scmp.eq.s32.totalorder %s8, 0
    %p54 = por %p52, %p53
    %p55 = scmp.ne.s32.totalorder %s44, %s47
    %p56 = scmp.eq.s32.totalorder %s13, 1
    %p57 = por %p55, %p56
    %p58 = scmp.ne.s32.totalorder %s47, %s48
    %p59 = scmp.eq.s32.totalorder %s13, 0
    %p60 = por %p58, %p59
    %p61 = scmp.ne.s32.totalorder %s47, %s48
    %p62 = scmp.eq.s32.totalorder %s14, 1
    %p63 = por %p61, %p62
    %p65 = scmp.ne.s32.totalorder %s48, %s64
    %p66 = scmp.eq.s32.totalorder %s14, 0
    %p67 = por %p65, %p66
    %s68 = ssub.s32 %s8, %s15
    %p69 = scmp.eq.s32.totalorder %s68, 0
    %s71 = sadd.s32 %s70, 1
    %s72 = scalar_select %p69, %s70, %s71
    %p75 = pneg %p69
    %p76 = scmp.eq.s32.totalorder %s8, 1
    %p77 = por %p75, %p76
    %p78 = scmp.ne.s32.totalorder %s70, %s73
    %p79 = scmp.eq.s32.totalorder %s8, 0
    %p80 = por %p78, %p79
    %p81 = scmp.ne.s32.totalorder %s70, %s73
    %p82 = scmp.eq.s32.totalorder %s13, 1
    %p83 = por %p81, %p82
    %p84 = scmp.ne.s32.totalorder %s73, %s74
    %p85 = scmp.eq.s32.totalorder %s13, 0
    %p86 = por %p84, %p85
    %p87 = scmp.ne.s32.totalorder %s73, %s74
    %p88 = scmp.eq.s32.totalorder %s14, 1
    %p89 = por %p87, %p88
    %p91 = scmp.ne.s32.totalorder %s74, %s90
    %p92 = scmp.eq.s32.totalorder %s14, 0
    %p93 = por %p91, %p92
    %p94 = scmp.le.s32.totalorder 1, %s8
    %p95 = scmp.lt.s32.totalorder %s8, 3
    %p96 = pnand %p94, %p95
    %p97 = pneg %p96
    // Predicated region
    $region9: #{rate_predictor_forward.14} parent=5 // pred_check
      _
    $region10: #{rate_predictor_forward.14} parent=5 // pred_check_branch
      %99 = sbr.rel (%p96) target = $region12
    $region11: #{rate_predictor_forward.14} parent=5 // pred_region
      %s100 = ssub.s32 %s8, 1
    $region12: #{rate_predictor_forward.14} parent=5 // pred_fallthru
      _
    %p101 = scmp.lt.s32.totalorder %s8, 2
    // Predicated region
    $region13: #{rate_predictor_forward.14} parent=5 // pred_check
      %p102 = pneg %p101
    $region14: #{rate_predictor_forward.14} parent=5 // pred_check_branch
      %104 = sbr.rel (%p102) target = $region16
    $region15: #{rate_predictor_forward.14} parent=5 // pred_region
      // Predicated region
      $region17: #{rate_predictor_forward.14} parent=15 // pred_check
        %p105 = pneg %p28
      $region18: #{rate_predictor_forward.14} parent=15 // pred_check_branch
        %107 = sbr.rel (%p105) target = $region20
      $region19: #{rate_predictor_forward.14} parent=15 // pred_region
        %p108 = scmp.lt.s32.totalorder %s8, 1
        %s109 = scalar_select %p108, %s8, 1
        %s110 = smul.addr %s109, 4
        %s111 = scalar_lea.vmem %s0, %s110
      $region20: #{rate_predictor_forward.14} parent=15 // pred_fallthru
        _
      // Predicated region
      $region21: #{rate_predictor_forward.14} parent=15 // pred_check
        %p112 = pneg %p54
      $region22: #{rate_predictor_forward.14} parent=15 // pred_check_branch
        %114 = sbr.rel (%p112) target = $region24
      $region23: #{rate_predictor_forward.14} parent=15 // pred_region
        %p115 = scmp.lt.s32.totalorder %s8, 1
        %s116 = scalar_select %p115, %s8, 1
        %s117 = scalar_lea.vmem %s1, %s116
      $region24: #{rate_predictor_forward.14} parent=15 // pred_fallthru
        _
    $region16: #{rate_predictor_forward.14} parent=5 // pred_fallthru
      _
    %p118 = scmp.le.s32.totalorder 1, %s8
    %p119 = scmp.lt.s32.totalorder %s8, 3
    %p120 = pnand %p118, %p119
    %p121 = pneg %p120
    // Predicated region
    $region25: #{rate_predictor_forward.14} parent=5 // pred_check
      _
    $region26: #{rate_predictor_forward.14} parent=5 // pred_check_branch
      %123 = sbr.rel (%p120) target = $region28
    $region27: #{rate_predictor_forward.14} parent=5 // pred_region
      %s124 = ssub.s32 %s8, 1
      %p125 = scmp.lt.s32.totalorder %s13, 1
      %s126 = scalar_select %p125, %s13, 1
      %s127 = smul.addr %s126, 4
      %s128 = scalar_lea.vmem %s0, %s127
      %p129 = pneg %p34
      %p130 = pneg %p31
      %p131 = scmp.lt.s32.totalorder %s13, 1
      %s132 = scalar_select %p131, %s13, 1
      %s133 = scalar_lea.vmem %s1, %s132
      %p134 = pneg %p60
      %p135 = pneg %p57
      %p136 = pneg %p86
      %p137 = pneg %p83
      %p138 = scmp.lt.s32.totalorder %s13, 1
      %s139 = scalar_select %p138, %s13, 1
      %s140 = smul.addr %s139, 4
      %s141 = scalar_lea.vmem %s2, %s140
      %p142 = scmp.lt.s32.totalorder %s13, 1
      %s143 = scalar_select %p142, %s13, 1
      %s144 = smul.addr %s143, 4
      %s145 = scalar_lea.vmem %s0, %s144
      %p146 = scmp.lt.s32.totalorder %s13, 1
      %s147 = scalar_select %p146, %s13, 1
      %s148 = scalar_lea.vmem %s1, %s147
      %p149 = scmp.lt.s32.totalorder %s13, 1
      %s150 = scalar_select %p149, %s13, 1
      %s151 = smul.addr %s150, 4
      %s152 = scalar_lea.vmem %s2, %s151
      %v154 = vld [vmem:[%s145] sm:$0xf]
      %v155 = vld [vmem:[%s148] sm:$0x1]
      %v157 = vunpack.c.l.b16 %v154
      %v158 = vpack.c.b16 %v157, %v157
      %159 = vrot.lane.b32.xlu0 %v158, 96
      %v160 = vpop.permute.xlu0 %159
      %vm161 = vcmask 64512
      %v163 = vsel %vm161, %v154, 0
      %v166 = vsel %vm161, %v160, 0
      %168 = vmatprep.subr.bf16.mxu0 0
      %169 = vmatpush1.bf16.xpose.msra.mxu0 0
      %170 = vmatprep.subr.bf16.mxu0 0
      %171 = vmatpush1.bf16.xpose.msra.mxu0 0
      %172 = vmatprep.subr.bf16.mxu0 0
      %173 = vmatpush1.bf16.xpose.msra.mxu0 0
      %174 = vmatprep.subr.bf16.mxu0 0
      %175 = vmatpush1.bf16.xpose.msra.mxu0 0
      %176 = vmatprep.subr.bf16.mxu0 0
      %177 = vmatpush1.bf16.xpose.msra.mxu0 0
      %178 = vmatprep.subr.bf16.mxu0 0
      %179 = vmatpush1.bf16.xpose.msra.mxu0 0
      %180 = vmatprep.subr.bf16.mxu0 0
      %181 = vmatpush1.bf16.xpose.msra.mxu0 0
      %182 = vmatprep.subr.bf16.mxu0 0
      %183 = vmatpush1.bf16.xpose.msra.mxu0 %v166
      %184 = vmatprep.subr.bf16.mxu0 0
      %185 = vmatpush2.bf16.xpose.msra.mxu0 0
      %186 = vmatprep.subr.bf16.mxu0 0
      %187 = vmatpush2.bf16.xpose.msra.mxu0 0
      %188 = vmatprep.subr.bf16.mxu0 0
      %189 = vmatpush2.bf16.xpose.msra.mxu0 0
      %190 = vmatprep.subr.bf16.mxu0 0
      %191 = vmatpush2.bf16.xpose.msra.mxu0 0
      %192 = vmatprep.subr.bf16.mxu0 0
      %193 = vmatpush2.bf16.xpose.msra.mxu0 0
      %194 = vmatprep.subr.bf16.mxu0 0
      %195 = vmatpush2.bf16.xpose.msra.mxu0 0
      %196 = vmatprep.subr.bf16.mxu0 0
      %197 = vmatpush2.bf16.xpose.msra.mxu0 0
      %198 = vmatprep.subr.bf16.mxu0 0
      %199 = vmatpush2.bf16.xpose.msra.mxu0 0
      %200 = vmatprep.mubr.bf16.mxu0 0
      %201 = vmatmul.mubr.bf16.gmra.mxu0 %v163
      %v202 = vpop.f32.mrf.mxu0
      %v203 = vadd.f32 0.0, %v202
      %v204 = vpop.f32.mrf.mxu0
      %v205 = vpop.f32.mrf.mxu0
      %v206 = vpop.f32.mrf.mxu0
      %207 = vdwg.mxu0
      %v208 = vmul.f32 %v203, 0.35355338
      %v210 = vlaneseq
      %v211 = vshrl.u32 %v210, 7
      %v212 = vsub.s32 0, %v211
      %v213 = vrot.slane %v155, %v212
      %v215 = vadd.f32 %v208, %v213
      %v216 = vsel %vm161, %v215, -inf
      %217 = vmax.xlane.f32.xlu0 %v216
      %v218 = vpop.xlane.xlu0 %217
      %v219 = vsub.f32 %v215, %v218
      %v220 = vmul.f32 %v219, 1.442695
      %v221 = vpow.pop %v220
      %v222 = vsel %vm161, %v221, 0.0
      %223 = vadd.xlane.f32.xlu0 %v222
      %v224 = vpop.xlane.xlu0 %223
      %v225 = vrcp.pop %v224
      %v226 = vmul.f32 %v221, %v225
      %v227 = vpack.c.bf16 %v226, %v226
      %228 = vrot.lane.b32.xlu0 %v158, 64
      %v229 = vpop.permute.xlu0 %228
      %v231 = vsel %vm161, %v227, 0
      %vm233 = vcmask 1043456
      %v235 = vsel %vm233, %v229, 0
      %237 = vmatprep.subr.bf16.mxu0 0
      %238 = vmatpush1.bf16.msra.mxu0 0
      %239 = vmatprep.subr.bf16.mxu0 0
      %240 = vmatpush1.bf16.msra.mxu0 0
      %241 = vmatprep.subr.bf16.mxu0 0
      %242 = vmatpush1.bf16.msra.mxu0 0
      %243 = vmatprep.subr.bf16.mxu0 0
      %244 = vmatpush1.bf16.msra.mxu0 0
      %245 = vmatprep.subr.bf16.mxu0 0
      %246 = vmatpush1.bf16.msra.mxu0 0
      %247 = vmatprep.subr.bf16.mxu0 0
      %248 = vmatpush1.bf16.msra.mxu0 0
      %249 = vmatprep.subr.bf16.mxu0 0
      %250 = vmatpush1.bf16.msra.mxu0 0
      %251 = vmatprep.subr.bf16.mxu0 0
      %252 = vmatpush1.bf16.msra.mxu0 %v235
      %253 = vmatprep.subr.bf16.mxu0 0
      %254 = vmatpush2.bf16.msra.mxu0 0
      %255 = vmatprep.subr.bf16.mxu0 0
      %256 = vmatpush2.bf16.msra.mxu0 0
      %257 = vmatprep.subr.bf16.mxu0 0
      %258 = vmatpush2.bf16.msra.mxu0 0
      %259 = vmatprep.subr.bf16.mxu0 0
      %260 = vmatpush2.bf16.msra.mxu0 0
      %261 = vmatprep.subr.bf16.mxu0 0
      %262 = vmatpush2.bf16.msra.mxu0 0
      %263 = vmatprep.subr.bf16.mxu0 0
      %264 = vmatpush2.bf16.msra.mxu0 0
      %265 = vmatprep.subr.bf16.mxu0 0
      %266 = vmatpush2.bf16.msra.mxu0 0
      %267 = vmatprep.subr.bf16.mxu0 0
      %268 = vmatpush2.bf16.msra.mxu0 0
      %269 = vmatprep.mubr.bf16.mxu0 0
      %270 = vmatmul.mubr.bf16.gmra.mxu0 %v231
      %v271 = vpop.f32.mrf.mxu0
      %v272 = vadd.f32 0.0, %v271
      %v273 = vpop.f32.mrf.mxu0
      %v274 = vpop.f32.mrf.mxu0
      %v275 = vpop.f32.mrf.mxu0
      %276 = vdwg.mxu0
      %277 = vrot.lane.b32.xlu0 %v158, 120
      %v278 = vpop.permute.xlu0 %277
      %279 = vrot.lane.b32.xlu0 %v158, 88
      %v280 = vpop.permute.xlu0 %279
      %v282 = vsel %vm161, %v278, 0
      %v285 = vsel %vm161, %v280, 0
      %287 = vmatprep.subr.bf16.mxu0 0
      %288 = vmatpush1.bf16.xpose.msra.mxu0 0
      %289 = vmatprep.subr.bf16.mxu0 0
      %290 = vmatpush1.bf16.xpose.msra.mxu0 0
      %291 = vmatprep.subr.bf16.mxu0 0
      %292 = vmatpush1.bf16.xpose.msra.mxu0 0
      %293 = vmatprep.subr.bf16.mxu0 0
      %294 = vmatpush1.bf16.xpose.msra.mxu0 0
      %295 = vmatprep.subr.bf16.mxu0 0
      %296 = vmatpush1.bf16.xpose.msra.mxu0 0
      %297 = vmatprep.subr.bf16.mxu0 0
      %298 = vmatpush1.bf16.xpose.msra.mxu0 0
      %299 = vmatprep.subr.bf16.mxu0 0
      %300 = vmatpush1.bf16.xpose.msra.mxu0 0
      %301 = vmatprep.subr.bf16.mxu0 0
      %302 = vmatpush1.bf16.xpose.msra.mxu0 %v285
      %303 = vmatprep.subr.bf16.mxu0 0
      %304 = vmatpush2.bf16.xpose.msra.mxu0 0
      %305 = vmatprep.subr.bf16.mxu0 0
      %306 = vmatpush2.bf16.xpose.msra.mxu0 0
      %307 = vmatprep.subr.bf16.mxu0 0
      %308 = vmatpush2.bf16.xpose.msra.mxu0 0
      %309 = vmatprep.subr.bf16.mxu0 0
      %310 = vmatpush2.bf16.xpose.msra.mxu0 0
      %311 = vmatprep.subr.bf16.mxu0 0
      %312 = vmatpush2.bf16.xpose.msra.mxu0 0
      %313 = vmatprep.subr.bf16.mxu0 0
      %314 = vmatpush2.bf16.xpose.msra.mxu0 0
      %315 = vmatprep.subr.bf16.mxu0 0
      %316 = vmatpush2.bf16.xpose.msra.mxu0 0
      %317 = vmatprep.subr.bf16.mxu0 0
      %318 = vmatpush2.bf16.xpose.msra.mxu0 0
      %319 = vmatprep.mubr.bf16.mxu0 0
      %320 = vmatmul.mubr.bf16.gmra.mxu0 %v282
      %v321 = vpop.f32.mrf.mxu0
      %v322 = vadd.f32 0.0, %v321
      %v323 = vpop.f32.mrf.mxu0
      %v324 = vpop.f32.mrf.mxu0
      %v325 = vpop.f32.mrf.mxu0
      %326 = vdwg.mxu0
      %v327 = vmul.f32 %v322, 0.35355338
      %v328 = vadd.f32 %v327, %v213
      %v329 = vsel %vm161, %v328, -inf
      %330 = vmax.xlane.f32.xlu0 %v329
      %v331 = vpop.xlane.xlu0 %330
      %v332 = vsub.f32 %v328, %v331
      %v333 = vmul.f32 %v332, 1.442695
      %v334 = vpow.pop %v333
      %v335 = vsel %vm161, %v334, 0.0
      %336 = vadd.xlane.f32.xlu0 %v335
      %v337 = vpop.xlane.xlu0 %336
      %v338 = vrcp.pop %v337
      %v339 = vmul.f32 %v334, %v338
      %v340 = vpack.c.bf16 %v339, %v339
      %341 = vrot.lane.b32.xlu0 %v158, 56
      %v342 = vpop.permute.xlu0 %341
      %v344 = vsel %vm161, %v340, 0
      %v347 = vsel %vm233, %v342, 0
      %349 = vmatprep.subr.bf16.mxu0 0
      %350 = vmatpush1.bf16.msra.mxu0 0
      %351 = vmatprep.subr.bf16.mxu0 0
      %352 = vmatpush1.bf16.msra.mxu0 0
      %353 = vmatprep.subr.bf16.mxu0 0
      %354 = vmatpush1.bf16.msra.mxu0 0
      %355 = vmatprep.subr.bf16.mxu0 0
      %356 = vmatpush1.bf16.msra.mxu0 0
      %357 = vmatprep.subr.bf16.mxu0 0
      %358 = vmatpush1.bf16.msra.mxu0 0
      %359 = vmatprep.subr.bf16.mxu0 0
      %360 = vmatpush1.bf16.msra.mxu0 0
      %361 = vmatprep.subr.bf16.mxu0 0
      %362 = vmatpush1.bf16.msra.mxu0 0
      %363 = vmatprep.subr.bf16.mxu0 0
      %364 = vmatpush1.bf16.msra.mxu0 %v347
      %365 = vmatprep.subr.bf16.mxu0 0
      %366 = vmatpush2.bf16.msra.mxu0 0
      %367 = vmatprep.subr.bf16.mxu0 0
      %368 = vmatpush2.bf16.msra.mxu0 0
      %369 = vmatprep.subr.bf16.mxu0 0
      %370 = vmatpush2.bf16.msra.mxu0 0
      %371 = vmatprep.subr.bf16.mxu0 0
      %372 = vmatpush2.bf16.msra.mxu0 0
      %373 = vmatprep.subr.bf16.mxu0 0
      %374 = vmatpush2.bf16.msra.mxu0 0
      %375 = vmatprep.subr.bf16.mxu0 0
      %376 = vmatpush2.bf16.msra.mxu0 0
      %377 = vmatprep.subr.bf16.mxu0 0
      %378 = vmatpush2.bf16.msra.mxu0 0
      %379 = vmatprep.subr.bf16.mxu0 0
      %380 = vmatpush2.bf16.msra.mxu0 0
      %381 = vmatprep.mubr.bf16.mxu0 0
      %382 = vmatmul.mubr.bf16.gmra.mxu0 %v344
      %v383 = vpop.f32.mrf.mxu0
      %v384 = vadd.f32 0.0, %v383
      %v385 = vpop.f32.mrf.mxu0
      %v386 = vpop.f32.mrf.mxu0
      %v387 = vpop.f32.mrf.mxu0
      %388 = vdwg.mxu0
      %389 = vrot.lane.b32.xlu0 %v158, 112
      %v390 = vpop.permute.xlu0 %389
      %391 = vrot.lane.b32.xlu0 %v158, 80
      %v392 = vpop.permute.xlu0 %391
      %v394 = vsel %vm161, %v390, 0
      %v397 = vsel %vm161, %v392, 0
      %399 = vmatprep.subr.bf16.mxu0 0
      %400 = vmatpush1.bf16.xpose.msra.mxu0 0
      %401 = vmatprep.subr.bf16.mxu0 0
      %402 = vmatpush1.bf16.xpose.msra.mxu0 0
      %403 = vmatprep.subr.bf16.mxu0 0
      %404 = vmatpush1.bf16.xpose.msra.mxu0 0
      %405 = vmatprep.subr.bf16.mxu0 0
      %406 = vmatpush1.bf16.xpose.msra.mxu0 0
      %407 = vmatprep.subr.bf16.mxu0 0
      %408 = vmatpush1.bf16.xpose.msra.mxu0 0
      %409 = vmatprep.subr.bf16.mxu0 0
      %410 = vmatpush1.bf16.xpose.msra.mxu0 0
      %411 = vmatprep.subr.bf16.mxu0 0
      %412 = vmatpush1.bf16.xpose.msra.mxu0 0
      %413 = vmatprep.subr.bf16.mxu0 0
      %414 = vmatpush1.bf16.xpose.msra.mxu0 %v397
      %415 = vmatprep.subr.bf16.mxu0 0
      %416 = vmatpush2.bf16.xpose.msra.mxu0 0
      %417 = vmatprep.subr.bf16.mxu0 0
      %418 = vmatpush2.bf16.xpose.msra.mxu0 0
      %419 = vmatprep.subr.bf16.mxu0 0
      %420 = vmatpush2.bf16.xpose.msra.mxu0 0
      %421 = vmatprep.subr.bf16.mxu0 0
      %422 = vmatpush2.bf16.xpose.msra.mxu0 0
      %423 = vmatprep.subr.bf16.mxu0 0
      %424 = vmatpush2.bf16.xpose.msra.mxu0 0
      %425 = vmatprep.subr.bf16.mxu0 0
      %426 = vmatpush2.bf16.xpose.msra.mxu0 0
      %427 = vmatprep.subr.bf16.mxu0 0
      %428 = vmatpush2.bf16.xpose.msra.mxu0 0
      %429 = vmatprep.subr.bf16.mxu0 0
      %430 = vmatpush2.bf16.xpose.msra.mxu0 0
      %431 = vmatprep.mubr.bf16.mxu0 0
      %432 = vmatmul.mubr.bf16.gmra.mxu0 %v394
      %v433 = vpop.f32.mrf.mxu0
      %v434 = vadd.f32 0.0, %v433
      %v435 = vpop.f32.mrf.mxu0
      %v436 = vpop.f32.mrf.mxu0
      %v437 = vpop.f32.mrf.mxu0
      %438 = vdwg.mxu0
      %v439 = vmul.f32 %v434, 0.35355338
      %v440 = vadd.f32 %v439, %v213
      %v441 = vsel %vm161, %v440, -inf
      %442 = vmax.xlane.f32.xlu0 %v441
      %v443 = vpop.xlane.xlu0 %442
      %v444 = vsub.f32 %v440, %v443
      %v445 = vmul.f32 %v444, 1.442695
      %v446 = vpow.pop %v445
      %v447 = vsel %vm161, %v446, 0.0
      %448 = vadd.xlane.f32.xlu0 %v447
      %v449 = vpop.xlane.xlu0 %448
      %v450 = vrcp.pop %v449
      %v451 = vmul.f32 %v446, %v450
      %v452 = vpack.c.bf16 %v451, %v451
      %453 = vrot.lane.b32.xlu0 %v158, 48
      %v454 = vpop.permute.xlu0 %453
      %v456 = vsel %vm161, %v452, 0
      %v459 = vsel %vm233, %v454, 0
      %461 = vmatprep.subr.bf16.mxu0 0
      %462 = vmatpush1.bf16.msra.mxu0 0
      %463 = vmatprep.subr.bf16.mxu0 0
      %464 = vmatpush1.bf16.msra.mxu0 0
      %465 = vmatprep.subr.bf16.mxu0 0
      %466 = vmatpush1.bf16.msra.mxu0 0
      %467 = vmatprep.subr.bf16.mxu0 0
      %468 = vmatpush1.bf16.msra.mxu0 0
      %469 = vmatprep.subr.bf16.mxu0 0
      %470 = vmatpush1.bf16.msra.mxu0 0
      %471 = vmatprep.subr.bf16.mxu0 0
      %472 = vmatpush1.bf16.msra.mxu0 0
      %473 = vmatprep.subr.bf16.mxu0 0
      %474 = vmatpush1.bf16.msra.mxu0 0
      %475 = vmatprep.subr.bf16.mxu0 0
      %476 = vmatpush1.bf16.msra.mxu0 %v459
      %477 = vmatprep.subr.bf16.mxu0 0
      %478 = vmatpush2.bf16.msra.mxu0 0
      %479 = vmatprep.subr.bf16.mxu0 0
      %480 = vmatpush2.bf16.msra.mxu0 0
      %481 = vmatprep.subr.bf16.mxu0 0
      %482 = vmatpush2.bf16.msra.mxu0 0
      %483 = vmatprep.subr.bf16.mxu0 0
      %484 = vmatpush2.bf16.msra.mxu0 0
      %485 = vmatprep.subr.bf16.mxu0 0
      %486 = vmatpush2.bf16.msra.mxu0 0
      %487 = vmatprep.subr.bf16.mxu0 0
      %488 = vmatpush2.bf16.msra.mxu0 0
      %489 = vmatprep.subr.bf16.mxu0 0
      %490 = vmatpush2.bf16.msra.mxu0 0
      %491 = vmatprep.subr.bf16.mxu0 0
      %492 = vmatpush2.bf16.msra.mxu0 0
      %493 = vmatprep.mubr.bf16.mxu0 0
      %494 = vmatmul.mubr.bf16.gmra.mxu0 %v456
      %v495 = vpop.f32.mrf.mxu0
      %v496 = vadd.f32 0.0, %v495
      %v497 = vpop.f32.mrf.mxu0
      %v498 = vpop.f32.mrf.mxu0
      %v499 = vpop.f32.mrf.mxu0
      %500 = vdwg.mxu0
      %501 = vrot.lane.b32.xlu0 %v158, 104
      %v502 = vpop.permute.xlu0 %501
      %503 = vrot.lane.b32.xlu0 %v158, 72
      %v504 = vpop.permute.xlu0 %503
      %v506 = vsel %vm161, %v502, 0
      %v509 = vsel %vm161, %v504, 0
      %511 = vmatprep.subr.bf16.mxu0 0
      %512 = vmatpush1.bf16.xpose.msra.mxu0 0
      %513 = vmatprep.subr.bf16.mxu0 0
      %514 = vmatpush1.bf16.xpose.msra.mxu0 0
      %515 = vmatprep.subr.bf16.mxu0 0
      %516 = vmatpush1.bf16.xpose.msra.mxu0 0
      %517 = vmatprep.subr.bf16.mxu0 0
      %518 = vmatpush1.bf16.xpose.msra.mxu0 0
      %519 = vmatprep.subr.bf16.mxu0 0
      %520 = vmatpush1.bf16.xpose.msra.mxu0 0
      %521 = vmatprep.subr.bf16.mxu0 0
      %522 = vmatpush1.bf16.xpose.msra.mxu0 0
      %523 = vmatprep.subr.bf16.mxu0 0
      %524 = vmatpush1.bf16.xpose.msra.mxu0 0
      %525 = vmatprep.subr.bf16.mxu0 0
      %526 = vmatpush1.bf16.xpose.msra.mxu0 %v509
      %527 = vmatprep.subr.bf16.mxu0 0
      %528 = vmatpush2.bf16.xpose.msra.mxu0 0
      %529 = vmatprep.subr.bf16.mxu0 0
      %530 = vmatpush2.bf16.xpose.msra.mxu0 0
      %531 = vmatprep.subr.bf16.mxu0 0
      %532 = vmatpush2.bf16.xpose.msra.mxu0 0
      %533 = vmatprep.subr.bf16.mxu0 0
      %534 = vmatpush2.bf16.xpose.msra.mxu0 0
      %535 = vmatprep.subr.bf16.mxu0 0
      %536 = vmatpush2.bf16.xpose.msra.mxu0 0
      %537 = vmatprep.subr.bf16.mxu0 0
      %538 = vmatpush2.bf16.xpose.msra.mxu0 0
      %539 = vmatprep.subr.bf16.mxu0 0
      %540 = vmatpush2.bf16.xpose.msra.mxu0 0
      %541 = vmatprep.subr.bf16.mxu0 0
      %542 = vmatpush2.bf16.xpose.msra.mxu0 0
      %543 = vmatprep.mubr.bf16.mxu0 0
      %544 = vmatmul.mubr.bf16.gmra.mxu0 %v506
      %v545 = vpop.f32.mrf.mxu0
      %v546 = vadd.f32 0.0, %v545
      %v547 = vpop.f32.mrf.mxu0
      %v548 = vpop.f32.mrf.mxu0
      %v549 = vpop.f32.mrf.mxu0
      %550 = vdwg.mxu0
      %v551 = vmul.f32 %v546, 0.35355338
      %v552 = vadd.f32 %v551, %v213
      %v553 = vsel %vm161, %v552, -inf
      %554 = vmax.xlane.f32.xlu0 %v553
      %v555 = vpop.xlane.xlu0 %554
      %v556 = vsub.f32 %v552, %v555
      %v557 = vmul.f32 %v556, 1.442695
      %v558 = vpow.pop %v557
      %v559 = vsel %vm161, %v558, 0.0
      %560 = vadd.xlane.f32.xlu0 %v559
      %v561 = vpop.xlane.xlu0 %560
      %v562 = vrcp.pop %v561
      %v563 = vmul.f32 %v558, %v562
      %v564 = vpack.c.bf16 %v563, %v563
      %565 = vrot.lane.b32.xlu0 %v158, 40
      %v566 = vpop.permute.xlu0 %565
      %v568 = vsel %vm161, %v564, 0
      %v571 = vsel %vm233, %v566, 0
      %573 = vmatprep.subr.bf16.mxu0 0
      %574 = vmatpush1.bf16.msra.mxu0 0
      %575 = vmatprep.subr.bf16.mxu0 0
      %576 = vmatpush1.bf16.msra.mxu0 0
      %577 = vmatprep.subr.bf16.mxu0 0
      %578 = vmatpush1.bf16.msra.mxu0 0
      %579 = vmatprep.subr.bf16.mxu0 0
      %580 = vmatpush1.bf16.msra.mxu0 0
      %581 = vmatprep.subr.bf16.mxu0 0
      %582 = vmatpush1.bf16.msra.mxu0 0
      %583 = vmatprep.subr.bf16.mxu0 0
      %584 = vmatpush1.bf16.msra.mxu0 0
      %585 = vmatprep.subr.bf16.mxu0 0
      %586 = vmatpush1.bf16.msra.mxu0 0
      %587 = vmatprep.subr.bf16.mxu0 0
      %588 = vmatpush1.bf16.msra.mxu0 %v571
      %589 = vmatprep.subr.bf16.mxu0 0
      %590 = vmatpush2.bf16.msra.mxu0 0
      %591 = vmatprep.subr.bf16.mxu0 0
      %592 = vmatpush2.bf16.msra.mxu0 0
      %593 = vmatprep.subr.bf16.mxu0 0
      %594 = vmatpush2.bf16.msra.mxu0 0
      %595 = vmatprep.subr.bf16.mxu0 0
      %596 = vmatpush2.bf16.msra.mxu0 0
      %597 = vmatprep.subr.bf16.mxu0 0
      %598 = vmatpush2.bf16.msra.mxu0 0
      %599 = vmatprep.subr.bf16.mxu0 0
      %600 = vmatpush2.bf16.msra.mxu0 0
      %601 = vmatprep.subr.bf16.mxu0 0
      %602 = vmatpush2.bf16.msra.mxu0 0
      %603 = vmatprep.subr.bf16.mxu0 0
      %604 = vmatpush2.bf16.msra.mxu0 0
      %605 = vmatprep.mubr.bf16.mxu0 0
      %606 = vmatmul.mubr.bf16.gmra.mxu0 %v568
      %v607 = vpop.f32.mrf.mxu0
      %v608 = vadd.f32 0.0, %v607
      %v609 = vpop.f32.mrf.mxu0
      %v610 = vpop.f32.mrf.mxu0
      %v611 = vpop.f32.mrf.mxu0
      %612 = vdwg.mxu0
      %614 = vrot.lane.b32.xlu0 %v384, 8
      %v615 = vpop.permute.xlu0 %614
      %618 = vrot.lane.b32.xlu0 %v496, 16
      %v619 = vpop.permute.xlu0 %618
      %622 = vrot.lane.b32.xlu0 %v608, 24
      %v623 = vpop.permute.xlu0 %622
      %v625 = vsel %vm161, %v272, %v615
      %vm626 = vcmask 130048
      %v627 = vsel %vm626, %v625, %v619
      %vm628 = vcmask 195584
      %v629 = vsel %vm628, %v627, %v623
      %v630 = vpack.c.bf16 %v629, %v629
      %vm631 = vcmask 257024
      %632 = vst.msk [vmem:[%s152] sm:$0xf] %vm631, %v630
      %p633 = scmp.lt.s32.totalorder %s13, 1
      %s634 = scalar_select %p633, %s13, 1
      %s635 = smul.addr %s634, 4
      %s636 = scalar_lea.vmem %s2, %s635
      // Predicated region
      $region29: #{rate_predictor_forward.14} parent=27 // pred_check
        %p637 = pneg %p83
      $region30: #{rate_predictor_forward.14} parent=27 // pred_check_branch
        %639 = sbr.rel (%p637) target = $region32
      $region31: #{rate_predictor_forward.14} parent=27 // pred_region
        _
      $region32: #{rate_predictor_forward.14} parent=27 // pred_fallthru
        _
    $region28: #{rate_predictor_forward.14} parent=5 // pred_fallthru
      _
    %p640 = scmp.le.s32.totalorder 2, %s8
    // Predicated region
    $region33: #{rate_predictor_forward.14} parent=5 // pred_check
      %p641 = pneg %p640
    $region34: #{rate_predictor_forward.14} parent=5 // pred_check_branch
      %643 = sbr.rel (%p641) target = $region36
    $region35: #{rate_predictor_forward.14} parent=5 // pred_region
      %s644 = ssub.s32 %s8, 2
      // Predicated region
      $region37: #{rate_predictor_forward.14} parent=35 // pred_check
        %p645 = pneg %p89
      $region38: #{rate_predictor_forward.14} parent=35 // pred_check_branch
        %647 = sbr.rel (%p645) target = $region40
      $region39: #{rate_predictor_forward.14} parent=35 // pred_region
        %p648 = scmp.lt.s32.totalorder %s14, 1
        %s649 = scalar_select %p648, %s14, 1
        %s650 = smul.addr %s649, 4
        %s651 = scalar_lea.vmem %s2, %s650
      $region40: #{rate_predictor_forward.14} parent=35 // pred_fallthru
        _
    $region36: #{rate_predictor_forward.14} parent=5 // pred_fallthru
      _
  $region6: #{rate_predictor_forward.14} parent=0 // loop_footer
    %s12 = sadd.s32 1, %s8
  $region7: #{rate_predictor_forward.14} parent=0 // loop_footer_branch
    %7 = sbr.rel target = $region3
  $region8: #{rate_predictor_forward.14} parent=0 // loop_exit
    _

// kernel: rate_predictor_forward.15
$region0: #{rate_predictor_forward.15}
  #allocation0 [shape = 'u32[]', space=smem, size = 0x4, offset = 0x4, fixed_abs, tag = 'smem constant byte address 0x4 - core index']
  #allocation1 [shape = 'u32[144,128]{1,0:T(1,128)}', space=vmem, size = 0x12000, scoped, tag = 'internal scratch']
  #allocation2 [shape = 'f32[8,32]{1,0:T(8,128)}', space=vmem, size = 0x1000, scoped, tag = 'scratch operand']
  %s0 = inlined_call_operand.vmem [shape: bf16[16,32], index: 0, kind: input, shape index: {}]
  %s1 = inlined_call_operand.vmem [shape: bf16[32,32], index: 1, kind: input, shape index: {}]
  %s2 = inlined_call_operand.vmem [shape: f32[1,32], index: 2, kind: input, shape index: {}]
  %s3 = inlined_call_operand.vmem [shape: bf16[16,32], index: 3, kind: input, shape index: {}]
  %s4 = inlined_call_operand.vmem [shape: f32[1,32], index: 4, kind: input, shape index: {}]
  %s5 = inlined_call_operand.vmem [shape: f32[1,32], index: 5, kind: input, shape index: {}]
  %s6 = inlined_call_operand.vmem [shape: bf16[16,32], index: 6, kind: output, shape index: {}]
  %s7 = sld [smem:[#allocation0]]
  $region65: #{rate_predictor_forward.15} parent=0
    _
  %s9 = ssub.s32 1, %s7
  %s10 = scalar_select 0, %s9, %s7
  loop: start=0, step=1, limit=4
  $region2: #{rate_predictor_forward.15} parent=0 // loop_pre_header
    _
  $region3: #{rate_predictor_forward.15} parent=0 // loop_header
    %s12 = sphi 0, %s16
    %p13 = scmp.ge.s32.totalorder %s12, 4
    %s19 = sphi 0, %s31
    %s20 = sphi 0, %s27
    %s21 = sphi 0, %s19
    %s22 = sphi 0, %s20
    %s23 = sphi 0, %s21
    %s24 = sphi 0, %s22
    %s36 = sphi 0, %s38
    %s39 = sphi 0, %s36
    %s40 = sphi 0, %s39
    %s56 = sphi 0, %s40
    %s62 = sphi 0, %s64
    %s65 = sphi 0, %s62
    %s66 = sphi 0, %s65
    %s82 = sphi 0, %s66
    %s86 = sphi 0, %s86
    %s88 = sphi 0, %s86
    %s89 = sphi 0, %s88
    %s103 = sphi 0, %s89
    %s109 = sphi 0, %s111
    %s112 = sphi 0, %s109
    %s113 = sphi 0, %s112
    %s129 = sphi 0, %s113
    %s133 = sphi 0, %s133
    %s135 = sphi 0, %s133
    %s136 = sphi 0, %s135
    %s150 = sphi 0, %s136
    %s154 = sphi 0, %s154
    %s156 = sphi 0, %s154
    %s157 = sphi 0, %s156
    %s171 = sphi 0, %s157
    %s177 = sphi 0, %s179
    %s180 = sphi 0, %s177
    %s181 = sphi 0, %s180
    %s197 = sphi 0, %s181
  $region4: #{rate_predictor_forward.15} parent=0 // loop_header_branch
    %15 = sbr.rel (%p13) target = $region8
  $region5: #{rate_predictor_forward.15} parent=0 // loop_body
    %s17 = ssub.s32 %s12, 1
    %s18 = ssub.s32 %s12, 2
    %s25 = sadd.s32 1, %s20
    %p26 = scmp.ge.s32.totalorder %s25, 1
    %s27 = scalar_select %p26, 0, %s25
    %s28 = sadd.s32 1, %s19
    %s29 = scalar_select %p26, %s28, %s19
    %p30 = scmp.ge.s32.totalorder %s29, 2
    %s31 = scalar_select %p30, 0, %s29
    %s32 = ssub.s32 %s19, %s31
    %s33 = ssub.s32 %s20, %s27
    %s34 = sor.u32 %s32, %s33
    %p35 = scmp.eq.s32.totalorder %s34, 0
    %s37 = sadd.s32 %s36, 1
    %s38 = scalar_select %p35, %s36, %s37
    %p41 = pneg %p35
    %p42 = scmp.eq.s32.totalorder %s12, 1
    %p43 = por %p41, %p42
    %p44 = scmp.ne.s32.totalorder %s36, %s39
    %p45 = scmp.eq.s32.totalorder %s12, 0
    %p46 = por %p44, %p45
    %p47 = scmp.ne.s32.totalorder %s36, %s39
    %p48 = scmp.eq.s32.totalorder %s17, 1
    %p49 = por %p47, %p48
    %p50 = scmp.ne.s32.totalorder %s39, %s40
    %p51 = scmp.eq.s32.totalorder %s17, 0
    %p52 = por %p50, %p51
    %p53 = scmp.ne.s32.totalorder %s39, %s40
    %p54 = scmp.eq.s32.totalorder %s18, 1
    %p55 = por %p53, %p54
    %p57 = scmp.ne.s32.totalorder %s40, %s56
    %p58 = scmp.eq.s32.totalorder %s18, 0
    %p59 = por %p57, %p58
    %s60 = ssub.s32 %s20, %s27
    %p61 = scmp.eq.s32.totalorder %s60, 0
    %s63 = sadd.s32 %s62, 1
    %s64 = scalar_select %p61, %s62, %s63
    %p67 = pneg %p61
    %p68 = scmp.eq.s32.totalorder %s12, 1
    %p69 = por %p67, %p68
    %p70 = scmp.ne.s32.totalorder %s62, %s65
    %p71 = scmp.eq.s32.totalorder %s12, 0
    %p72 = por %p70, %p71
    %p73 = scmp.ne.s32.totalorder %s62, %s65
    %p74 = scmp.eq.s32.totalorder %s17, 1
    %p75 = por %p73, %p74
    %p76 = scmp.ne.s32.totalorder %s65, %s66
    %p77 = scmp.eq.s32.totalorder %s17, 0
    %p78 = por %p76, %p77
    %p79 = scmp.ne.s32.totalorder %s65, %s66
    %p80 = scmp.eq.s32.totalorder %s18, 1
    %p81 = por %p79, %p80
    %p83 = scmp.ne.s32.totalorder %s66, %s82
    %p84 = scmp.eq.s32.totalorder %s18, 0
    %p85 = por %p83, %p84
    %s87 = sadd.s32 %s86, 1
    %p90 = scmp.eq.s32.totalorder %s12, 1
    %p91 = scmp.ne.s32.totalorder %s86, %s88
    %p92 = scmp.eq.s32.totalorder %s12, 0
    %p93 = por %p91, %p92
    %p94 = scmp.ne.s32.totalorder %s86, %s88
    %p95 = scmp.eq.s32.totalorder %s17, 1
    %p96 = por %p94, %p95
    %p97 = scmp.ne.s32.totalorder %s88, %s89
    %p98 = scmp.eq.s32.totalorder %s17, 0
    %p99 = por %p97, %p98
    %p100 = scmp.ne.s32.totalorder %s88, %s89
    %p101 = scmp.eq.s32.totalorder %s18, 1
    %p102 = por %p100, %p101
    %p104 = scmp.ne.s32.totalorder %s89, %s103
    %p105 = scmp.eq.s32.totalorder %s18, 0
    %p106 = por %p104, %p105
    %s107 = ssub.s32 %s19, %s31
    %p108 = scmp.eq.s32.totalorder %s107, 0
    %s110 = sadd.s32 %s109, 1
    %s111 = scalar_select %p108, %s109, %s110
    %p114 = pneg %p108
    %p115 = scmp.eq.s32.totalorder %s12, 1
    %p116 = por %p114, %p115
    %p117 = scmp.ne.s32.totalorder %s109, %s112
    %p118 = scmp.eq.s32.totalorder %s12, 0
    %p119 = por %p117, %p118
    %p120 = scmp.ne.s32.totalorder %s109, %s112
    %p121 = scmp.eq.s32.totalorder %s17, 1
    %p122 = por %p120, %p121
    %p123 = scmp.ne.s32.totalorder %s112, %s113
    %p124 = scmp.eq.s32.totalorder %s17, 0
    %p125 = por %p123, %p124
    %p126 = scmp.ne.s32.totalorder %s112, %s113
    %p127 = scmp.eq.s32.totalorder %s18, 1
    %p128 = por %p126, %p127
    %p130 = scmp.ne.s32.totalorder %s113, %s129
    %p131 = scmp.eq.s32.totalorder %s18, 0
    %p132 = por %p130, %p131
    %s134 = sadd.s32 %s133, 1
    %p137 = scmp.eq.s32.totalorder %s12, 1
    %p138 = scmp.ne.s32.totalorder %s133, %s135
    %p139 = scmp.eq.s32.totalorder %s12, 0
    %p140 = por %p138, %p139
    %p141 = scmp.ne.s32.totalorder %s133, %s135
    %p142 = scmp.eq.s32.totalorder %s17, 1
    %p143 = por %p141, %p142
    %p144 = scmp.ne.s32.totalorder %s135, %s136
    %p145 = scmp.eq.s32.totalorder %s17, 0
    %p146 = por %p144, %p145
    %p147 = scmp.ne.s32.totalorder %s135, %s136
    %p148 = scmp.eq.s32.totalorder %s18, 1
    %p149 = por %p147, %p148
    %p151 = scmp.ne.s32.totalorder %s136, %s150
    %p152 = scmp.eq.s32.totalorder %s18, 0
    %p153 = por %p151, %p152
    %s155 = sadd.s32 %s154, 1
    %p158 = scmp.eq.s32.totalorder %s12, 1
    %p159 = scmp.ne.s32.totalorder %s154, %s156
    %p160 = scmp.eq.s32.totalorder %s12, 0
    %p161 = por %p159, %p160
    %p162 = scmp.ne.s32.totalorder %s154, %s156
    %p163 = scmp.eq.s32.totalorder %s17, 1
    %p164 = por %p162, %p163
    %p165 = scmp.ne.s32.totalorder %s156, %s157
    %p166 = scmp.eq.s32.totalorder %s17, 0
    %p167 = por %p165, %p166
    %p168 = scmp.ne.s32.totalorder %s156, %s157
    %p169 = scmp.eq.s32.totalorder %s18, 1
    %p170 = por %p168, %p169
    %p172 = scmp.ne.s32.totalorder %s157, %s171
    %p173 = scmp.eq.s32.totalorder %s18, 0
    %p174 = por %p172, %p173
    %s175 = ssub.s32 %s19, %s31
    %p176 = scmp.eq.s32.totalorder %s175, 0
    %s178 = sadd.s32 %s177, 1
    %s179 = scalar_select %p176, %s177, %s178
    %p182 = pneg %p176
    %p183 = scmp.eq.s32.totalorder %s12, 1
    %p184 = por %p182, %p183
    %p185 = scmp.ne.s32.totalorder %s177, %s180
    %p186 = scmp.eq.s32.totalorder %s12, 0
    %p187 = por %p185, %p186
    %p188 = scmp.ne.s32.totalorder %s177, %s180
    %p189 = scmp.eq.s32.totalorder %s17, 1
    %p190 = por %p188, %p189
    %p191 = scmp.ne.s32.totalorder %s180, %s181
    %p192 = scmp.eq.s32.totalorder %s17, 0
    %p193 = por %p191, %p192
    %p194 = scmp.ne.s32.totalorder %s180, %s181
    %p195 = scmp.eq.s32.totalorder %s18, 1
    %p196 = por %p194, %p195
    %p198 = scmp.ne.s32.totalorder %s181, %s197
    %p199 = scmp.eq.s32.totalorder %s18, 0
    %p200 = por %p198, %p199
    %p201 = scmp.le.s32.totalorder 1, %s12
    %p202 = scmp.lt.s32.totalorder %s12, 3
    %p203 = pnand %p201, %p202
    %p204 = pneg %p203
    // Predicated region
    $region9: #{rate_predictor_forward.15} parent=5 // pred_check
      _
    $region10: #{rate_predictor_forward.15} parent=5 // pred_check_branch
      %206 = sbr.rel (%p203) target = $region12
    $region11: #{rate_predictor_forward.15} parent=5 // pred_region
      %s207 = ssub.s32 %s12, 1
      // Predicated region
      $region13: #{rate_predictor_forward.15} parent=11 // pred_check
        %p208 = pneg %p78
      $region14: #{rate_predictor_forward.15} parent=11 // pred_check_branch
        %210 = sbr.rel (%p208) target = $region16
      $region15: #{rate_predictor_forward.15} parent=11 // pred_region
        %s211 = smul.u32 4, %s22
        %p212 = scmp.lt.s32.totalorder %s211, 3
        %s213 = scalar_select %p212, %s211, 3
        %s214 = smul.addr %s213, 4
        %s215 = scalar_lea.vmem %s1, %s214
        %s216 = smul.u32 4, %s22
      $region16: #{rate_predictor_forward.15} parent=11 // pred_fallthru
        _
      // Predicated region
      $region17: #{rate_predictor_forward.15} parent=11 // pred_check
        %p217 = pneg %p99
      $region18: #{rate_predictor_forward.15} parent=11 // pred_check_branch
        %219 = sbr.rel (%p217) target = $region20
      $region19: #{rate_predictor_forward.15} parent=11 // pred_region
        _
      $region20: #{rate_predictor_forward.15} parent=11 // pred_fallthru
        _
      // Predicated region
      $region21: #{rate_predictor_forward.15} parent=11 // pred_check
        %p220 = pneg %p146
      $region22: #{rate_predictor_forward.15} parent=11 // pred_check_branch
        %222 = sbr.rel (%p220) target = $region24
      $region23: #{rate_predictor_forward.15} parent=11 // pred_region
        _
      $region24: #{rate_predictor_forward.15} parent=11 // pred_fallthru
        _
      // Predicated region
      $region25: #{rate_predictor_forward.15} parent=11 // pred_check
        %p223 = pneg %p167
      $region26: #{rate_predictor_forward.15} parent=11 // pred_check_branch
        %225 = sbr.rel (%p223) target = $region28
      $region27: #{rate_predictor_forward.15} parent=11 // pred_region
        _
      $region28: #{rate_predictor_forward.15} parent=11 // pred_fallthru
        _
    $region12: #{rate_predictor_forward.15} parent=5 // pred_fallthru
      _
    %p226 = scmp.lt.s32.totalorder %s12, 2
    // Predicated region
    $region29: #{rate_predictor_forward.15} parent=5 // pred_check
      %p227 = pneg %p226
    $region30: #{rate_predictor_forward.15} parent=5 // pred_check_branch
      %229 = sbr.rel (%p227) target = $region32
    $region31: #{rate_predictor_forward.15} parent=5 // pred_region
      // Predicated region
      $region33: #{rate_predictor_forward.15} parent=31 // pred_check
        %p230 = pneg %p46
      $region34: #{rate_predictor_forward.15} parent=31 // pred_check_branch
        %232 = sbr.rel (%p230) target = $region36
      $region35: #{rate_predictor_forward.15} parent=31 // pred_region
        %p233 = scmp.lt.s32.totalorder %s19, 1
        %s234 = scalar_select %p233, %s19, 1
        %p235 = scmp.lt.s32.totalorder %s20, 0
        %s236 = scalar_select %p235, %s20, 0
        %s237 = sadd.s32 %s236, %s234
        %s238 = smul.addr %s237, 4
        %s239 = scalar_lea.vmem %s0, %s238
      $region36: #{rate_predictor_forward.15} parent=31 // pred_fallthru
        _
      // Predicated region
      $region37: #{rate_predictor_forward.15} parent=31 // pred_check
        %p240 = pneg %p119
      $region38: #{rate_predictor_forward.15} parent=31 // pred_check_branch
        %242 = sbr.rel (%p240) target = $region40
      $region39: #{rate_predictor_forward.15} parent=31 // pred_region
        %p243 = scmp.lt.s32.totalorder %s19, 1
        %s244 = scalar_select %p243, %s19, 1
        %s245 = smul.addr %s244, 4
        %s246 = scalar_lea.vmem %s3, %s245
      $region40: #{rate_predictor_forward.15} parent=31 // pred_fallthru
        _
    $region32: #{rate_predictor_forward.15} parent=5 // pred_fallthru
      _
    %p247 = scmp.le.s32.totalorder 1, %s12
    %p248 = scmp.lt.s32.totalorder %s12, 3
    %p249 = pnand %p247, %p248
    %p250 = pneg %p249
    // Predicated region
    $region41: #{rate_predictor_forward.15} parent=5 // pred_check
      _
    $region42: #{rate_predictor_forward.15} parent=5 // pred_check_branch
      %252 = sbr.rel (%p249) target = $region44
    $region43: #{rate_predictor_forward.15} parent=5 // pred_region
      %s253 = ssub.s32 %s12, 1
      %p254 = scmp.lt.s32.totalorder %s21, 1
      %s255 = scalar_select %p254, %s21, 1
      %p256 = scmp.lt.s32.totalorder %s22, 0
      %s257 = scalar_select %p256, %s22, 0
      %s258 = sadd.s32 %s257, %s255
      %s259 = smul.addr %s258, 4
      %s260 = scalar_lea.vmem %s0, %s259
      %p261 = pneg %p52
      %p262 = pneg %p49
      %s263 = smul.u32 4, %s22
      %p264 = scmp.lt.s32.totalorder %s263, 3
      %s265 = scalar_select %p264, %s263, 3
      %s266 = smul.addr %s265, 4
      %s267 = scalar_lea.vmem %s1, %s266
      %p268 = pneg %p78
      %p269 = pneg %p75
      %p270 = pneg %p99
      %p271 = pneg %p96
      %p272 = scmp.lt.s32.totalorder %s21, 1
      %s273 = scalar_select %p272, %s21, 1
      %s274 = smul.addr %s273, 4
      %s275 = scalar_lea.vmem %s3, %s274
      %p276 = pneg %p125
      %p277 = pneg %p122
      %p278 = pneg %p146
      %p279 = pneg %p143
      %p280 = pneg %p167
      %p281 = pneg %p164
      %p282 = pneg %p193
      %p283 = pneg %p190
      %p284 = scmp.lt.s32.totalorder %s21, 1
      %s285 = scalar_select %p284, %s21, 1
      %s286 = smul.addr %s285, 4
      %s287 = scalar_lea.vmem %s6, %s286
      %p288 = scmp.lt.s32.totalorder %s21, 1
      %s289 = scalar_select %p288, %s21, 1
      %p290 = scmp.lt.s32.totalorder %s22, 0
      %s291 = scalar_select %p290, %s22, 0
      %s292 = sadd.s32 %s291, %s289
      %s293 = smul.addr %s292, 4
      %s294 = scalar_lea.vmem %s0, %s293
      %s295 = smul.u32 4, %s22
      %p296 = scmp.lt.s32.totalorder %s295, 3
      %s297 = scalar_select %p296, %s295, 3
      %s298 = smul.addr %s297, 4
      %s299 = scalar_lea.vmem %s1, %s298
      %s300 = smul.u32 4, %s22
      %p301 = scmp.lt.s32.totalorder %s21, 1
      %s302 = scalar_select %p301, %s21, 1
      %s303 = smul.addr %s302, 4
      %s304 = scalar_lea.vmem %s3, %s303
      %p305 = scmp.lt.s32.totalorder %s21, 1
      %s306 = scalar_select %p305, %s21, 1
      %s307 = smul.addr %s306, 4
      %s308 = scalar_lea.vmem %s6, %s307
      %p310 = scmp.eq.s32.totalorder %s22, 0
      // Predicated region
      $region45: #{rate_predictor_forward.15} parent=43 // pred_check
        %p311 = pneg %p310
      $region46: #{rate_predictor_forward.15} parent=43 // pred_check_branch
        %313 = sbr.rel (%p311) target = $region48
      $region47: #{rate_predictor_forward.15} parent=43 // pred_region
        %vm314 = vcmask 261120
        %315 = vst.msk [vmem:[#allocation2] sm:$0xff] %vm314, 0.0
      $region48: #{rate_predictor_forward.15} parent=43 // pred_fallthru
        _
      %v316 = vld [vmem:[#allocation2] sm:$0xff]
      %v317 = vld [vmem:[%s294] sm:$0xf]
      %v318 = vld [vmem:[%s299] sm:$0xf]
      %v319 = vld [vmem:[%s299 + $0x4] sm:$0xf]
      %v320 = vld [vmem:[%s299 + $0x8] sm:$0xf]
      %v321 = vld [vmem:[%s299 + $0xc] sm:$0xf]
      %v326 = vunpack.c.l.b16 %v318
      %v327 = vunpack.c.l.b16 %v319
      %v328 = vunpack.c.l.b16 %v320
      %v329 = vunpack.c.l.b16 %v321
      %v330 = vpack.c.b16 %v327, %v326
      %v331 = vpack.c.b16 %v329, %v328
      %vm334 = vcmask 261120
      %v336 = vsel %vm334, %v317, 0
      %338 = vmatprep.subr.bf16.mxu0 0
      %339 = vmatpush1.bf16.msra.mxu0 0
      %340 = vmatprep.subr.bf16.mxu0 0
      %341 = vmatpush1.bf16.msra.mxu0 0
      %342 = vmatprep.subr.bf16.mxu0 0
      %343 = vmatpush1.bf16.msra.mxu0 0
      %344 = vmatprep.subr.bf16.mxu0 0
      %345 = vmatpush1.bf16.msra.mxu0 0
      %346 = vmatprep.subr.bf16.mxu0 0
      %347 = vmatpush1.bf16.msra.mxu0 0
      %348 = vmatprep.subr.bf16.mxu0 0
      %349 = vmatpush1.bf16.msra.mxu0 0
      %350 = vmatprep.subr.bf16.mxu0 0
      %351 = vmatpush1.bf16.msra.mxu0 %v331
      %352 = vmatprep.subr.bf16.mxu0 0
      %353 = vmatpush1.bf16.msra.mxu0 %v330
      %354 = vmatprep.subr.bf16.mxu0 0
      %355 = vmatpush2.bf16.msra.mxu0 0
      %356 = vmatprep.subr.bf16.mxu0 0
      %357 = vmatpush2.bf16.msra.mxu0 0
      %358 = vmatprep.subr.bf16.mxu0 0
      %359 = vmatpush2.bf16.msra.mxu0 0
      %360 = vmatprep.subr.bf16.mxu0 0
      %361 = vmatpush2.bf16.msra.mxu0 0
      %362 = vmatprep.subr.bf16.mxu0 0
      %363 = vmatpush2.bf16.msra.mxu0 0
      %364 = vmatprep.subr.bf16.mxu0 0
      %365 = vmatpush2.bf16.msra.mxu0 0
      %366 = vmatprep.subr.bf16.mxu0 0
      %367 = vmatpush2.bf16.msra.mxu0 0
      %368 = vmatprep.subr.bf16.mxu0 0
      %369 = vmatpush2.bf16.msra.mxu0 0
      %370 = vmatprep.mubr.bf16.mxu0 0
      %371 = vmatmul.mubr.bf16.gmra.mxu0 %v336
      %v372 = vpop.f32.mrf.mxu0
      %v373 = vadd.f32 0.0, %v372
      %v374 = vpop.f32.mrf.mxu0
      %v375 = vpop.f32.mrf.mxu0
      %v376 = vpop.f32.mrf.mxu0
      %377 = vdwg.mxu0
      %v378 = vadd.f32 %v316, %v373
      %379 = vst.msk [vmem:[#allocation2] sm:$0xff] %vm334, %v378
      // Predicated region
      $region49: #{rate_predictor_forward.15} parent=43 // pred_check
        %p380 = pneg %p310
      $region50: #{rate_predictor_forward.15} parent=43 // pred_check_branch
        %382 = sbr.rel (%p380) target = $region52
      $region51: #{rate_predictor_forward.15} parent=43 // pred_region
        %v383 = vld [vmem:[#allocation2] sm:$0xff]
        %v384 = vld [vmem:[%s2] sm:$0x1]
        %v386 = vlaneseq
        %v387 = vshrl.u32 %v386, 7
        %v388 = vsub.s32 0, %v387
        %v389 = vrot.slane %v384, %v388
        %v391 = vadd.f32 %v383, %v389
        %v392 = vld [vmem:[%s304] sm:$0xf]
        %v393 = vunpack.c.l.bf16 %v392
        %v394 = vadd.f32 %v391, %v393
        %v395 = vsel %vm334, %v394, 0.0
        %396 = vadd.xlane.f32.xlu0 %v395
        %v397 = vpop.xlane.xlu0 %396
        %v398 = vrcp.pop 32.0
        %v399 = vmul.f32 %v397, %v398
        %v400 = vsub.f32 %v394, %v399
        %v401 = vmul.f32 %v400, %v400
        %v402 = vsel %vm334, %v401, 0.0
        %403 = vadd.xlane.f32.xlu0 %v402
        %v404 = vpop.xlane.xlu0 %403
        %v405 = vmul.f32 %v404, %v398
        %v406 = vadd.f32 %v405, 1e-12
        %v407 = vrsqrt.pop %v406
        %v408 = vmul.f32 %v400, %v407
        %v409 = vld [vmem:[%s4] sm:$0x1]
        %v411 = vlaneseq
        %v412 = vshrl.u32 %v411, 7
        %v413 = vsub.s32 0, %v412
        %v414 = vrot.slane %v409, %v413
        %v416 = vmul.f32 %v408, %v414
        %v417 = vld [vmem:[%s5] sm:$0x1]
        %v419 = vlaneseq
        %v420 = vshrl.u32 %v419, 7
        %v421 = vsub.s32 0, %v420
        %v422 = vrot.slane %v417, %v421
        %v424 = vadd.f32 %v416, %v422
        %v425 = vpack.c.bf16 %v424, %v424
        %vm426 = vcmask 257024
        %427 = vst.msk [vmem:[%s308] sm:$0xf] %vm426, %v425
      $region52: #{rate_predictor_forward.15} parent=43 // pred_fallthru
        _
      %p428 = scmp.lt.s32.totalorder %s21, 1
      %s429 = scalar_select %p428, %s21, 1
      %s430 = smul.addr %s429, 4
      %s431 = scalar_lea.vmem %s6, %s430
      // Predicated region
      $region53: #{rate_predictor_forward.15} parent=43 // pred_check
        %p432 = pneg %p190
      $region54: #{rate_predictor_forward.15} parent=43 // pred_check_branch
        %434 = sbr.rel (%p432) target = $region56
      $region55: #{rate_predictor_forward.15} parent=43 // pred_region
        _
      $region56: #{rate_predictor_forward.15} parent=43 // pred_fallthru
        _
    $region44: #{rate_predictor_forward.15} parent=5 // pred_fallthru
      _
    %p435 = scmp.le.s32.totalorder 2, %s12
    // Predicated region
    $region57: #{rate_predictor_forward.15} parent=5 // pred_check
      %p436 = pneg %p435
    $region58: #{rate_predictor_forward.15} parent=5 // pred_check_branch
      %438 = sbr.rel (%p436) target = $region60
    $region59: #{rate_predictor_forward.15} parent=5 // pred_region
      %s439 = ssub.s32 %s12, 2
      // Predicated region
      $region61: #{rate_predictor_forward.15} parent=59 // pred_check
        %p440 = pneg %p196
      $region62: #{rate_predictor_forward.15} parent=59 // pred_check_branch
        %442 = sbr.rel (%p440) target = $region64
      $region63: #{rate_predictor_forward.15} parent=59 // pred_region
        %p443 = scmp.lt.s32.totalorder %s23, 1
        %s444 = scalar_select %p443, %s23, 1
        %s445 = smul.addr %s444, 4
        %s446 = scalar_lea.vmem %s6, %s445
      $region64: #{rate_predictor_forward.15} parent=59 // pred_fallthru
        _
    $region60: #{rate_predictor_forward.15} parent=5 // pred_fallthru
      _
  $region6: #{rate_predictor_forward.15} parent=0 // loop_footer
    %s16 = sadd.s32 1, %s12
  $region7: #{rate_predictor_forward.15} parent=0 // loop_footer_branch
    %11 = sbr.rel target = $region3
  $region8: #{rate_predictor_forward.15} parent=0 // loop_exit
    _

// kernel: rate_predictor_forward.16
$region0: #{rate_predictor_forward.16}
  #allocation0 [shape = 'u32[]', space=smem, size = 0x4, offset = 0x4, fixed_abs, tag = 'smem constant byte address 0x4 - core index']
  #allocation1 [shape = 'u32[144,128]{1,0:T(1,128)}', space=vmem, size = 0x12000, scoped, tag = 'internal scratch']
  #allocation2 [shape = 'f32[16,64]{1,0:T(8,128)}', space=vmem, size = 0x2000, scoped, tag = 'scratch operand']
  %s0 = inlined_call_operand.vmem [shape: bf16[16,32], index: 0, kind: input, shape index: {}]
  %s1 = inlined_call_operand.vmem [shape: bf16[32,64], index: 1, kind: input, shape index: {}]
  %s2 = inlined_call_operand.vmem [shape: f32[1,64], index: 2, kind: input, shape index: {}]
  %s3 = inlined_call_operand.vmem [shape: bf16[16,64], index: 3, kind: output, shape index: {}]
  %s4 = sld [smem:[#allocation0]]
  $region30: #{rate_predictor_forward.16} parent=0
    _
  %s6 = ssub.s32 1, %s4
  %s7 = scalar_select 0, %s6, %s4
  // Predicated region
  $region2: #{rate_predictor_forward.16} parent=0 // pred_check
    _
  $region3: #{rate_predictor_forward.16} parent=0 // pred_check_branch
    %9 = sbr.rel (0) target = $region5
  $region4: #{rate_predictor_forward.16} parent=0 // pred_region
    _
  $region5: #{rate_predictor_forward.16} parent=0 // pred_fallthru
    _
  // Predicated region
  $region6: #{rate_predictor_forward.16} parent=0 // pred_check
    _
  $region7: #{rate_predictor_forward.16} parent=0 // pred_check_branch
    %11 = sbr.rel (0) target = $region9
  $region8: #{rate_predictor_forward.16} parent=0 // pred_region
    _
  $region9: #{rate_predictor_forward.16} parent=0 // pred_fallthru
    _
  // Predicated region
  $region10: #{rate_predictor_forward.16} parent=0 // pred_check
    _
  $region11: #{rate_predictor_forward.16} parent=0 // pred_check_branch
    %13 = sbr.rel (0) target = $region13
  $region12: #{rate_predictor_forward.16} parent=0 // pred_region
    _
  $region13: #{rate_predictor_forward.16} parent=0 // pred_fallthru
    _
  %p15 = scmp.eq.s32.totalorder 0, 0
  // Predicated region
  $region14: #{rate_predictor_forward.16} parent=0 // pred_check
    %p16 = pneg %p15
  $region15: #{rate_predictor_forward.16} parent=0 // pred_check_branch
    %18 = sbr.rel (%p16) target = $region17
  $region16: #{rate_predictor_forward.16} parent=0 // pred_region
    %vm19 = vcmask 523264
    %20 = vst.msk [vmem:[#allocation2] sm:$0xff] %vm19, 0.0
    %21 = vst.msk [vmem:[#allocation2 + $0x8] sm:$0xff] %vm19, 0.0
  $region17: #{rate_predictor_forward.16} parent=0 // pred_fallthru
    _
  %v22 = vld [vmem:[#allocation2] sm:$0xff]
  %v23 = vld [vmem:[#allocation2 + $0x8] sm:$0xff]
  %v24 = vld [vmem:[%s0] sm:$0xf]
  %v25 = vld [vmem:[%s0 + $0x4] sm:$0xf]
  %v26 = vld [vmem:[%s1] sm:$0xf]
  %v27 = vld [vmem:[%s1 + $0x4] sm:$0xf]
  %v28 = vld [vmem:[%s1 + $0x8] sm:$0xf]
  %v29 = vld [vmem:[%s1 + $0xc] sm:$0xf]
  %v32 = vunpack.c.l.b16 %v24
  %v33 = vunpack.c.l.b16 %v25
  %v34 = vpack.c.b16 %v33, %v32
  %v39 = vunpack.c.l.b16 %v26
  %v40 = vunpack.c.l.b16 %v27
  %v41 = vunpack.c.l.b16 %v28
  %v42 = vunpack.c.l.b16 %v29
  %v43 = vpack.c.b16 %v40, %v39
  %v44 = vpack.c.b16 %v42, %v41
  %vm47 = vcmask 261120
  %v49 = vsel %vm47, %v34, 0
  %51 = vmatprep.subr.bf16.mxu0 0
  %52 = vmatpush1.bf16.msra.mxu0 0
  %53 = vmatprep.subr.bf16.mxu0 0
  %54 = vmatpush1.bf16.msra.mxu0 0
  %55 = vmatprep.subr.bf16.mxu0 0
  %56 = vmatpush1.bf16.msra.mxu0 0
  %57 = vmatprep.subr.bf16.mxu0 0
  %58 = vmatpush1.bf16.msra.mxu0 0
  %59 = vmatprep.subr.bf16.mxu0 0
  %60 = vmatpush1.bf16.msra.mxu0 0
  %61 = vmatprep.subr.bf16.mxu0 0
  %62 = vmatpush1.bf16.msra.mxu0 0
  %63 = vmatprep.subr.bf16.mxu0 0
  %64 = vmatpush1.bf16.msra.mxu0 %v44
  %65 = vmatprep.subr.bf16.mxu0 0
  %66 = vmatpush1.bf16.msra.mxu0 %v43
  %67 = vmatprep.subr.bf16.mxu0 0
  %68 = vmatpush2.bf16.msra.mxu0 0
  %69 = vmatprep.subr.bf16.mxu0 0
  %70 = vmatpush2.bf16.msra.mxu0 0
  %71 = vmatprep.subr.bf16.mxu0 0
  %72 = vmatpush2.bf16.msra.mxu0 0
  %73 = vmatprep.subr.bf16.mxu0 0
  %74 = vmatpush2.bf16.msra.mxu0 0
  %75 = vmatprep.subr.bf16.mxu0 0
  %76 = vmatpush2.bf16.msra.mxu0 0
  %77 = vmatprep.subr.bf16.mxu0 0
  %78 = vmatpush2.bf16.msra.mxu0 0
  %79 = vmatprep.subr.bf16.mxu0 0
  %80 = vmatpush2.bf16.msra.mxu0 0
  %81 = vmatprep.subr.bf16.mxu0 0
  %82 = vmatpush2.bf16.msra.mxu0 0
  %83 = vmatprep.mubr.bf16.mxu0 0
  %84 = vmatmul.mubr.bf16.gmra.mxu0 %v49
  %v85 = vpop.f32.mrf.mxu0
  %v86 = vadd.f32 0.0, %v85
  %v87 = vpop.f32.mrf.mxu0
  %v88 = vpop.f32.mrf.mxu0
  %v89 = vadd.f32 0.0, %v88
  %v90 = vpop.f32.mrf.mxu0
  %91 = vdwg.mxu0
  %v92 = vadd.f32 %v22, %v86
  %v93 = vadd.f32 %v23, %v89
  %vm94 = vcmask 523264
  %95 = vst.msk [vmem:[#allocation2] sm:$0xff] %vm94, %v92
  %96 = vst.msk [vmem:[#allocation2 + $0x8] sm:$0xff] %vm94, %v93
  // Predicated region
  $region18: #{rate_predictor_forward.16} parent=0 // pred_check
    %p97 = pneg %p15
  $region19: #{rate_predictor_forward.16} parent=0 // pred_check_branch
    %99 = sbr.rel (%p97) target = $region21
  $region20: #{rate_predictor_forward.16} parent=0 // pred_region
    %v100 = vld [vmem:[#allocation2] sm:$0xff]
    %v101 = vld [vmem:[#allocation2 + $0x8] sm:$0xff]
    %v102 = vld [vmem:[%s2] sm:$0x1]
    %v104 = vlaneseq
    %v105 = vshrl.u32 %v104, 7
    %v106 = vsub.s32 0, %v105
    %v107 = vrot.slane %v102, %v106
    %v109 = vadd.f32 %v100, %v107
    %v110 = vadd.f32 %v101, %v107
    %v111 = vmul.f32 %v109, 0.5
    %v112 = vmul.f32 %v110, 0.5
    %v113 = vmul.f32 %v109, 0.70710677
    %v114 = vmul.f32 %v110, 0.70710677
    %v115 = verf.f32.pop %v113
    %v116 = verf.f32.pop %v114
    %v117 = vadd.f32 %v115, 1.0
    %v118 = vadd.f32 %v116, 1.0
    %v119 = vmul.f32 %v111, %v117
    %v120 = vmul.f32 %v112, %v118
    %v121 = vpack.c.bf16 %v120, %v119
    %v123 = vunpack.c.l.b16 %v121
    %v124 = vunpack.c.h.b16 %v121
    %v125 = vpack.c.b16 %v123, %v123
    %v126 = vpack.c.b16 %v124, %v124
    %vm129 = vcmask 519168
    %130 = vst.msk [vmem:[%s3] sm:$0xf] %vm129, %v125
    %131 = vst.msk [vmem:[%s3 + $0x4] sm:$0xf] %vm129, %v126
  $region21: #{rate_predictor_forward.16} parent=0 // pred_fallthru
    _
  // Predicated region
  $region22: #{rate_predictor_forward.16} parent=0 // pred_check
    _
  $region23: #{rate_predictor_forward.16} parent=0 // pred_check_branch
    %133 = sbr.rel (0) target = $region25
  $region24: #{rate_predictor_forward.16} parent=0 // pred_region
    _
  $region25: #{rate_predictor_forward.16} parent=0 // pred_fallthru
    _
  // Predicated region
  $region26: #{rate_predictor_forward.16} parent=0 // pred_check
    _
  $region27: #{rate_predictor_forward.16} parent=0 // pred_check_branch
    %135 = sbr.rel (0) target = $region29
  $region28: #{rate_predictor_forward.16} parent=0 // pred_region
    _
  $region29: #{rate_predictor_forward.16} parent=0 // pred_fallthru
    _

// kernel: rate_predictor_forward.17
$region0: #{rate_predictor_forward.17}
  #allocation0 [shape = 'u32[]', space=smem, size = 0x4, offset = 0x4, fixed_abs, tag = 'smem constant byte address 0x4 - core index']
  #allocation1 [shape = 'u32[144,128]{1,0:T(1,128)}', space=vmem, size = 0x12000, scoped, tag = 'internal scratch']
  #allocation2 [shape = 'f32[8,32]{1,0:T(8,128)}', space=vmem, size = 0x1000, scoped, tag = 'scratch operand']
  %s0 = inlined_call_operand.vmem [shape: bf16[16,64], index: 0, kind: input, shape index: {}]
  %s1 = inlined_call_operand.vmem [shape: bf16[64,32], index: 1, kind: input, shape index: {}]
  %s2 = inlined_call_operand.vmem [shape: f32[1,32], index: 2, kind: input, shape index: {}]
  %s3 = inlined_call_operand.vmem [shape: bf16[16,32], index: 3, kind: input, shape index: {}]
  %s4 = inlined_call_operand.vmem [shape: f32[1,32], index: 4, kind: input, shape index: {}]
  %s5 = inlined_call_operand.vmem [shape: f32[1,32], index: 5, kind: input, shape index: {}]
  %s6 = inlined_call_operand.vmem [shape: bf16[16,32], index: 6, kind: output, shape index: {}]
  %s7 = sld [smem:[#allocation0]]
  $region65: #{rate_predictor_forward.17} parent=0
    _
  %s9 = ssub.s32 1, %s7
  %s10 = scalar_select 0, %s9, %s7
  loop: start=0, step=1, limit=4
  $region2: #{rate_predictor_forward.17} parent=0 // loop_pre_header
    _
  $region3: #{rate_predictor_forward.17} parent=0 // loop_header
    %s12 = sphi 0, %s16
    %p13 = scmp.ge.s32.totalorder %s12, 4
    %s19 = sphi 0, %s31
    %s20 = sphi 0, %s27
    %s21 = sphi 0, %s19
    %s22 = sphi 0, %s20
    %s23 = sphi 0, %s21
    %s24 = sphi 0, %s22
    %s36 = sphi 0, %s38
    %s39 = sphi 0, %s36
    %s40 = sphi 0, %s39
    %s56 = sphi 0, %s40
    %s62 = sphi 0, %s64
    %s65 = sphi 0, %s62
    %s66 = sphi 0, %s65
    %s82 = sphi 0, %s66
    %s86 = sphi 0, %s86
    %s88 = sphi 0, %s86
    %s89 = sphi 0, %s88
    %s103 = sphi 0, %s89
    %s109 = sphi 0, %s111
    %s112 = sphi 0, %s109
    %s113 = sphi 0, %s112
    %s129 = sphi 0, %s113
    %s133 = sphi 0, %s133
    %s135 = sphi 0, %s133
    %s136 = sphi 0, %s135
    %s150 = sphi 0, %s136
    %s154 = sphi 0, %s154
    %s156 = sphi 0, %s154
    %s157 = sphi 0, %s156
    %s171 = sphi 0, %s157
    %s177 = sphi 0, %s179
    %s180 = sphi 0, %s177
    %s181 = sphi 0, %s180
    %s197 = sphi 0, %s181
  $region4: #{rate_predictor_forward.17} parent=0 // loop_header_branch
    %15 = sbr.rel (%p13) target = $region8
  $region5: #{rate_predictor_forward.17} parent=0 // loop_body
    %s17 = ssub.s32 %s12, 1
    %s18 = ssub.s32 %s12, 2
    %s25 = sadd.s32 1, %s20
    %p26 = scmp.ge.s32.totalorder %s25, 1
    %s27 = scalar_select %p26, 0, %s25
    %s28 = sadd.s32 1, %s19
    %s29 = scalar_select %p26, %s28, %s19
    %p30 = scmp.ge.s32.totalorder %s29, 2
    %s31 = scalar_select %p30, 0, %s29
    %s32 = ssub.s32 %s19, %s31
    %s33 = ssub.s32 %s20, %s27
    %s34 = sor.u32 %s32, %s33
    %p35 = scmp.eq.s32.totalorder %s34, 0
    %s37 = sadd.s32 %s36, 1
    %s38 = scalar_select %p35, %s36, %s37
    %p41 = pneg %p35
    %p42 = scmp.eq.s32.totalorder %s12, 1
    %p43 = por %p41, %p42
    %p44 = scmp.ne.s32.totalorder %s36, %s39
    %p45 = scmp.eq.s32.totalorder %s12, 0
    %p46 = por %p44, %p45
    %p47 = scmp.ne.s32.totalorder %s36, %s39
    %p48 = scmp.eq.s32.totalorder %s17, 1
    %p49 = por %p47, %p48
    %p50 = scmp.ne.s32.totalorder %s39, %s40
    %p51 = scmp.eq.s32.totalorder %s17, 0
    %p52 = por %p50, %p51
    %p53 = scmp.ne.s32.totalorder %s39, %s40
    %p54 = scmp.eq.s32.totalorder %s18, 1
    %p55 = por %p53, %p54
    %p57 = scmp.ne.s32.totalorder %s40, %s56
    %p58 = scmp.eq.s32.totalorder %s18, 0
    %p59 = por %p57, %p58
    %s60 = ssub.s32 %s20, %s27
    %p61 = scmp.eq.s32.totalorder %s60, 0
    %s63 = sadd.s32 %s62, 1
    %s64 = scalar_select %p61, %s62, %s63
    %p67 = pneg %p61
    %p68 = scmp.eq.s32.totalorder %s12, 1
    %p69 = por %p67, %p68
    %p70 = scmp.ne.s32.totalorder %s62, %s65
    %p71 = scmp.eq.s32.totalorder %s12, 0
    %p72 = por %p70, %p71
    %p73 = scmp.ne.s32.totalorder %s62, %s65
    %p74 = scmp.eq.s32.totalorder %s17, 1
    %p75 = por %p73, %p74
    %p76 = scmp.ne.s32.totalorder %s65, %s66
    %p77 = scmp.eq.s32.totalorder %s17, 0
    %p78 = por %p76, %p77
    %p79 = scmp.ne.s32.totalorder %s65, %s66
    %p80 = scmp.eq.s32.totalorder %s18, 1
    %p81 = por %p79, %p80
    %p83 = scmp.ne.s32.totalorder %s66, %s82
    %p84 = scmp.eq.s32.totalorder %s18, 0
    %p85 = por %p83, %p84
    %s87 = sadd.s32 %s86, 1
    %p90 = scmp.eq.s32.totalorder %s12, 1
    %p91 = scmp.ne.s32.totalorder %s86, %s88
    %p92 = scmp.eq.s32.totalorder %s12, 0
    %p93 = por %p91, %p92
    %p94 = scmp.ne.s32.totalorder %s86, %s88
    %p95 = scmp.eq.s32.totalorder %s17, 1
    %p96 = por %p94, %p95
    %p97 = scmp.ne.s32.totalorder %s88, %s89
    %p98 = scmp.eq.s32.totalorder %s17, 0
    %p99 = por %p97, %p98
    %p100 = scmp.ne.s32.totalorder %s88, %s89
    %p101 = scmp.eq.s32.totalorder %s18, 1
    %p102 = por %p100, %p101
    %p104 = scmp.ne.s32.totalorder %s89, %s103
    %p105 = scmp.eq.s32.totalorder %s18, 0
    %p106 = por %p104, %p105
    %s107 = ssub.s32 %s19, %s31
    %p108 = scmp.eq.s32.totalorder %s107, 0
    %s110 = sadd.s32 %s109, 1
    %s111 = scalar_select %p108, %s109, %s110
    %p114 = pneg %p108
    %p115 = scmp.eq.s32.totalorder %s12, 1
    %p116 = por %p114, %p115
    %p117 = scmp.ne.s32.totalorder %s109, %s112
    %p118 = scmp.eq.s32.totalorder %s12, 0
    %p119 = por %p117, %p118
    %p120 = scmp.ne.s32.totalorder %s109, %s112
    %p121 = scmp.eq.s32.totalorder %s17, 1
    %p122 = por %p120, %p121
    %p123 = scmp.ne.s32.totalorder %s112, %s113
    %p124 = scmp.eq.s32.totalorder %s17, 0
    %p125 = por %p123, %p124
    %p126 = scmp.ne.s32.totalorder %s112, %s113
    %p127 = scmp.eq.s32.totalorder %s18, 1
    %p128 = por %p126, %p127
    %p130 = scmp.ne.s32.totalorder %s113, %s129
    %p131 = scmp.eq.s32.totalorder %s18, 0
    %p132 = por %p130, %p131
    %s134 = sadd.s32 %s133, 1
    %p137 = scmp.eq.s32.totalorder %s12, 1
    %p138 = scmp.ne.s32.totalorder %s133, %s135
    %p139 = scmp.eq.s32.totalorder %s12, 0
    %p140 = por %p138, %p139
    %p141 = scmp.ne.s32.totalorder %s133, %s135
    %p142 = scmp.eq.s32.totalorder %s17, 1
    %p143 = por %p141, %p142
    %p144 = scmp.ne.s32.totalorder %s135, %s136
    %p145 = scmp.eq.s32.totalorder %s17, 0
    %p146 = por %p144, %p145
    %p147 = scmp.ne.s32.totalorder %s135, %s136
    %p148 = scmp.eq.s32.totalorder %s18, 1
    %p149 = por %p147, %p148
    %p151 = scmp.ne.s32.totalorder %s136, %s150
    %p152 = scmp.eq.s32.totalorder %s18, 0
    %p153 = por %p151, %p152
    %s155 = sadd.s32 %s154, 1
    %p158 = scmp.eq.s32.totalorder %s12, 1
    %p159 = scmp.ne.s32.totalorder %s154, %s156
    %p160 = scmp.eq.s32.totalorder %s12, 0
    %p161 = por %p159, %p160
    %p162 = scmp.ne.s32.totalorder %s154, %s156
    %p163 = scmp.eq.s32.totalorder %s17, 1
    %p164 = por %p162, %p163
    %p165 = scmp.ne.s32.totalorder %s156, %s157
    %p166 = scmp.eq.s32.totalorder %s17, 0
    %p167 = por %p165, %p166
    %p168 = scmp.ne.s32.totalorder %s156, %s157
    %p169 = scmp.eq.s32.totalorder %s18, 1
    %p170 = por %p168, %p169
    %p172 = scmp.ne.s32.totalorder %s157, %s171
    %p173 = scmp.eq.s32.totalorder %s18, 0
    %p174 = por %p172, %p173
    %s175 = ssub.s32 %s19, %s31
    %p176 = scmp.eq.s32.totalorder %s175, 0
    %s178 = sadd.s32 %s177, 1
    %s179 = scalar_select %p176, %s177, %s178
    %p182 = pneg %p176
    %p183 = scmp.eq.s32.totalorder %s12, 1
    %p184 = por %p182, %p183
    %p185 = scmp.ne.s32.totalorder %s177, %s180
    %p186 = scmp.eq.s32.totalorder %s12, 0
    %p187 = por %p185, %p186
    %p188 = scmp.ne.s32.totalorder %s177, %s180
    %p189 = scmp.eq.s32.totalorder %s17, 1
    %p190 = por %p188, %p189
    %p191 = scmp.ne.s32.totalorder %s180, %s181
    %p192 = scmp.eq.s32.totalorder %s17, 0
    %p193 = por %p191, %p192
    %p194 = scmp.ne.s32.totalorder %s180, %s181
    %p195 = scmp.eq.s32.totalorder %s18, 1
    %p196 = por %p194, %p195
    %p198 = scmp.ne.s32.totalorder %s181, %s197
    %p199 = scmp.eq.s32.totalorder %s18, 0
    %p200 = por %p198, %p199
    %p201 = scmp.le.s32.totalorder 1, %s12
    %p202 = scmp.lt.s32.totalorder %s12, 3
    %p203 = pnand %p201, %p202
    %p204 = pneg %p203
    // Predicated region
    $region9: #{rate_predictor_forward.17} parent=5 // pred_check
      _
    $region10: #{rate_predictor_forward.17} parent=5 // pred_check_branch
      %206 = sbr.rel (%p203) target = $region12
    $region11: #{rate_predictor_forward.17} parent=5 // pred_region
      %s207 = ssub.s32 %s12, 1
      // Predicated region
      $region13: #{rate_predictor_forward.17} parent=11 // pred_check
        %p208 = pneg %p78
      $region14: #{rate_predictor_forward.17} parent=11 // pred_check_branch
        %210 = sbr.rel (%p208) target = $region16
      $region15: #{rate_predictor_forward.17} parent=11 // pred_region
        %s211 = smul.u32 8, %s22
        %p212 = scmp.lt.s32.totalorder %s211, 7
        %s213 = scalar_select %p212, %s211, 7
        %s214 = smul.addr %s213, 4
        %s215 = scalar_lea.vmem %s1, %s214
        %s216 = smul.u32 8, %s22
      $region16: #{rate_predictor_forward.17} parent=11 // pred_fallthru
        _
      // Predicated region
      $region17: #{rate_predictor_forward.17} parent=11 // pred_check
        %p217 = pneg %p99
      $region18: #{rate_predictor_forward.17} parent=11 // pred_check_branch
        %219 = sbr.rel (%p217) target = $region20
      $region19: #{rate_predictor_forward.17} parent=11 // pred_region
        _
      $region20: #{rate_predictor_forward.17} parent=11 // pred_fallthru
        _
      // Predicated region
      $region21: #{rate_predictor_forward.17} parent=11 // pred_check
        %p220 = pneg %p146
      $region22: #{rate_predictor_forward.17} parent=11 // pred_check_branch
        %222 = sbr.rel (%p220) target = $region24
      $region23: #{rate_predictor_forward.17} parent=11 // pred_region
        _
      $region24: #{rate_predictor_forward.17} parent=11 // pred_fallthru
        _
      // Predicated region
      $region25: #{rate_predictor_forward.17} parent=11 // pred_check
        %p223 = pneg %p167
      $region26: #{rate_predictor_forward.17} parent=11 // pred_check_branch
        %225 = sbr.rel (%p223) target = $region28
      $region27: #{rate_predictor_forward.17} parent=11 // pred_region
        _
      $region28: #{rate_predictor_forward.17} parent=11 // pred_fallthru
        _
    $region12: #{rate_predictor_forward.17} parent=5 // pred_fallthru
      _
    %p226 = scmp.lt.s32.totalorder %s12, 2
    // Predicated region
    $region29: #{rate_predictor_forward.17} parent=5 // pred_check
      %p227 = pneg %p226
    $region30: #{rate_predictor_forward.17} parent=5 // pred_check_branch
      %229 = sbr.rel (%p227) target = $region32
    $region31: #{rate_predictor_forward.17} parent=5 // pred_region
      // Predicated region
      $region33: #{rate_predictor_forward.17} parent=31 // pred_check
        %p230 = pneg %p46
      $region34: #{rate_predictor_forward.17} parent=31 // pred_check_branch
        %232 = sbr.rel (%p230) target = $region36
      $region35: #{rate_predictor_forward.17} parent=31 // pred_region
        %p233 = scmp.lt.s32.totalorder %s19, 1
        %s234 = scalar_select %p233, %s19, 1
        %p235 = scmp.lt.s32.totalorder %s20, 0
        %s236 = scalar_select %p235, %s20, 0
        %s237 = sadd.s32 %s236, %s234
        %s238 = smul.addr %s237, 4
        %s239 = scalar_lea.vmem %s0, %s238
      $region36: #{rate_predictor_forward.17} parent=31 // pred_fallthru
        _
      // Predicated region
      $region37: #{rate_predictor_forward.17} parent=31 // pred_check
        %p240 = pneg %p119
      $region38: #{rate_predictor_forward.17} parent=31 // pred_check_branch
        %242 = sbr.rel (%p240) target = $region40
      $region39: #{rate_predictor_forward.17} parent=31 // pred_region
        %p243 = scmp.lt.s32.totalorder %s19, 1
        %s244 = scalar_select %p243, %s19, 1
        %s245 = smul.addr %s244, 4
        %s246 = scalar_lea.vmem %s3, %s245
      $region40: #{rate_predictor_forward.17} parent=31 // pred_fallthru
        _
    $region32: #{rate_predictor_forward.17} parent=5 // pred_fallthru
      _
    %p247 = scmp.le.s32.totalorder 1, %s12
    %p248 = scmp.lt.s32.totalorder %s12, 3
    %p249 = pnand %p247, %p248
    %p250 = pneg %p249
    // Predicated region
    $region41: #{rate_predictor_forward.17} parent=5 // pred_check
      _
    $region42: #{rate_predictor_forward.17} parent=5 // pred_check_branch
      %252 = sbr.rel (%p249) target = $region44
    $region43: #{rate_predictor_forward.17} parent=5 // pred_region
      %s253 = ssub.s32 %s12, 1
      %p254 = scmp.lt.s32.totalorder %s21, 1
      %s255 = scalar_select %p254, %s21, 1
      %p256 = scmp.lt.s32.totalorder %s22, 0
      %s257 = scalar_select %p256, %s22, 0
      %s258 = sadd.s32 %s257, %s255
      %s259 = smul.addr %s258, 4
      %s260 = scalar_lea.vmem %s0, %s259
      %p261 = pneg %p52
      %p262 = pneg %p49
      %s263 = smul.u32 8, %s22
      %p264 = scmp.lt.s32.totalorder %s263, 7
      %s265 = scalar_select %p264, %s263, 7
      %s266 = smul.addr %s265, 4
      %s267 = scalar_lea.vmem %s1, %s266
      %p268 = pneg %p78
      %p269 = pneg %p75
      %p270 = pneg %p99
      %p271 = pneg %p96
      %p272 = scmp.lt.s32.totalorder %s21, 1
      %s273 = scalar_select %p272, %s21, 1
      %s274 = smul.addr %s273, 4
      %s275 = scalar_lea.vmem %s3, %s274
      %p276 = pneg %p125
      %p277 = pneg %p122
      %p278 = pneg %p146
      %p279 = pneg %p143
      %p280 = pneg %p167
      %p281 = pneg %p164
      %p282 = pneg %p193
      %p283 = pneg %p190
      %p284 = scmp.lt.s32.totalorder %s21, 1
      %s285 = scalar_select %p284, %s21, 1
      %s286 = smul.addr %s285, 4
      %s287 = scalar_lea.vmem %s6, %s286
      %p288 = scmp.lt.s32.totalorder %s21, 1
      %s289 = scalar_select %p288, %s21, 1
      %p290 = scmp.lt.s32.totalorder %s22, 0
      %s291 = scalar_select %p290, %s22, 0
      %s292 = sadd.s32 %s291, %s289
      %s293 = smul.addr %s292, 4
      %s294 = scalar_lea.vmem %s0, %s293
      %s295 = smul.u32 8, %s22
      %p296 = scmp.lt.s32.totalorder %s295, 7
      %s297 = scalar_select %p296, %s295, 7
      %s298 = smul.addr %s297, 4
      %s299 = scalar_lea.vmem %s1, %s298
      %s300 = smul.u32 8, %s22
      %p301 = scmp.lt.s32.totalorder %s21, 1
      %s302 = scalar_select %p301, %s21, 1
      %s303 = smul.addr %s302, 4
      %s304 = scalar_lea.vmem %s3, %s303
      %p305 = scmp.lt.s32.totalorder %s21, 1
      %s306 = scalar_select %p305, %s21, 1
      %s307 = smul.addr %s306, 4
      %s308 = scalar_lea.vmem %s6, %s307
      %p310 = scmp.eq.s32.totalorder %s22, 0
      // Predicated region
      $region45: #{rate_predictor_forward.17} parent=43 // pred_check
        %p311 = pneg %p310
      $region46: #{rate_predictor_forward.17} parent=43 // pred_check_branch
        %313 = sbr.rel (%p311) target = $region48
      $region47: #{rate_predictor_forward.17} parent=43 // pred_region
        %vm314 = vcmask 261120
        %315 = vst.msk [vmem:[#allocation2] sm:$0xff] %vm314, 0.0
      $region48: #{rate_predictor_forward.17} parent=43 // pred_fallthru
        _
      %v316 = vld [vmem:[#allocation2] sm:$0xff]
      %v317 = vld [vmem:[%s294] sm:$0xf]
      %v318 = vld [vmem:[%s299] sm:$0xf]
      %v319 = vld [vmem:[%s299 + $0x4] sm:$0xf]
      %v320 = vld [vmem:[%s299 + $0x8] sm:$0xf]
      %v321 = vld [vmem:[%s299 + $0xc] sm:$0xf]
      %v322 = vld [vmem:[%s299 + $0x10] sm:$0xf]
      %v323 = vld [vmem:[%s299 + $0x14] sm:$0xf]
      %v324 = vld [vmem:[%s299 + $0x18] sm:$0xf]
      %v325 = vld [vmem:[%s299 + $0x1c] sm:$0xf]
      %v334 = vunpack.c.l.b16 %v318
      %v335 = vunpack.c.l.b16 %v319
      %v336 = vunpack.c.l.b16 %v320
      %v337 = vunpack.c.l.b16 %v321
      %v338 = vunpack.c.l.b16 %v322
      %v339 = vunpack.c.l.b16 %v323
      %v340 = vunpack.c.l.b16 %v324
      %v341 = vunpack.c.l.b16 %v325
      %v342 = vpack.c.b16 %v335, %v334
      %v343 = vpack.c.b16 %v337, %v336
      %v344 = vpack.c.b16 %v339, %v338
      %v345 = vpack.c.b16 %v341, %v340
      %vm350 = vcmask 523264
      %v352 = vsel %vm350, %v317, 0
      %354 = vmatprep.subr.bf16.mxu0 0
      %355 = vmatpush1.bf16.msra.mxu0 0
      %356 = vmatprep.subr.bf16.mxu0 0
      %357 = vmatpush1.bf16.msra.mxu0 0
      %358 = vmatprep.subr.bf16.mxu0 0
      %359 = vmatpush1.bf16.msra.mxu0 0
      %360 = vmatprep.subr.bf16.mxu0 0
      %361 = vmatpush1.bf16.msra.mxu0 0
      %362 = vmatprep.subr.bf16.mxu0 0
      %363 = vmatpush1.bf16.msra.mxu0 %v345
      %364 = vmatprep.subr.bf16.mxu0 0
      %365 = vmatpush1.bf16.msra.mxu0 %v344
      %366 = vmatprep.subr.bf16.mxu0 0
      %367 = vmatpush1.bf16.msra.mxu0 %v343
      %368 = vmatprep.subr.bf16.mxu0 0
      %369 = vmatpush1.bf16.msra.mxu0 %v342
      %370 = vmatprep.subr.bf16.mxu0 0
      %371 = vmatpush2.bf16.msra.mxu0 0
      %372 = vmatprep.subr.bf16.mxu0 0
      %373 = vmatpush2.bf16.msra.mxu0 0
      %374 = vmatprep.subr.bf16.mxu0 0
      %375 = vmatpush2.bf16.msra.mxu0 0
      %376 = vmatprep.subr.bf16.mxu0 0
      %377 = vmatpush2.bf16.msra.mxu0 0
      %378 = vmatprep.subr.bf16.mxu0 0
      %379 = vmatpush2.bf16.msra.mxu0 0
      %380 = vmatprep.subr.bf16.mxu0 0
      %381 = vmatpush2.bf16.msra.mxu0 0
      %382 = vmatprep.subr.bf16.mxu0 0
      %383 = vmatpush2.bf16.msra.mxu0 0
      %384 = vmatprep.subr.bf16.mxu0 0
      %385 = vmatpush2.bf16.msra.mxu0 0
      %386 = vmatprep.mubr.bf16.mxu0 0
      %387 = vmatmul.mubr.bf16.gmra.mxu0 %v352
      %v388 = vpop.f32.mrf.mxu0
      %v389 = vadd.f32 0.0, %v388
      %v390 = vpop.f32.mrf.mxu0
      %v391 = vpop.f32.mrf.mxu0
      %v392 = vpop.f32.mrf.mxu0
      %393 = vdwg.mxu0
      %v394 = vadd.f32 %v316, %v389
      %vm395 = vcmask 261120
      %396 = vst.msk [vmem:[#allocation2] sm:$0xff] %vm395, %v394
      // Predicated region
      $region49: #{rate_predictor_forward.17} parent=43 // pred_check
        %p397 = pneg %p310
      $region50: #{rate_predictor_forward.17} parent=43 // pred_check_branch
        %399 = sbr.rel (%p397) target = $region52
      $region51: #{rate_predictor_forward.17} parent=43 // pred_region
        %v400 = vld [vmem:[#allocation2] sm:$0xff]
        %v401 = vld [vmem:[%s2] sm:$0x1]
        %v403 = vlaneseq
        %v404 = vshrl.u32 %v403, 7
        %v405 = vsub.s32 0, %v404
        %v406 = vrot.slane %v401, %v405
        %v408 = vadd.f32 %v400, %v406
        %v409 = vld [vmem:[%s304] sm:$0xf]
        %v410 = vunpack.c.l.bf16 %v409
        %v411 = vadd.f32 %v408, %v410
        %v412 = vsel %vm395, %v411, 0.0
        %413 = vadd.xlane.f32.xlu0 %v412
        %v414 = vpop.xlane.xlu0 %413
        %v415 = vrcp.pop 32.0
        %v416 = vmul.f32 %v414, %v415
        %v417 = vsub.f32 %v411, %v416
        %v418 = vmul.f32 %v417, %v417
        %v419 = vsel %vm395, %v418, 0.0
        %420 = vadd.xlane.f32.xlu0 %v419
        %v421 = vpop.xlane.xlu0 %420
        %v422 = vmul.f32 %v421, %v415
        %v423 = vadd.f32 %v422, 1e-12
        %v424 = vrsqrt.pop %v423
        %v425 = vmul.f32 %v417, %v424
        %v426 = vld [vmem:[%s4] sm:$0x1]
        %v428 = vlaneseq
        %v429 = vshrl.u32 %v428, 7
        %v430 = vsub.s32 0, %v429
        %v431 = vrot.slane %v426, %v430
        %v433 = vmul.f32 %v425, %v431
        %v434 = vld [vmem:[%s5] sm:$0x1]
        %v436 = vlaneseq
        %v437 = vshrl.u32 %v436, 7
        %v438 = vsub.s32 0, %v437
        %v439 = vrot.slane %v434, %v438
        %v441 = vadd.f32 %v433, %v439
        %v442 = vpack.c.bf16 %v441, %v441
        %vm443 = vcmask 257024
        %444 = vst.msk [vmem:[%s308] sm:$0xf] %vm443, %v442
      $region52: #{rate_predictor_forward.17} parent=43 // pred_fallthru
        _
      %p445 = scmp.lt.s32.totalorder %s21, 1
      %s446 = scalar_select %p445, %s21, 1
      %s447 = smul.addr %s446, 4
      %s448 = scalar_lea.vmem %s6, %s447
      // Predicated region
      $region53: #{rate_predictor_forward.17} parent=43 // pred_check
        %p449 = pneg %p190
      $region54: #{rate_predictor_forward.17} parent=43 // pred_check_branch
        %451 = sbr.rel (%p449) target = $region56
      $region55: #{rate_predictor_forward.17} parent=43 // pred_region
        _
      $region56: #{rate_predictor_forward.17} parent=43 // pred_fallthru
        _
    $region44: #{rate_predictor_forward.17} parent=5 // pred_fallthru
      _
    %p452 = scmp.le.s32.totalorder 2, %s12
    // Predicated region
    $region57: #{rate_predictor_forward.17} parent=5 // pred_check
      %p453 = pneg %p452
    $region58: #{rate_predictor_forward.17} parent=5 // pred_check_branch
      %455 = sbr.rel (%p453) target = $region60
    $region59: #{rate_predictor_forward.17} parent=5 // pred_region
      %s456 = ssub.s32 %s12, 2
      // Predicated region
      $region61: #{rate_predictor_forward.17} parent=59 // pred_check
        %p457 = pneg %p196
      $region62: #{rate_predictor_forward.17} parent=59 // pred_check_branch
        %459 = sbr.rel (%p457) target = $region64
      $region63: #{rate_predictor_forward.17} parent=59 // pred_region
        %p460 = scmp.lt.s32.totalorder %s23, 1
        %s461 = scalar_select %p460, %s23, 1
        %s462 = smul.addr %s461, 4
        %s463 = scalar_lea.vmem %s6, %s462
      $region64: #{rate_predictor_forward.17} parent=59 // pred_fallthru
        _
    $region60: #{rate_predictor_forward.17} parent=5 // pred_fallthru
      _
  $region6: #{rate_predictor_forward.17} parent=0 // loop_footer
    %s16 = sadd.s32 1, %s12
  $region7: #{rate_predictor_forward.17} parent=0 // loop_footer_branch
    %11 = sbr.rel target = $region3
  $region8: #{rate_predictor_forward.17} parent=0 // loop_exit
    _

// kernel: rate_predictor_forward.23
$region0: #{rate_predictor_forward.23}
  #allocation0 [shape = 'u32[]', space=smem, size = 0x4, offset = 0x4, fixed_abs, tag = 'smem constant byte address 0x4 - core index']
  #allocation1 [shape = 'u32[144,128]{1,0:T(1,128)}', space=vmem, size = 0x12000, scoped, tag = 'internal scratch']
  %s0 = inlined_call_operand.vmem [shape: bf16[2,32], index: 0, kind: input, shape index: {}]
  %s1 = inlined_call_operand.vmem [shape: bf16[32,32], index: 1, kind: input, shape index: {}]
  %s2 = inlined_call_operand.vmem [shape: f32[1,32], index: 2, kind: input, shape index: {}]
  %s3 = inlined_call_operand.vmem [shape: bf16[32,3], index: 3, kind: input, shape index: {}]
  %s4 = inlined_call_operand.vmem [shape: f32[1,3], index: 4, kind: input, shape index: {}]
  %s5 = inlined_call_operand.hbm [shape: f32[2,3], index: 5, kind: output, shape index: {}]
  %s6 = sld [smem:[#allocation0]]
  $region30: #{rate_predictor_forward.23} parent=0
    _
  %s8 = ssub.s32 1, %s6
  %s9 = scalar_select 0, %s8, %s6
  $region1: #{rate_predictor_forward.23} parent=0
    #allocation2 [shape = 'u8[1024]{0}', space=vmem, size = 0x400, scoped, tag = 'output window, operand 0, single buffered']
    #allocation3 [shape = 's32[1]{0}', space=sflag, size = 0x4, scoped, tag = 'scoped memory for rate_predictor_forward.23']
    %10 = vsyncpa [#allocation3], 0
    // Predicated region
    $region2: #{rate_predictor_forward.23} parent=1 // pred_check
      _
    $region3: #{rate_predictor_forward.23} parent=1 // pred_check_branch
      %12 = sbr.rel (0) target = $region5
    $region4: #{rate_predictor_forward.23} parent=1 // pred_region
      _
    $region5: #{rate_predictor_forward.23} parent=1 // pred_fallthru
      _
    // Predicated region
    $region6: #{rate_predictor_forward.23} parent=1 // pred_check
      _
    $region7: #{rate_predictor_forward.23} parent=1 // pred_check_branch
      %14 = sbr.rel (0) target = $region9
    $region8: #{rate_predictor_forward.23} parent=1 // pred_region
      _
    $region9: #{rate_predictor_forward.23} parent=1 // pred_fallthru
      _
    // Predicated region
    $region10: #{rate_predictor_forward.23} parent=1 // pred_check
      _
    $region11: #{rate_predictor_forward.23} parent=1 // pred_check_branch
      %16 = sbr.rel (0) target = $region13
    $region12: #{rate_predictor_forward.23} parent=1 // pred_region
      _
    $region13: #{rate_predictor_forward.23} parent=1 // pred_fallthru
      _
    // Predicated region
    $region14: #{rate_predictor_forward.23} parent=1 // pred_check
      _
    $region15: #{rate_predictor_forward.23} parent=1 // pred_check_branch
      %18 = sbr.rel (0) target = $region17
    $region16: #{rate_predictor_forward.23} parent=1 // pred_region
      _
    $region17: #{rate_predictor_forward.23} parent=1 // pred_fallthru
      _
    // Predicated region
    $region18: #{rate_predictor_forward.23} parent=1 // pred_check
      _
    $region19: #{rate_predictor_forward.23} parent=1 // pred_check_branch
      %20 = sbr.rel (0) target = $region21
    $region20: #{rate_predictor_forward.23} parent=1 // pred_region
      _
    $region21: #{rate_predictor_forward.23} parent=1 // pred_fallthru
      _
    %v22 = vld [vmem:[%s0] sm:$0x1]
    %v23 = vld [vmem:[%s1] sm:$0xf]
    %v24 = vld [vmem:[%s1 + $0x4] sm:$0xf]
    %v25 = vld [vmem:[%s1 + $0x8] sm:$0xf]
    %v26 = vld [vmem:[%s1 + $0xc] sm:$0xf]
    %v27 = vld [vmem:[%s2] sm:$0x1]
    %v29 = vlaneseq
    %v30 = vshrl.u32 %v29, 7
    %v31 = vsub.s32 0, %v30
    %v32 = vrot.slane %v27, %v31
    %v38 = vunpack.c.l.b16 %v23
    %v39 = vunpack.c.l.b16 %v24
    %v40 = vunpack.c.l.b16 %v25
    %v41 = vunpack.c.l.b16 %v26
    %v42 = vpack.c.b16 %v39, %v38
    %v43 = vpack.c.b16 %v41, %v40
    %vm46 = vcmask 261120
    %v48 = vsel %vm46, %v22, 0
    %50 = vmatprep.subr.bf16.mxu0 0
    %51 = vmatpush1.bf16.msra.mxu0 0
    %52 = vmatprep.subr.bf16.mxu0 0
    %53 = vmatpush1.bf16.msra.mxu0 0
    %54 = vmatprep.subr.bf16.mxu0 0
    %55 = vmatpush1.bf16.msra.mxu0 0
    %56 = vmatprep.subr.bf16.mxu0 0
    %57 = vmatpush1.bf16.msra.mxu0 0
    %58 = vmatprep.subr.bf16.mxu0 0
    %59 = vmatpush1.bf16.msra.mxu0 0
    %60 = vmatprep.subr.bf16.mxu0 0
    %61 = vmatpush1.bf16.msra.mxu0 0
    %62 = vmatprep.subr.bf16.mxu0 0
    %63 = vmatpush1.bf16.msra.mxu0 %v43
    %64 = vmatprep.subr.bf16.mxu0 0
    %65 = vmatpush1.bf16.msra.mxu0 %v42
    %66 = vmatprep.subr.bf16.mxu0 0
    %67 = vmatpush2.bf16.msra.mxu0 0
    %68 = vmatprep.subr.bf16.mxu0 0
    %69 = vmatpush2.bf16.msra.mxu0 0
    %70 = vmatprep.subr.bf16.mxu0 0
    %71 = vmatpush2.bf16.msra.mxu0 0
    %72 = vmatprep.subr.bf16.mxu0 0
    %73 = vmatpush2.bf16.msra.mxu0 0
    %74 = vmatprep.subr.bf16.mxu0 0
    %75 = vmatpush2.bf16.msra.mxu0 0
    %76 = vmatprep.subr.bf16.mxu0 0
    %77 = vmatpush2.bf16.msra.mxu0 0
    %78 = vmatprep.subr.bf16.mxu0 0
    %79 = vmatpush2.bf16.msra.mxu0 0
    %80 = vmatprep.subr.bf16.mxu0 0
    %81 = vmatpush2.bf16.msra.mxu0 0
    %82 = vmatprep.mubr.bf16.mxu0 0
    %83 = vmatmul.mubr.bf16.gmra.mxu0 %v48
    %v84 = vpop.f32.mrf.mxu0
    %v85 = vadd.f32 %v32, %v84
    %v86 = vpop.f32.mrf.mxu0
    %v87 = vpop.f32.mrf.mxu0
    %v88 = vpop.f32.mrf.mxu0
    %89 = vdwg.mxu0
    %v90 = vtanh.pop %v85
    %v91 = vpack.c.bf16 %v90, %v90
    %v92 = vld [vmem:[%s3] sm:$0xf]
    %v93 = vld [vmem:[%s3 + $0x4] sm:$0xf]
    %v94 = vld [vmem:[%s3 + $0x8] sm:$0xf]
    %v95 = vld [vmem:[%s3 + $0xc] sm:$0xf]
    %v96 = vld [vmem:[%s4] sm:$0x1]
    %v98 = vlaneseq
    %v99 = vshrl.u32 %v98, 7
    %v100 = vsub.s32 0, %v99
    %v101 = vrot.slane %v96, %v100
    %v107 = vunpack.c.l.b16 %v92
    %v108 = vunpack.c.l.b16 %v93
    %v109 = vunpack.c.l.b16 %v94
    %v110 = vunpack.c.l.b16 %v95
    %v111 = vpack.c.b16 %v108, %v107
    %v112 = vpack.c.b16 %v110, %v109
    %v116 = vsel %vm46, %v91, 0
    %118 = vmatprep.subr.bf16.mxu0 0
    %119 = vmatpush1.bf16.msra.mxu0 0
    %120 = vmatprep.subr.bf16.mxu0 0
    %121 = vmatpush1.bf16.msra.mxu0 0
    %122 = vmatprep.subr.bf16.mxu0 0
    %123 = vmatpush1.bf16.msra.mxu0 0
    %124 = vmatprep.subr.bf16.mxu0 0
    %125 = vmatpush1.bf16.msra.mxu0 0
    %126 = vmatprep.subr.bf16.mxu0 0
    %127 = vmatpush1.bf16.msra.mxu0 0
    %128 = vmatprep.subr.bf16.mxu0 0
    %129 = vmatpush1.bf16.msra.mxu0 0
    %130 = vmatprep.subr.bf16.mxu0 0
    %131 = vmatpush1.bf16.msra.mxu0 %v112
    %132 = vmatprep.subr.bf16.mxu0 0
    %133 = vmatpush1.bf16.msra.mxu0 %v111
    %134 = vmatprep.subr.bf16.mxu0 0
    %135 = vmatpush2.bf16.msra.mxu0 0
    %136 = vmatprep.subr.bf16.mxu0 0
    %137 = vmatpush2.bf16.msra.mxu0 0
    %138 = vmatprep.subr.bf16.mxu0 0
    %139 = vmatpush2.bf16.msra.mxu0 0
    %140 = vmatprep.subr.bf16.mxu0 0
    %141 = vmatpush2.bf16.msra.mxu0 0
    %142 = vmatprep.subr.bf16.mxu0 0
    %143 = vmatpush2.bf16.msra.mxu0 0
    %144 = vmatprep.subr.bf16.mxu0 0
    %145 = vmatpush2.bf16.msra.mxu0 0
    %146 = vmatprep.subr.bf16.mxu0 0
    %147 = vmatpush2.bf16.msra.mxu0 0
    %148 = vmatprep.subr.bf16.mxu0 0
    %149 = vmatpush2.bf16.msra.mxu0 0
    %150 = vmatprep.mubr.bf16.mxu0 0
    %151 = vmatmul.mubr.bf16.gmra.mxu0 %v116
    %v152 = vpop.f32.mrf.mxu0
    %v153 = vadd.f32 %v101, %v152
    %v154 = vpop.f32.mrf.mxu0
    %v155 = vpop.f32.mrf.mxu0
    %v156 = vpop.f32.mrf.mxu0
    %157 = vdwg.mxu0
    %vm158 = vcmask 17408
    %159 = vst.msk [vmem:[#allocation2] sm:$0x3] %vm158, %v153
    // Predicated region
    $region22: #{rate_predictor_forward.23} parent=1 // pred_check
      _
    $region23: #{rate_predictor_forward.23} parent=1 // pred_check_branch
      %161 = sbr.rel (0) target = $region25
    $region24: #{rate_predictor_forward.23} parent=1 // pred_region
      %s163 = ssub.s32 32, 32
      %164 = vsyncadd [#allocation3], %s163
      %s166 = sshll.u32 [#allocation2], 4
      %s167 = int_to_ptr.vmem [resolvable:$true] %s166
      %169 = dma.vmem_to_hbm [thread:$0]  %s167, 32, %s5, [#allocation3]
    $region25: #{rate_predictor_forward.23} parent=1 // pred_fallthru
      _
    // Predicated region
    $region26: #{rate_predictor_forward.23} parent=1 // pred_check
      _
    $region27: #{rate_predictor_forward.23} parent=1 // pred_check_branch
      %171 = sbr.rel (0) target = $region29
    $region28: #{rate_predictor_forward.23} parent=1 // pred_region
      %172 = dma.done [#allocation3], 32
    $region29: #{rate_predictor_forward.23} parent=1 // pred_fallthru
      _
    %173 = vsyncpa [#allocation3], 1

</llo_original>
